<compile_context>
chip_gen: v5e
topology: v5e:2x2
jax: 0.10.0
libtpu: 0.0.40
codegen_flags: <defaults>
</compile_context>

<pallas_src>
import functools

import jax
import jax.numpy as jnp
from jax import lax
from jax.experimental import pallas as pl
from jax.experimental.pallas import tpu as pltpu


def _pconv_stats_kernel(xpad_ref, mpad_ref, wz_ref, bias_ref,
                        ypre_ref, mout_ref, sum_ref, sqsum_ref,
                        z_scr, p_scr, *, H, W, K, Cin, Cout, matmul_dtype):
    """Partial conv + per-image BN partial statistics; one image per grid step.

    xpad_ref, mpad_ref : (1, H+K-1, W+K-1, Cin)  zero-padded NHWC input / mask
    wz_ref             : (K*K*2*Cin, Cout+1)     im2col weight, augmented with
                                                 a ones column (mask conv)
    bias_ref           : (1, Cout)               conv bias
    ypre_ref           : (1, H*W, Cout)          masked conv output (pre-BN)
    mout_ref           : (1, H*W, 1)             single-channel mask output
    sum_ref, sqsum_ref : (1, 1, Cout)            per-image BN partial sums
    z_scr              : (H+K-1, W+K-1, 2*Cin)   VMEM staging of [x*m, m]
    p_scr              : (H*W, K*K*2*Cin)        VMEM im2col patch matrix
    """
    HW = H * W
    C2 = 2 * Cin

    xp = xpad_ref[0]                       # (Hp, Wp, Cin)
    mp = mpad_ref[0]

    # Stage [x*m, m] once so every im2col tap is a cheap strided ref load.
    z_scr[:, :, :Cin] = xp * mp
    z_scr[:, :, Cin:] = mp

    # im2col: K*K shifted windows laid side by side along the contraction axis
    # (reshape only collapses leading dims -> layout-preserving).
    for ki in range(K):
        for kj in range(K):
            t = ki * K + kj
            win = z_scr[ki:ki + H, kj:kj + W, :]            # (H, W, 2*Cin)
            p_scr[:, t * C2:(t + 1) * C2] = win.reshape(HW, C2)

    # One fat MXU contraction (K*K*2*Cin) instead of K*K tiny ones; the last
    # output column is mask_conv(m) with all-ones weights (exact: 0/1 inputs).
    conv = jnp.dot(p_scr[...].astype(matmul_dtype), wz_ref[...],
                   preferred_element_type=jnp.float32)      # (HW, Cout+1)

    msum = conv[:, Cout:Cout + 1]                           # (HW, 1)
    h = conv[:, :Cout] + bias_ref[...]                      # (HW, Cout)
    nonzero = msum > 0.0

    # pconv semantics: y = h where mask_sum > 0 else 0; m_out = masked_fill
    # (mask_sum > 0 -> 1).  The original (h-bias)/m_out + bias round trip is a
    # no-op after the in-place fill, so it is dropped entirely.
    y = jnp.where(nonzero, h, 0.0)
    ypre_ref[0] = y.astype(ypre_ref.dtype)
    mout_ref[0] = jnp.where(nonzero, 1.0, msum).astype(mout_ref.dtype)

    # Per-image BN partial statistics (finalized across the batch in XLA).
    sum_ref[0] = jnp.sum(y, axis=0, keepdims=True)
    sqsum_ref[0] = jnp.sum(y * y, axis=0, keepdims=True)


def _bn_act_kernel(y_ref, scale_ref, shift_ref, out_ref):
    """Per-channel affine (folded BatchNorm) + ReLU over a row tile."""
    out_ref[...] = jnp.maximum(
        y_ref[...] * scale_ref[...] + shift_ref[...], 0.0)


def conv_module_forward(x, m, weight, bias, gamma, beta, *,
                        stride=1, eps=1e-5, matmul_dtype=jnp.bfloat16):
    """x, m: NCHW float32; weight: OIHW. Returns (y, m_out), both NCHW.

    Implements conv_module: pconv(x, m) -> BatchNorm2d (training-mode batch
    statistics, as a freshly constructed torch module) -> ReLU.
    """
    assert stride == 1  # TODO(synk): stride != 1 not implemented in this kernel
    N, Cin, H, W = x.shape
    Cout, _, K, _ = weight.shape
    pad = 1
    Ho = H + 2 * pad - K + 1
    Wo = W + 2 * pad - K + 1
    Hp, Wp = H + 2 * pad, W + 2 * pad
    HW = Ho * Wo
    C2 = 2 * Cin

    # ---- XLA glue: layout + zero padding (single fused pass over x / m). ----
    # TODO(synk): a production variant should consume/produce channels-last
    # activations directly and drop these NCHW<->NHWC transposes.
    x_nhwc = jnp.transpose(x, (0, 2, 3, 1))
    m_nhwc = jnp.transpose(m, (0, 2, 3, 1))
    xpad = jnp.pad(x_nhwc, ((0, 0), (pad, pad), (pad, pad), (0, 0)))
    mpad = jnp.pad(m_nhwc, ((0, 0), (pad, pad), (pad, pad), (0, 0)))

    # Augmented im2col weight: rows ordered (tap, [x*m channels, m channels]),
    # columns = [Cout conv outputs, 1 mask-sum output].
    w_hwio = jnp.transpose(weight, (2, 3, 1, 0)).reshape(K * K, Cin, Cout)
    w_x = jnp.concatenate(
        [w_hwio, jnp.zeros((K * K, Cin, 1), w_hwio.dtype)], axis=-1)
    w_m = jnp.concatenate(
        [jnp.zeros((K * K, Cin, Cout), w_hwio.dtype),
         jnp.ones((K * K, Cin, 1), w_hwio.dtype)], axis=-1)
    wz = jnp.concatenate([w_x, w_m], axis=1).reshape(K * K * C2, Cout + 1)
    wz = wz.astype(matmul_dtype)           # bf16 MXU path, f32 accumulation
    bias2 = bias.reshape(1, Cout).astype(jnp.float32)

    kernel1 = functools.partial(
        _pconv_stats_kernel, H=Ho, W=Wo, K=K, Cin=Cin, Cout=Cout,
        matmul_dtype=matmul_dtype)

    out_shapes = (
        jax.ShapeDtypeStruct((N, HW, Cout), jnp.float32),   # y_pre
        jax.ShapeDtypeStruct((N, HW, 1), jnp.float32),      # mask (1 channel)
        jax.ShapeDtypeStruct((N, 1, Cout), jnp.float32),    # per-image sum
        jax.ShapeDtypeStruct((N, 1, Cout), jnp.float32),    # per-image sumsq
    )

    y_pre, m_out1, psum, psq = pl.pallas_call(
        kernel1,
        out_shape=out_shapes,
        grid=(N,),
        in_specs=[
            pl.BlockSpec((1, Hp, Wp, Cin), lambda i: (i, 0, 0, 0)),
            pl.BlockSpec((1, Hp, Wp, Cin), lambda i: (i, 0, 0, 0)),
            pl.BlockSpec((K * K * C2, Cout + 1), lambda i: (0, 0)),
            pl.BlockSpec((1, Cout), lambda i: (0, 0)),
        ],
        out_specs=(
            pl.BlockSpec((1, HW, Cout), lambda i: (i, 0, 0)),
            pl.BlockSpec((1, HW, 1), lambda i: (i, 0, 0)),
            pl.BlockSpec((1, 1, Cout), lambda i: (i, 0, 0)),
            pl.BlockSpec((1, 1, Cout), lambda i: (i, 0, 0)),
        ),
        scratch_shapes=[
            pltpu.VMEM((Hp, Wp, C2), jnp.float32),          # staged [x*m, m]
            pltpu.VMEM((HW, K * K * C2), jnp.float32),      # im2col patches
        ],
        compiler_params=pltpu.CompilerParams(
            dimension_semantics=("parallel",),
            vmem_limit_bytes=32 * 1024 * 1024),
    )(xpad, mpad, wz, bias2)

    # ---- BatchNorm2d training-mode statistics (tiny cross-image reduce). ----
    count = jnp.float32(N * HW)
    mean = jnp.sum(psum[:, 0, :], axis=0, keepdims=True) / count    # (1, Cout)
    var = jnp.sum(psq[:, 0, :], axis=0, keepdims=True) / count - mean * mean
    scale = gamma.reshape(1, Cout) * lax.rsqrt(var + eps)
    shift = beta.reshape(1, Cout) - mean * scale

    # ---- pass 2: normalize + ReLU over row tiles ("parallel" grid). ----
    total = N * HW
    tr = total
    for cand in (2048, 1024, 512, 256, 128, 64, 32, 16, 8):
        if cand <= total // 2 and total % cand == 0:
            tr = cand
            break

    y_flat = y_pre.reshape(total, Cout)
    y_out = pl.pallas_call(
        _bn_act_kernel,
        out_shape=jax.ShapeDtypeStruct((total, Cout), jnp.float32),
        grid=(total // tr,),
        in_specs=[
            pl.BlockSpec((tr, Cout), lambda i: (i, 0)),
            pl.BlockSpec((1, Cout), lambda i: (0, 0)),
            pl.BlockSpec((1, Cout), lambda i: (0, 0)),
        ],
        out_specs=pl.BlockSpec((tr, Cout), lambda i: (i, 0)),
        compiler_params=pltpu.CompilerParams(
            dimension_semantics=("parallel",),
            vmem_limit_bytes=32 * 1024 * 1024),
    )(y_flat, scale, shift)

    # ---- back to the PyTorch NCHW convention. ----
    y = jnp.transpose(y_out.reshape(N, Ho, Wo, Cout), (0, 3, 1, 2))
    m_out = jnp.broadcast_to(m_out1.reshape(N, 1, Ho, Wo), (N, Cout, Ho, Wo))
    return y, m_out


if __name__ == "__main__":
    # conv_module(in_channels=4, out_channels=8, kernel_size=3, stride=1)
    N, Cin, Cout, H, W, K = 2, 4, 8, 16, 16, 3

    key = jax.random.PRNGKey(0)
    kx, km, kw, kb = jax.random.split(key, 4)

    x = jax.random.normal(kx, (N, Cin, H, W), dtype=jnp.float32)
    # binary "hole" mask of a partial conv
    m = (jax.random.uniform(km, (N, Cin, H, W)) > 0.3).astype(jnp.float32)

    # deterministic parameter init (synthetic; torch Conv2d-like uniform scale)
    fan_in = Cin * K * K
    bound = 1.0 / float(fan_in) ** 0.5
    weight = jax.random.uniform(kw, (Cout, Cin, K, K),
                                minval=-bound, maxval=bound, dtype=jnp.float32)
    bias = jax.random.uniform(kb, (Cout,),
                              minval=-bound, maxval=bound, dtype=jnp.float32)
    gamma = jnp.ones((Cout,), jnp.float32)   # BatchNorm2d default init
    beta = jnp.zeros((Cout,), jnp.float32)

    fwd = jax.jit(conv_module_forward)
    y, m_out = fwd(x, m, weight, bias, gamma, beta)
    jax.block_until_ready((y, m_out))

    assert y.shape == (N, Cout, H, W) and m_out.shape == (N, Cout, H, W)
    assert bool(jnp.all(jnp.isfinite(y))) and bool(jnp.all(jnp.isfinite(m_out)))
    print("KERNEL_OK")
</pallas_src>

<mosaic_0001>
module attributes {stable_mosaic.version = 11 : i64} {
  func.func @_bn_act_kernel(%arg0: i32, %arg1: memref<256x8xf32, #tpu.memory_space<vmem>>, %arg2: memref<1x8xf32, #tpu.memory_space<vmem>>, %arg3: memref<1x8xf32, #tpu.memory_space<vmem>>, %arg4: memref<256x8xf32, #tpu.memory_space<vmem>>) attributes {dimension_semantics = [#tpu.dimension_semantics<parallel>], iteration_bounds = array<i64: 2>, scalar_prefetch = 0 : i64, scratch_operands = 0 : i64, tpu.core_type = #tpu.core_type<tc>, window_params = [{transform_indices = @transform_0, window_bounds = array<i64: 256, 8>}, {pipeline_mode = #tpu.pipeline_mode<synchronous>, transform_indices = @transform_1, window_bounds = array<i64: 1, 8>}, {pipeline_mode = #tpu.pipeline_mode<synchronous>, transform_indices = @transform_2, window_bounds = array<i64: 1, 8>}, {transform_indices = @transform_3, window_bounds = array<i64: 256, 8>}]} {
    %c0 = arith.constant 0 : index
    %c0_0 = arith.constant 0 : index
    %0 = vector.load %arg1[%c0, %c0_0] : memref<256x8xf32, #tpu.memory_space<vmem>>, vector<256x8xf32>
    %c0_1 = arith.constant 0 : index
    %c0_2 = arith.constant 0 : index
    %1 = vector.load %arg2[%c0_1, %c0_2] : memref<1x8xf32, #tpu.memory_space<vmem>>, vector<1x8xf32>
    %2 = vector.broadcast %1 : vector<1x8xf32> to vector<256x8xf32>
    %3 = arith.mulf %0, %2 : vector<256x8xf32>
    %c0_3 = arith.constant 0 : index
    %c0_4 = arith.constant 0 : index
    %4 = vector.load %arg3[%c0_3, %c0_4] : memref<1x8xf32, #tpu.memory_space<vmem>>, vector<1x8xf32>
    %5 = vector.broadcast %4 : vector<1x8xf32> to vector<256x8xf32>
    %6 = arith.addf %3, %5 : vector<256x8xf32>
    %cst = arith.constant 0.000000e+00 : f32
    %7 = vector.broadcast %cst : f32 to vector<256x8xf32>
    %8 = arith.maximumf %6, %7 : vector<256x8xf32>
    %c0_5 = arith.constant 0 : index
    %c0_6 = arith.constant 0 : index
    %9 = vector.load %arg4[%c0_5, %c0_6] : memref<256x8xf32, #tpu.memory_space<vmem>>, vector<256x8xf32>
    tpu.vector_store %arg4[%c0_5, %c0_6], %8 {strides = array<i32>} : memref<256x8xf32, #tpu.memory_space<vmem>>, vector<256x8xf32>,
    return
  }
  func.func @transform_0(%arg0: i32) -> (i32, i32) {
    %c0_i32 = arith.constant 0 : i32
    %c0_i32_0 = arith.constant 0 : i32
    return %arg0, %c0_i32 : i32, i32
  }
  func.func @transform_1(%arg0: i32) -> (i32, i32) {
    %c0_i32 = arith.constant 0 : i32
    %c0_i32_0 = arith.constant 0 : i32
    %c0_i32_1 = arith.constant 0 : i32
    return %c0_i32, %c0_i32_0 : i32, i32
  }
  func.func @transform_2(%arg0: i32) -> (i32, i32) {
    %c0_i32 = arith.constant 0 : i32
    %c0_i32_0 = arith.constant 0 : i32
    %c0_i32_1 = arith.constant 0 : i32
    return %c0_i32, %c0_i32_0 : i32, i32
  }
  func.func @transform_3(%arg0: i32) -> (i32, i32) {
    %c0_i32 = arith.constant 0 : i32
    %c0_i32_0 = arith.constant 0 : i32
    return %arg0, %c0_i32 : i32, i32
  }
}

module attributes {stable_mosaic.version = 11 : i64} {
  func.func @_pconv_stats_kernel(%arg0: i32, %arg1: memref<1x18x18x4xf32, #tpu.memory_space<vmem>>, %arg2: memref<1x18x18x4xf32, #tpu.memory_space<vmem>>, %arg3: memref<72x9xbf16, #tpu.memory_space<vmem>>, %arg4: memref<1x8xf32, #tpu.memory_space<vmem>>, %arg5: memref<1x256x8xf32, #tpu.memory_space<vmem>>, %arg6: memref<1x256x1xf32, #tpu.memory_space<vmem>>, %arg7: memref<1x1x8xf32, #tpu.memory_space<vmem>>, %arg8: memref<1x1x8xf32, #tpu.memory_space<vmem>>, %arg9: memref<18x18x8xf32, #tpu.memory_space<vmem>>, %arg10: memref<256x72xf32, #tpu.memory_space<vmem>>) attributes {dimension_semantics = [#tpu.dimension_semantics<parallel>], iteration_bounds = array<i64: 2>, scalar_prefetch = 0 : i64, scratch_operands = 2 : i64, tpu.core_type = #tpu.core_type<tc>, window_params = [{transform_indices = @transform_0, window_bounds = array<i64: 1, 18, 18, 4>}, {transform_indices = @transform_1, window_bounds = array<i64: 1, 18, 18, 4>}, {pipeline_mode = #tpu.pipeline_mode<synchronous>, transform_indices = @transform_2, window_bounds = array<i64: 72, 9>}, {pipeline_mode = #tpu.pipeline_mode<synchronous>, transform_indices = @transform_3, window_bounds = array<i64: 1, 8>}, {transform_indices = @transform_4, window_bounds = array<i64: 1, 256, 8>}, {transform_indices = @transform_5, window_bounds = array<i64: 1, 256, 1>}, {transform_indices = @transform_6, window_bounds = array<i64: 1, 1, 8>}, {transform_indices = @transform_7, window_bounds = array<i64: 1, 1, 8>}]} {
    %c0 = arith.constant 0 : index
    %c0_0 = arith.constant 0 : index
    %c0_1 = arith.constant 0 : index
    %c0_2 = arith.constant 0 : index
    %0 = vector.load %arg1[%c0, %c0_0, %c0_1, %c0_2] : memref<1x18x18x4xf32, #tpu.memory_space<vmem>>, vector<1x18x18x4xf32>
    %1 = vector.shape_cast %0 : vector<1x18x18x4xf32> to vector<18x18x4xf32>
    %c0_3 = arith.constant 0 : index
    %c0_4 = arith.constant 0 : index
    %c0_5 = arith.constant 0 : index
    %c0_6 = arith.constant 0 : index
    %2 = vector.load %arg2[%c0_3, %c0_4, %c0_5, %c0_6] : memref<1x18x18x4xf32, #tpu.memory_space<vmem>>, vector<1x18x18x4xf32>
    %3 = vector.shape_cast %2 : vector<1x18x18x4xf32> to vector<18x18x4xf32>
    %4 = arith.mulf %1, %3 : vector<18x18x4xf32>
    %c0_7 = arith.constant 0 : index
    %c0_8 = arith.constant 0 : index
    %c0_9 = arith.constant 0 : index
    %5 = vector.load %arg9[%c0_7, %c0_8, %c0_9] : memref<18x18x8xf32, #tpu.memory_space<vmem>>, vector<18x18x4xf32>
    tpu.vector_store %arg9[%c0_7, %c0_8, %c0_9], %4 {strides = array<i32>} : memref<18x18x8xf32, #tpu.memory_space<vmem>>, vector<18x18x4xf32>,
    %c0_10 = arith.constant 0 : index
    %c0_11 = arith.constant 0 : index
    %c4 = arith.constant 4 : index
    %6 = vector.load %arg9[%c0_10, %c0_11, %c4] : memref<18x18x8xf32, #tpu.memory_space<vmem>>, vector<18x18x4xf32>
    tpu.vector_store %arg9[%c0_10, %c0_11, %c4], %3 {strides = array<i32>} : memref<18x18x8xf32, #tpu.memory_space<vmem>>, vector<18x18x4xf32>,
    %c0_12 = arith.constant 0 : index
    %c0_13 = arith.constant 0 : index
    %c0_14 = arith.constant 0 : index
    %7 = vector.load %arg9[%c0_12, %c0_13, %c0_14] : memref<18x18x8xf32, #tpu.memory_space<vmem>>, vector<16x16x8xf32>
    %8 = vector.shape_cast %7 : vector<16x16x8xf32> to vector<256x8xf32>
    %c0_15 = arith.constant 0 : index
    %c0_16 = arith.constant 0 : index
    %9 = vector.load %arg10[%c0_15, %c0_16] : memref<256x72xf32, #tpu.memory_space<vmem>>, vector<256x8xf32>
    tpu.vector_store %arg10[%c0_15, %c0_16], %8 {strides = array<i32>} : memref<256x72xf32, #tpu.memory_space<vmem>>, vector<256x8xf32>,
    %c0_17 = arith.constant 0 : index
    %c1 = arith.constant 1 : index
    %c0_18 = arith.constant 0 : index
    %10 = vector.load %arg9[%c0_17, %c1, %c0_18] : memref<18x18x8xf32, #tpu.memory_space<vmem>>, vector<16x16x8xf32>
    %11 = vector.shape_cast %10 : vector<16x16x8xf32> to vector<256x8xf32>
    %c0_19 = arith.constant 0 : index
    %c8 = arith.constant 8 : index
    %12 = vector.load %arg10[%c0_19, %c8] : memref<256x72xf32, #tpu.memory_space<vmem>>, vector<256x8xf32>
    tpu.vector_store %arg10[%c0_19, %c8], %11 {strides = array<i32>} : memref<256x72xf32, #tpu.memory_space<vmem>>, vector<256x8xf32>,
    %c0_20 = arith.constant 0 : index
    %c2 = arith.constant 2 : index
    %c0_21 = arith.constant 0 : index
    %13 = vector.load %arg9[%c0_20, %c2, %c0_21] : memref<18x18x8xf32, #tpu.memory_space<vmem>>, vector<16x16x8xf32>
    %14 = vector.shape_cast %13 : vector<16x16x8xf32> to vector<256x8xf32>
    %c0_22 = arith.constant 0 : index
    %c16 = arith.constant 16 : index
    %15 = vector.load %arg10[%c0_22, %c16] : memref<256x72xf32, #tpu.memory_space<vmem>>, vector<256x8xf32>
    tpu.vector_store %arg10[%c0_22, %c16], %14 {strides = array<i32>} : memref<256x72xf32, #tpu.memory_space<vmem>>, vector<256x8xf32>,
    %c1_23 = arith.constant 1 : index
    %c0_24 = arith.constant 0 : index
    %c0_25 = arith.constant 0 : index
    %16 = vector.load %arg9[%c1_23, %c0_24, %c0_25] : memref<18x18x8xf32, #tpu.memory_space<vmem>>, vector<16x16x8xf32>
    %17 = vector.shape_cast %16 : vector<16x16x8xf32> to vector<256x8xf32>
    %c0_26 = arith.constant 0 : index
    %c24 = arith.constant 24 : index
    %18 = vector.load %arg10[%c0_26, %c24] : memref<256x72xf32, #tpu.memory_space<vmem>>, vector<256x8xf32>
    tpu.vector_store %arg10[%c0_26, %c24], %17 {strides = array<i32>} : memref<256x72xf32, #tpu.memory_space<vmem>>, vector<256x8xf32>,
    %c1_27 = arith.constant 1 : index
    %c1_28 = arith.constant 1 : index
    %c0_29 = arith.constant 0 : index
    %19 = vector.load %arg9[%c1_27, %c1_28, %c0_29] : memref<18x18x8xf32, #tpu.memory_space<vmem>>, vector<16x16x8xf32>
    %20 = vector.shape_cast %19 : vector<16x16x8xf32> to vector<256x8xf32>
    %c0_30 = arith.constant 0 : index
    %c32 = arith.constant 32 : index
    %21 = vector.load %arg10[%c0_30, %c32] : memref<256x72xf32, #tpu.memory_space<vmem>>, vector<256x8xf32>
    tpu.vector_store %arg10[%c0_30, %c32], %20 {strides = array<i32>} : memref<256x72xf32, #tpu.memory_space<vmem>>, vector<256x8xf32>,
    %c1_31 = arith.constant 1 : index
    %c2_32 = arith.constant 2 : index
    %c0_33 = arith.constant 0 : index
    %22 = vector.load %arg9[%c1_31, %c2_32, %c0_33] : memref<18x18x8xf32, #tpu.memory_space<vmem>>, vector<16x16x8xf32>
    %23 = vector.shape_cast %22 : vector<16x16x8xf32> to vector<256x8xf32>
    %c0_34 = arith.constant 0 : index
    %c40 = arith.constant 40 : index
    %24 = vector.load %arg10[%c0_34, %c40] : memref<256x72xf32, #tpu.memory_space<vmem>>, vector<256x8xf32>
    tpu.vector_store %arg10[%c0_34, %c40], %23 {strides = array<i32>} : memref<256x72xf32, #tpu.memory_space<vmem>>, vector<256x8xf32>,
    %c2_35 = arith.constant 2 : index
    %c0_36 = arith.constant 0 : index
    %c0_37 = arith.constant 0 : index
    %25 = vector.load %arg9[%c2_35, %c0_36, %c0_37] : memref<18x18x8xf32, #tpu.memory_space<vmem>>, vector<16x16x8xf32>
    %26 = vector.shape_cast %25 : vector<16x16x8xf32> to vector<256x8xf32>
    %c0_38 = arith.constant 0 : index
    %c48 = arith.constant 48 : index
    %27 = vector.load %arg10[%c0_38, %c48] : memref<256x72xf32, #tpu.memory_space<vmem>>, vector<256x8xf32>
    tpu.vector_store %arg10[%c0_38, %c48], %26 {strides = array<i32>} : memref<256x72xf32, #tpu.memory_space<vmem>>, vector<256x8xf32>,
    %c2_39 = arith.constant 2 : index
    %c1_40 = arith.constant 1 : index
    %c0_41 = arith.constant 0 : index
    %28 = vector.load %arg9[%c2_39, %c1_40, %c0_41] : memref<18x18x8xf32, #tpu.memory_space<vmem>>, vector<16x16x8xf32>
    %29 = vector.shape_cast %28 : vector<16x16x8xf32> to vector<256x8xf32>
    %c0_42 = arith.constant 0 : index
    %c56 = arith.constant 56 : index
    %30 = vector.load %arg10[%c0_42, %c56] : memref<256x72xf32, #tpu.memory_space<vmem>>, vector<256x8xf32>
    tpu.vector_store %arg10[%c0_42, %c56], %29 {strides = array<i32>} : memref<256x72xf32, #tpu.memory_space<vmem>>, vector<256x8xf32>,
    %c2_43 = arith.constant 2 : index
    %c2_44 = arith.constant 2 : index
    %c0_45 = arith.constant 0 : index
    %31 = vector.load %arg9[%c2_43, %c2_44, %c0_45] : memref<18x18x8xf32, #tpu.memory_space<vmem>>, vector<16x16x8xf32>
    %32 = vector.shape_cast %31 : vector<16x16x8xf32> to vector<256x8xf32>
    %c0_46 = arith.constant 0 : index
    %c64 = arith.constant 64 : index
    %33 = vector.load %arg10[%c0_46, %c64] : memref<256x72xf32, #tpu.memory_space<vmem>>, vector<256x8xf32>
    tpu.vector_store %arg10[%c0_46, %c64], %32 {strides = array<i32>} : memref<256x72xf32, #tpu.memory_space<vmem>>, vector<256x8xf32>,
    %c0_47 = arith.constant 0 : index
    %c0_48 = arith.constant 0 : index
    %34 = vector.load %arg10[%c0_47, %c0_48] : memref<256x72xf32, #tpu.memory_space<vmem>>, vector<256x72xf32>
    %35 = arith.truncf %34 : vector<256x72xf32> to vector<256x72xbf16>
    %c0_49 = arith.constant 0 : index
    %c0_50 = arith.constant 0 : index
    %36 = vector.load %arg3[%c0_49, %c0_50] : memref<72x9xbf16, #tpu.memory_space<vmem>>, vector<72x9xbf16>
    %cst = arith.constant dense<0.000000e+00> : vector<256x9xf32>
    %37 = tpu.matmul %35, %36, %cst {dimension_numbers = #tpu.dot_dimension_numbers<[1], [0], [0], [1], [0, 0, 1, 1], [], []>} : vector<256x72xbf16>, vector<72x9xbf16>, vector<256x9xf32> -> vector<256x9xf32>
    %38 = vector.extract_strided_slice %37 {offsets = [0, 8], sizes = [256, 1], strides = [1, 1]} : vector<256x9xf32> to vector<256x1xf32>
    %39 = vector.extract_strided_slice %37 {offsets = [0, 0], sizes = [256, 8], strides = [1, 1]} : vector<256x9xf32> to vector<256x8xf32>
    %c0_51 = arith.constant 0 : index
    %c0_52 = arith.constant 0 : index
    %40 = vector.load %arg4[%c0_51, %c0_52] : memref<1x8xf32, #tpu.memory_space<vmem>>, vector<1x8xf32>
    %41 = vector.broadcast %40 : vector<1x8xf32> to vector<256x8xf32>
    %42 = arith.addf %39, %41 : vector<256x8xf32>
    %cst_53 = arith.constant 0.000000e+00 : f32
    %43 = vector.broadcast %cst_53 : f32 to vector<256x1xf32>
    %44 = arith.cmpf ogt, %38, %43 : vector<256x1xf32>
    %cst_54 = arith.constant 0.000000e+00 : f32
    %45 = vector.shape_cast %44 : vector<256x1xi1> to vector<256x1xi1>
    %46 = vector.broadcast %45 : vector<256x1xi1> to vector<256x8xi1>
    %47 = vector.broadcast %cst_54 : f32 to vector<256x8xf32>
    %48 = arith.select %46, %42, %47 : vector<256x8xi1>, vector<256x8xf32>
    %c0_55 = arith.constant 0 : index
    %c0_56 = arith.constant 0 : index
    %c0_57 = arith.constant 0 : index
    %49 = vector.load %arg5[%c0_55, %c0_56, %c0_57] : memref<1x256x8xf32, #tpu.memory_space<vmem>>, vector<1x256x8xf32>
    %50 = vector.shape_cast %49 : vector<1x256x8xf32> to vector<256x8xf32>
    %51 = vector.shape_cast %48 : vector<256x8xf32> to vector<1x256x8xf32>
    tpu.vector_store %arg5[%c0_55, %c0_56, %c0_57], %51 {strides = array<i32>} : memref<1x256x8xf32, #tpu.memory_space<vmem>>, vector<1x256x8xf32>,
    %cst_58 = arith.constant 1.000000e+00 : f32
    %52 = vector.broadcast %cst_58 : f32 to vector<256x1xf32>
    %53 = arith.select %44, %52, %38 : vector<256x1xi1>, vector<256x1xf32>
    %c0_59 = arith.constant 0 : index
    %c0_60 = arith.constant 0 : index
    %c0_61 = arith.constant 0 : index
    %54 = vector.load %arg6[%c0_59, %c0_60, %c0_61] : memref<1x256x1xf32, #tpu.memory_space<vmem>>, vector<1x256x1xf32>
    %55 = vector.shape_cast %54 : vector<1x256x1xf32> to vector<256x1xf32>
    %56 = vector.shape_cast %53 : vector<256x1xf32> to vector<1x256x1xf32>
    tpu.vector_store %arg6[%c0_59, %c0_60, %c0_61], %56 {strides = array<i32>} : memref<1x256x1xf32, #tpu.memory_space<vmem>>, vector<1x256x1xf32>,
    %cst_62 = arith.constant dense<0.000000e+00> : vector<8xf32>
    %57 = vector.multi_reduction <add>, %48, %cst_62 [0] : vector<256x8xf32> to vector<8xf32>
    %58 = vector.shape_cast %57 : vector<8xf32> to vector<1x8xf32>
    %c0_63 = arith.constant 0 : index
    %c0_64 = arith.constant 0 : index
    %c0_65 = arith.constant 0 : index
    %59 = vector.load %arg7[%c0_63, %c0_64, %c0_65] : memref<1x1x8xf32, #tpu.memory_space<vmem>>, vector<1x1x8xf32>
    %60 = vector.shape_cast %59 : vector<1x1x8xf32> to vector<1x8xf32>
    %61 = vector.shape_cast %58 : vector<1x8xf32> to vector<1x1x8xf32>
    tpu.vector_store %arg7[%c0_63, %c0_64, %c0_65], %61 {strides = array<i32>} : memref<1x1x8xf32, #tpu.memory_space<vmem>>, vector<1x1x8xf32>,
    %62 = arith.mulf %48, %48 : vector<256x8xf32>
    %cst_66 = arith.constant dense<0.000000e+00> : vector<8xf32>
    %63 = vector.multi_reduction <add>, %62, %cst_66 [0] : vector<256x8xf32> to vector<8xf32>
    %64 = vector.shape_cast %63 : vector<8xf32> to vector<1x8xf32>
    %c0_67 = arith.constant 0 : index
    %c0_68 = arith.constant 0 : index
    %c0_69 = arith.constant 0 : index
    %65 = vector.load %arg8[%c0_67, %c0_68, %c0_69] : memref<1x1x8xf32, #tpu.memory_space<vmem>>, vector<1x1x8xf32>
    %66 = vector.shape_cast %65 : vector<1x1x8xf32> to vector<1x8xf32>
    %67 = vector.shape_cast %64 : vector<1x8xf32> to vector<1x1x8xf32>
    tpu.vector_store %arg8[%c0_67, %c0_68, %c0_69], %67 {strides = array<i32>} : memref<1x1x8xf32, #tpu.memory_space<vmem>>, vector<1x1x8xf32>,
    return
  }
  func.func @transform_0(%arg0: i32) -> (i32, i32, i32, i32) {
    %c0_i32 = arith.constant 0 : i32
    %c0_i32_0 = arith.constant 0 : i32
    %c0_i32_1 = arith.constant 0 : i32
    %c0_i32_2 = arith.constant 0 : i32
    return %arg0, %c0_i32, %c0_i32_0, %c0_i32_1 : i32, i32, i32, i32
  }
  func.func @transform_1(%arg0: i32) -> (i32, i32, i32, i32) {
    %c0_i32 = arith.constant 0 : i32
    %c0_i32_0 = arith.constant 0 : i32
    %c0_i32_1 = arith.constant 0 : i32
    %c0_i32_2 = arith.constant 0 : i32
    return %arg0, %c0_i32, %c0_i32_0, %c0_i32_1 : i32, i32, i32, i32
  }
  func.func @transform_2(%arg0: i32) -> (i32, i32) {
    %c0_i32 = arith.constant 0 : i32
    %c0_i32_0 = arith.constant 0 : i32
    %c0_i32_1 = arith.constant 0 : i32
    return %c0_i32, %c0_i32_0 : i32, i32
  }
  func.func @transform_3(%arg0: i32) -> (i32, i32) {
    %c0_i32 = arith.constant 0 : i32
    %c0_i32_0 = arith.constant 0 : i32
    %c0_i32_1 = arith.constant 0 : i32
    return %c0_i32, %c0_i32_0 : i32, i32
  }
  func.func @transform_4(%arg0: i32) -> (i32, i32, i32) {
    %c0_i32 = arith.constant 0 : i32
    %c0_i32_0 = arith.constant 0 : i32
    %c0_i32_1 = arith.constant 0 : i32
    return %arg0, %c0_i32, %c0_i32_0 : i32, i32, i32
  }
  func.func @transform_5(%arg0: i32) -> (i32, i32, i32) {
    %c0_i32 = arith.constant 0 : i32
    %c0_i32_0 = arith.constant 0 : i32
    %c0_i32_1 = arith.constant 0 : i32
    return %arg0, %c0_i32, %c0_i32_0 : i32, i32, i32
  }
  func.func @transform_6(%arg0: i32) -> (i32, i32, i32) {
    %c0_i32 = arith.constant 0 : i32
    %c0_i32_0 = arith.constant 0 : i32
    %c0_i32_1 = arith.constant 0 : i32
    return %arg0, %c0_i32, %c0_i32_0 : i32, i32, i32
  }
  func.func @transform_7(%arg0: i32) -> (i32, i32, i32) {
    %c0_i32 = arith.constant 0 : i32
    %c0_i32_0 = arith.constant 0 : i32
    %c0_i32_1 = arith.constant 0 : i32
    return %arg0, %c0_i32, %c0_i32_0 : i32, i32, i32
  }
}

</mosaic_0001>

<llo_original>
// kernel: conv_module_forward.3
$region0: #{conv_module_forward.3}
  #allocation0 [shape = 'u32[]', space=smem, size = 0x4, offset = 0x4, fixed_abs, tag = 'smem constant byte address 0x4 - core index']
  #allocation1 [shape = 'u32[72,128]{1,0:T(1,128)}', space=vmem, size = 0x9000, scoped, tag = 'internal scratch']
  %s0 = inlined_call_operand.vmem [shape: f32[512,8], index: 0, kind: input, shape index: {}]
  %s1 = inlined_call_operand.vmem [shape: f32[1,8], index: 1, kind: input, shape index: {}]
  %s2 = inlined_call_operand.vmem [shape: f32[1,8], index: 2, kind: input, shape index: {}]
  %s3 = inlined_call_operand.vmem [shape: f32[512,8], index: 3, kind: output, shape index: {}]
  %s4 = sld [smem:[#allocation0]]
  $region45: #{conv_module_forward.3} parent=0
    _
  %s6 = ssub.s32 1, %s4
  %s7 = scalar_select 0, %s6, %s4
  loop: start=0, step=1, limit=4
  $region2: #{conv_module_forward.3} parent=0 // loop_pre_header
    _
  $region3: #{conv_module_forward.3} parent=0 // loop_header
    %s9 = sphi 0, %s13
    %p10 = scmp.ge.s32.totalorder %s9, 4
    %s19 = sphi 0, %s21
    %s22 = sphi 0, %s19
    %s23 = sphi 0, %s22
    %s39 = sphi 0, %s23
    %s43 = sphi 0, %s43
    %s45 = sphi 0, %s43
    %s46 = sphi 0, %s45
    %s60 = sphi 0, %s46
    %s64 = sphi 0, %s64
    %s66 = sphi 0, %s64
    %s67 = sphi 0, %s66
    %s81 = sphi 0, %s67
    %s87 = sphi 0, %s89
    %s90 = sphi 0, %s87
    %s91 = sphi 0, %s90
    %s107 = sphi 0, %s91
  $region4: #{conv_module_forward.3} parent=0 // loop_header_branch
    %12 = sbr.rel (%p10) target = $region8
  $region5: #{conv_module_forward.3} parent=0 // loop_body
    %s14 = ssub.s32 %s9, 1
    %s15 = ssub.s32 %s9, 2
    %s16 = sadd.s32 %s9, 1
    %s17 = ssub.s32 %s9, %s16
    %p18 = scmp.eq.s32.totalorder %s17, 0
    %s20 = sadd.s32 %s19, 1
    %s21 = scalar_select %p18, %s19, %s20
    %p24 = pneg %p18
    %p25 = scmp.eq.s32.totalorder %s9, 1
    %p26 = por %p24, %p25
    %p27 = scmp.ne.s32.totalorder %s19, %s22
    %p28 = scmp.eq.s32.totalorder %s9, 0
    %p29 = por %p27, %p28
    %p30 = scmp.ne.s32.totalorder %s19, %s22
    %p31 = scmp.eq.s32.totalorder %s14, 1
    %p32 = por %p30, %p31
    %p33 = scmp.ne.s32.totalorder %s22, %s23
    %p34 = scmp.eq.s32.totalorder %s14, 0
    %p35 = por %p33, %p34
    %p36 = scmp.ne.s32.totalorder %s22, %s23
    %p37 = scmp.eq.s32.totalorder %s15, 1
    %p38 = por %p36, %p37
    %p40 = scmp.ne.s32.totalorder %s23, %s39
    %p41 = scmp.eq.s32.totalorder %s15, 0
    %p42 = por %p40, %p41
    %s44 = sadd.s32 %s43, 1
    %p47 = scmp.eq.s32.totalorder %s9, 1
    %p48 = scmp.ne.s32.totalorder %s43, %s45
    %p49 = scmp.eq.s32.totalorder %s9, 0
    %p50 = por %p48, %p49
    %p51 = scmp.ne.s32.totalorder %s43, %s45
    %p52 = scmp.eq.s32.totalorder %s14, 1
    %p53 = por %p51, %p52
    %p54 = scmp.ne.s32.totalorder %s45, %s46
    %p55 = scmp.eq.s32.totalorder %s14, 0
    %p56 = por %p54, %p55
    %p57 = scmp.ne.s32.totalorder %s45, %s46
    %p58 = scmp.eq.s32.totalorder %s15, 1
    %p59 = por %p57, %p58
    %p61 = scmp.ne.s32.totalorder %s46, %s60
    %p62 = scmp.eq.s32.totalorder %s15, 0
    %p63 = por %p61, %p62
    %s65 = sadd.s32 %s64, 1
    %p68 = scmp.eq.s32.totalorder %s9, 1
    %p69 = scmp.ne.s32.totalorder %s64, %s66
    %p70 = scmp.eq.s32.totalorder %s9, 0
    %p71 = por %p69, %p70
    %p72 = scmp.ne.s32.totalorder %s64, %s66
    %p73 = scmp.eq.s32.totalorder %s14, 1
    %p74 = por %p72, %p73
    %p75 = scmp.ne.s32.totalorder %s66, %s67
    %p76 = scmp.eq.s32.totalorder %s14, 0
    %p77 = por %p75, %p76
    %p78 = scmp.ne.s32.totalorder %s66, %s67
    %p79 = scmp.eq.s32.totalorder %s15, 1
    %p80 = por %p78, %p79
    %p82 = scmp.ne.s32.totalorder %s67, %s81
    %p83 = scmp.eq.s32.totalorder %s15, 0
    %p84 = por %p82, %p83
    %s85 = ssub.s32 %s9, %s16
    %p86 = scmp.eq.s32.totalorder %s85, 0
    %s88 = sadd.s32 %s87, 1
    %s89 = scalar_select %p86, %s87, %s88
    %p92 = pneg %p86
    %p93 = scmp.eq.s32.totalorder %s9, 1
    %p94 = por %p92, %p93
    %p95 = scmp.ne.s32.totalorder %s87, %s90
    %p96 = scmp.eq.s32.totalorder %s9, 0
    %p97 = por %p95, %p96
    %p98 = scmp.ne.s32.totalorder %s87, %s90
    %p99 = scmp.eq.s32.totalorder %s14, 1
    %p100 = por %p98, %p99
    %p101 = scmp.ne.s32.totalorder %s90, %s91
    %p102 = scmp.eq.s32.totalorder %s14, 0
    %p103 = por %p101, %p102
    %p104 = scmp.ne.s32.totalorder %s90, %s91
    %p105 = scmp.eq.s32.totalorder %s15, 1
    %p106 = por %p104, %p105
    %p108 = scmp.ne.s32.totalorder %s91, %s107
    %p109 = scmp.eq.s32.totalorder %s15, 0
    %p110 = por %p108, %p109
    %p111 = scmp.le.s32.totalorder 1, %s9
    %p112 = scmp.lt.s32.totalorder %s9, 3
    %p113 = pnand %p111, %p112
    %p114 = pneg %p113
    // Predicated region
    $region9: #{conv_module_forward.3} parent=5 // pred_check
      _
    $region10: #{conv_module_forward.3} parent=5 // pred_check_branch
      %116 = sbr.rel (%p113) target = $region12
    $region11: #{conv_module_forward.3} parent=5 // pred_region
      %s117 = ssub.s32 %s9, 1
      // Predicated region
      $region13: #{conv_module_forward.3} parent=11 // pred_check
        %p118 = pneg %p56
      $region14: #{conv_module_forward.3} parent=11 // pred_check_branch
        %120 = sbr.rel (%p118) target = $region16
      $region15: #{conv_module_forward.3} parent=11 // pred_region
        _
      $region16: #{conv_module_forward.3} parent=11 // pred_fallthru
        _
      // Predicated region
      $region17: #{conv_module_forward.3} parent=11 // pred_check
        %p121 = pneg %p77
      $region18: #{conv_module_forward.3} parent=11 // pred_check_branch
        %123 = sbr.rel (%p121) target = $region20
      $region19: #{conv_module_forward.3} parent=11 // pred_region
        _
      $region20: #{conv_module_forward.3} parent=11 // pred_fallthru
        _
    $region12: #{conv_module_forward.3} parent=5 // pred_fallthru
      _
    %p124 = scmp.lt.s32.totalorder %s9, 2
    // Predicated region
    $region21: #{conv_module_forward.3} parent=5 // pred_check
      %p125 = pneg %p124
    $region22: #{conv_module_forward.3} parent=5 // pred_check_branch
      %127 = sbr.rel (%p125) target = $region24
    $region23: #{conv_module_forward.3} parent=5 // pred_region
      // Predicated region
      $region25: #{conv_module_forward.3} parent=23 // pred_check
        %p128 = pneg %p29
      $region26: #{conv_module_forward.3} parent=23 // pred_check_branch
        %130 = sbr.rel (%p128) target = $region28
      $region27: #{conv_module_forward.3} parent=23 // pred_region
        %s131 = smul.u32 32, %s9
        %p132 = scmp.lt.s32.totalorder %s131, 63
        %s133 = scalar_select %p132, %s131, 63
        %s134 = smul.addr %s133, 8
        %s135 = scalar_lea.vmem %s0, %s134
        %s136 = smul.u32 32, %s9
      $region28: #{conv_module_forward.3} parent=23 // pred_fallthru
        _
    $region24: #{conv_module_forward.3} parent=5 // pred_fallthru
      _
    %p137 = scmp.le.s32.totalorder 1, %s9
    %p138 = scmp.lt.s32.totalorder %s9, 3
    %p139 = pnand %p137, %p138
    %p140 = pneg %p139
    // Predicated region
    $region29: #{conv_module_forward.3} parent=5 // pred_check
      _
    $region30: #{conv_module_forward.3} parent=5 // pred_check_branch
      %142 = sbr.rel (%p139) target = $region32
    $region31: #{conv_module_forward.3} parent=5 // pred_region
      %s143 = ssub.s32 %s9, 1
      %s144 = smul.u32 32, %s14
      %p145 = scmp.lt.s32.totalorder %s144, 63
      %s146 = scalar_select %p145, %s144, 63
      %s147 = smul.addr %s146, 8
      %s148 = scalar_lea.vmem %s0, %s147
      %p149 = pneg %p35
      %p150 = pneg %p32
      %p151 = pneg %p56
      %p152 = pneg %p53
      %p153 = pneg %p77
      %p154 = pneg %p74
      %p155 = pneg %p103
      %p156 = pneg %p100
      %s157 = smul.u32 32, %s14
      %p158 = scmp.lt.s32.totalorder %s157, 63
      %s159 = scalar_select %p158, %s157, 63
      %s160 = smul.addr %s159, 8
      %s161 = scalar_lea.vmem %s3, %s160
      %s162 = smul.u32 32, %s14
      %p163 = scmp.lt.s32.totalorder %s162, 63
      %s164 = scalar_select %p163, %s162, 63
      %s165 = smul.addr %s164, 8
      %s166 = scalar_lea.vmem %s0, %s165
      %s167 = smul.u32 32, %s14
      %s168 = smul.u32 32, %s14
      %p169 = scmp.lt.s32.totalorder %s168, 63
      %s170 = scalar_select %p169, %s168, 63
      %s171 = smul.addr %s170, 8
      %s172 = scalar_lea.vmem %s3, %s171
      %s173 = smul.u32 32, %s14
      %v174 = vld [vmem:[%s166] sm:$0xff]
      %v175 = vld [vmem:[%s166 + $0x8] sm:$0xff]
      %v176 = vld [vmem:[%s166 + $0x10] sm:$0xff]
      %v177 = vld [vmem:[%s166 + $0x18] sm:$0xff]
      %v178 = vld [vmem:[%s166 + $0x20] sm:$0xff]
      %v179 = vld [vmem:[%s166 + $0x28] sm:$0xff]
      %v180 = vld [vmem:[%s166 + $0x30] sm:$0xff]
      %v181 = vld [vmem:[%s166 + $0x38] sm:$0xff]
      %v182 = vld [vmem:[%s166 + $0x40] sm:$0xff]
      %v183 = vld [vmem:[%s166 + $0x48] sm:$0xff]
      %v184 = vld [vmem:[%s166 + $0x50] sm:$0xff]
      %v185 = vld [vmem:[%s166 + $0x58] sm:$0xff]
      %v186 = vld [vmem:[%s166 + $0x60] sm:$0xff]
      %v187 = vld [vmem:[%s166 + $0x68] sm:$0xff]
      %v188 = vld [vmem:[%s166 + $0x70] sm:$0xff]
      %v189 = vld [vmem:[%s166 + $0x78] sm:$0xff]
      %v190 = vld [vmem:[%s166 + $0x80] sm:$0xff]
      %v191 = vld [vmem:[%s166 + $0x88] sm:$0xff]
      %v192 = vld [vmem:[%s166 + $0x90] sm:$0xff]
      %v193 = vld [vmem:[%s166 + $0x98] sm:$0xff]
      %v194 = vld [vmem:[%s166 + $0xa0] sm:$0xff]
      %v195 = vld [vmem:[%s166 + $0xa8] sm:$0xff]
      %v196 = vld [vmem:[%s166 + $0xb0] sm:$0xff]
      %v197 = vld [vmem:[%s166 + $0xb8] sm:$0xff]
      %v198 = vld [vmem:[%s166 + $0xc0] sm:$0xff]
      %v199 = vld [vmem:[%s166 + $0xc8] sm:$0xff]
      %v200 = vld [vmem:[%s166 + $0xd0] sm:$0xff]
      %v201 = vld [vmem:[%s166 + $0xd8] sm:$0xff]
      %v202 = vld [vmem:[%s166 + $0xe0] sm:$0xff]
      %v203 = vld [vmem:[%s166 + $0xe8] sm:$0xff]
      %v204 = vld [vmem:[%s166 + $0xf0] sm:$0xff]
      %v205 = vld [vmem:[%s166 + $0xf8] sm:$0xff]
      %v206 = vld [vmem:[%s1] sm:$0x1]
      %v208 = vperm.slane %v206, 0
      %v210 = vmul.f32 %v174, %v208
      %v211 = vmul.f32 %v175, %v208
      %v212 = vmul.f32 %v176, %v208
      %v213 = vmul.f32 %v177, %v208
      %v214 = vmul.f32 %v178, %v208
      %v215 = vmul.f32 %v179, %v208
      %v216 = vmul.f32 %v180, %v208
      %v217 = vmul.f32 %v181, %v208
      %v218 = vmul.f32 %v182, %v208
      %v219 = vmul.f32 %v183, %v208
      %v220 = vmul.f32 %v184, %v208
      %v221 = vmul.f32 %v185, %v208
      %v222 = vmul.f32 %v186, %v208
      %v223 = vmul.f32 %v187, %v208
      %v224 = vmul.f32 %v188, %v208
      %v225 = vmul.f32 %v189, %v208
      %v226 = vmul.f32 %v190, %v208
      %v227 = vmul.f32 %v191, %v208
      %v228 = vmul.f32 %v192, %v208
      %v229 = vmul.f32 %v193, %v208
      %v230 = vmul.f32 %v194, %v208
      %v231 = vmul.f32 %v195, %v208
      %v232 = vmul.f32 %v196, %v208
      %v233 = vmul.f32 %v197, %v208
      %v234 = vmul.f32 %v198, %v208
      %v235 = vmul.f32 %v199, %v208
      %v236 = vmul.f32 %v200, %v208
      %v237 = vmul.f32 %v201, %v208
      %v238 = vmul.f32 %v202, %v208
      %v239 = vmul.f32 %v203, %v208
      %v240 = vmul.f32 %v204, %v208
      %v241 = vmul.f32 %v205, %v208
      %v242 = vld [vmem:[%s2] sm:$0x1]
      %v244 = vperm.slane %v242, 0
      %v246 = vadd.f32 %v210, %v244
      %v247 = vadd.f32 %v211, %v244
      %v248 = vadd.f32 %v212, %v244
      %v249 = vadd.f32 %v213, %v244
      %v250 = vadd.f32 %v214, %v244
      %v251 = vadd.f32 %v215, %v244
      %v252 = vadd.f32 %v216, %v244
      %v253 = vadd.f32 %v217, %v244
      %v254 = vadd.f32 %v218, %v244
      %v255 = vadd.f32 %v219, %v244
      %v256 = vadd.f32 %v220, %v244
      %v257 = vadd.f32 %v221, %v244
      %v258 = vadd.f32 %v222, %v244
      %v259 = vadd.f32 %v223, %v244
      %v260 = vadd.f32 %v224, %v244
      %v261 = vadd.f32 %v225, %v244
      %v262 = vadd.f32 %v226, %v244
      %v263 = vadd.f32 %v227, %v244
      %v264 = vadd.f32 %v228, %v244
      %v265 = vadd.f32 %v229, %v244
      %v266 = vadd.f32 %v230, %v244
      %v267 = vadd.f32 %v231, %v244
      %v268 = vadd.f32 %v232, %v244
      %v269 = vadd.f32 %v233, %v244
      %v270 = vadd.f32 %v234, %v244
      %v271 = vadd.f32 %v235, %v244
      %v272 = vadd.f32 %v236, %v244
      %v273 = vadd.f32 %v237, %v244
      %v274 = vadd.f32 %v238, %v244
      %v275 = vadd.f32 %v239, %v244
      %v276 = vadd.f32 %v240, %v244
      %v277 = vadd.f32 %v241, %v244
      %v278 = vmax.f32 %v246, 0.0
      %v279 = vmax.f32 %v247, 0.0
      %v280 = vmax.f32 %v248, 0.0
      %v281 = vmax.f32 %v249, 0.0
      %v282 = vmax.f32 %v250, 0.0
      %v283 = vmax.f32 %v251, 0.0
      %v284 = vmax.f32 %v252, 0.0
      %v285 = vmax.f32 %v253, 0.0
      %v286 = vmax.f32 %v254, 0.0
      %v287 = vmax.f32 %v255, 0.0
      %v288 = vmax.f32 %v256, 0.0
      %v289 = vmax.f32 %v257, 0.0
      %v290 = vmax.f32 %v258, 0.0
      %v291 = vmax.f32 %v259, 0.0
      %v292 = vmax.f32 %v260, 0.0
      %v293 = vmax.f32 %v261, 0.0
      %v294 = vmax.f32 %v262, 0.0
      %v295 = vmax.f32 %v263, 0.0
      %v296 = vmax.f32 %v264, 0.0
      %v297 = vmax.f32 %v265, 0.0
      %v298 = vmax.f32 %v266, 0.0
      %v299 = vmax.f32 %v267, 0.0
      %v300 = vmax.f32 %v268, 0.0
      %v301 = vmax.f32 %v269, 0.0
      %v302 = vmax.f32 %v270, 0.0
      %v303 = vmax.f32 %v271, 0.0
      %v304 = vmax.f32 %v272, 0.0
      %v305 = vmax.f32 %v273, 0.0
      %v306 = vmax.f32 %v274, 0.0
      %v307 = vmax.f32 %v275, 0.0
      %v308 = vmax.f32 %v276, 0.0
      %v309 = vmax.f32 %v277, 0.0
      %vm310 = vcmask 64512
      %311 = vst.msk [vmem:[%s172] sm:$0xff] %vm310, %v278
      %312 = vst.msk [vmem:[%s172 + $0x8] sm:$0xff] %vm310, %v279
      %313 = vst.msk [vmem:[%s172 + $0x10] sm:$0xff] %vm310, %v280
      %314 = vst.msk [vmem:[%s172 + $0x18] sm:$0xff] %vm310, %v281
      %315 = vst.msk [vmem:[%s172 + $0x20] sm:$0xff] %vm310, %v282
      %316 = vst.msk [vmem:[%s172 + $0x28] sm:$0xff] %vm310, %v283
      %317 = vst.msk [vmem:[%s172 + $0x30] sm:$0xff] %vm310, %v284
      %318 = vst.msk [vmem:[%s172 + $0x38] sm:$0xff] %vm310, %v285
      %319 = vst.msk [vmem:[%s172 + $0x40] sm:$0xff] %vm310, %v286
      %320 = vst.msk [vmem:[%s172 + $0x48] sm:$0xff] %vm310, %v287
      %321 = vst.msk [vmem:[%s172 + $0x50] sm:$0xff] %vm310, %v288
      %322 = vst.msk [vmem:[%s172 + $0x58] sm:$0xff] %vm310, %v289
      %323 = vst.msk [vmem:[%s172 + $0x60] sm:$0xff] %vm310, %v290
      %324 = vst.msk [vmem:[%s172 + $0x68] sm:$0xff] %vm310, %v291
      %325 = vst.msk [vmem:[%s172 + $0x70] sm:$0xff] %vm310, %v292
      %326 = vst.msk [vmem:[%s172 + $0x78] sm:$0xff] %vm310, %v293
      %327 = vst.msk [vmem:[%s172 + $0x80] sm:$0xff] %vm310, %v294
      %328 = vst.msk [vmem:[%s172 + $0x88] sm:$0xff] %vm310, %v295
      %329 = vst.msk [vmem:[%s172 + $0x90] sm:$0xff] %vm310, %v296
      %330 = vst.msk [vmem:[%s172 + $0x98] sm:$0xff] %vm310, %v297
      %331 = vst.msk [vmem:[%s172 + $0xa0] sm:$0xff] %vm310, %v298
      %332 = vst.msk [vmem:[%s172 + $0xa8] sm:$0xff] %vm310, %v299
      %333 = vst.msk [vmem:[%s172 + $0xb0] sm:$0xff] %vm310, %v300
      %334 = vst.msk [vmem:[%s172 + $0xb8] sm:$0xff] %vm310, %v301
      %335 = vst.msk [vmem:[%s172 + $0xc0] sm:$0xff] %vm310, %v302
      %336 = vst.msk [vmem:[%s172 + $0xc8] sm:$0xff] %vm310, %v303
      %337 = vst.msk [vmem:[%s172 + $0xd0] sm:$0xff] %vm310, %v304
      %338 = vst.msk [vmem:[%s172 + $0xd8] sm:$0xff] %vm310, %v305
      %339 = vst.msk [vmem:[%s172 + $0xe0] sm:$0xff] %vm310, %v306
      %340 = vst.msk [vmem:[%s172 + $0xe8] sm:$0xff] %vm310, %v307
      %341 = vst.msk [vmem:[%s172 + $0xf0] sm:$0xff] %vm310, %v308
      %342 = vst.msk [vmem:[%s172 + $0xf8] sm:$0xff] %vm310, %v309
      %s343 = smul.u32 32, %s14
      %p344 = scmp.lt.s32.totalorder %s343, 63
      %s345 = scalar_select %p344, %s343, 63
      %s346 = smul.addr %s345, 8
      %s347 = scalar_lea.vmem %s3, %s346
      // Predicated region
      $region33: #{conv_module_forward.3} parent=31 // pred_check
        %p348 = pneg %p100
      $region34: #{conv_module_forward.3} parent=31 // pred_check_branch
        %350 = sbr.rel (%p348) target = $region36
      $region35: #{conv_module_forward.3} parent=31 // pred_region
        %s351 = smul.u32 32, %s14
      $region36: #{conv_module_forward.3} parent=31 // pred_fallthru
        _
    $region32: #{conv_module_forward.3} parent=5 // pred_fallthru
      _
    %p352 = scmp.le.s32.totalorder 2, %s9
    // Predicated region
    $region37: #{conv_module_forward.3} parent=5 // pred_check
      %p353 = pneg %p352
    $region38: #{conv_module_forward.3} parent=5 // pred_check_branch
      %355 = sbr.rel (%p353) target = $region40
    $region39: #{conv_module_forward.3} parent=5 // pred_region
      %s356 = ssub.s32 %s9, 2
      // Predicated region
      $region41: #{conv_module_forward.3} parent=39 // pred_check
        %p357 = pneg %p106
      $region42: #{conv_module_forward.3} parent=39 // pred_check_branch
        %359 = sbr.rel (%p357) target = $region44
      $region43: #{conv_module_forward.3} parent=39 // pred_region
        %s360 = smul.u32 32, %s15
        %p361 = scmp.lt.s32.totalorder %s360, 63
        %s362 = scalar_select %p361, %s360, 63
        %s363 = smul.addr %s362, 8
        %s364 = scalar_lea.vmem %s3, %s363
      $region44: #{conv_module_forward.3} parent=39 // pred_fallthru
        _
    $region40: #{conv_module_forward.3} parent=5 // pred_fallthru
      _
  $region6: #{conv_module_forward.3} parent=0 // loop_footer
    %s13 = sadd.s32 1, %s9
  $region7: #{conv_module_forward.3} parent=0 // loop_footer_branch
    %8 = sbr.rel target = $region3
  $region8: #{conv_module_forward.3} parent=0 // loop_exit
    _

// kernel: conv_module_forward.2
$region0: #{conv_module_forward.2}
  #allocation0 [shape = 'u32[]', space=smem, size = 0x4, offset = 0x4, fixed_abs, tag = 'smem constant byte address 0x4 - core index']
  #allocation1 [shape = 'u32[72,128]{1,0:T(1,128)}', space=vmem, size = 0x9000, scoped, tag = 'internal scratch']
  #allocation2 [shape = 'f32[18,18,8]{2,1,0:T(8,128)}', space=vmem, size = 0x36000, scoped, tag = 'scratch operand']
  #allocation3 [shape = 'f32[256,72]{1,0:T(8,128)}', space=vmem, size = 0x20000, scoped, tag = 'scratch operand']
  %s0 = inlined_call_operand.vmem [shape: f32[2,18,18,4], index: 0, kind: input, shape index: {}]
  %s1 = inlined_call_operand.vmem [shape: f32[2,18,18,4], index: 1, kind: input, shape index: {}]
  %s2 = inlined_call_operand.vmem [shape: bf16[72,9], index: 2, kind: input, shape index: {}]
  %s3 = inlined_call_operand.vmem [shape: f32[1,8], index: 3, kind: input, shape index: {}]
  %s4 = inlined_call_operand.vmem [shape: f32[2,256,8], index: 4, kind: output, shape index: {0}]
  %s5 = inlined_call_operand.vmem [shape: f32[2,256,1], index: 5, kind: output, shape index: {1}]
  %s6 = inlined_call_operand.vmem [shape: f32[2,1,8], index: 6, kind: output, shape index: {2}]
  %s7 = inlined_call_operand.vmem [shape: f32[2,1,8], index: 7, kind: output, shape index: {3}]
  %8 = xla_tuple %s4, %s5, %s6, %s7
  %s9 = sld [smem:[#allocation0]]
  $region73: #{conv_module_forward.2} parent=0
    _
  %s11 = ssub.s32 1, %s9
  %s12 = scalar_select 0, %s11, %s9
  loop: start=0, step=1, limit=4
  $region2: #{conv_module_forward.2} parent=0 // loop_pre_header
    _
  $region3: #{conv_module_forward.2} parent=0 // loop_header
    %s14 = sphi 0, %s18
    %p15 = scmp.ge.s32.totalorder %s14, 4
    %s24 = sphi 0, %s26
    %s27 = sphi 0, %s24
    %s28 = sphi 0, %s27
    %s44 = sphi 0, %s28
    %s50 = sphi 0, %s52
    %s53 = sphi 0, %s50
    %s54 = sphi 0, %s53
    %s70 = sphi 0, %s54
    %s74 = sphi 0, %s74
    %s76 = sphi 0, %s74
    %s77 = sphi 0, %s76
    %s91 = sphi 0, %s77
    %s95 = sphi 0, %s95
    %s97 = sphi 0, %s95
    %s98 = sphi 0, %s97
    %s112 = sphi 0, %s98
    %s118 = sphi 0, %s120
    %s121 = sphi 0, %s118
    %s122 = sphi 0, %s121
    %s138 = sphi 0, %s122
    %s144 = sphi 0, %s146
    %s147 = sphi 0, %s144
    %s148 = sphi 0, %s147
    %s164 = sphi 0, %s148
    %s170 = sphi 0, %s172
    %s173 = sphi 0, %s170
    %s174 = sphi 0, %s173
    %s190 = sphi 0, %s174
    %s196 = sphi 0, %s198
    %s199 = sphi 0, %s196
    %s200 = sphi 0, %s199
    %s216 = sphi 0, %s200
  $region4: #{conv_module_forward.2} parent=0 // loop_header_branch
    %17 = sbr.rel (%p15) target = $region8
  $region5: #{conv_module_forward.2} parent=0 // loop_body
    %s19 = ssub.s32 %s14, 1
    %s20 = ssub.s32 %s14, 2
    %s21 = sadd.s32 %s14, 1
    %s22 = ssub.s32 %s14, %s21
    %p23 = scmp.eq.s32.totalorder %s22, 0
    %s25 = sadd.s32 %s24, 1
    %s26 = scalar_select %p23, %s24, %s25
    %p29 = pneg %p23
    %p30 = scmp.eq.s32.totalorder %s14, 1
    %p31 = por %p29, %p30
    %p32 = scmp.ne.s32.totalorder %s24, %s27
    %p33 = scmp.eq.s32.totalorder %s14, 0
    %p34 = por %p32, %p33
    %p35 = scmp.ne.s32.totalorder %s24, %s27
    %p36 = scmp.eq.s32.totalorder %s19, 1
    %p37 = por %p35, %p36
    %p38 = scmp.ne.s32.totalorder %s27, %s28
    %p39 = scmp.eq.s32.totalorder %s19, 0
    %p40 = por %p38, %p39
    %p41 = scmp.ne.s32.totalorder %s27, %s28
    %p42 = scmp.eq.s32.totalorder %s20, 1
    %p43 = por %p41, %p42
    %p45 = scmp.ne.s32.totalorder %s28, %s44
    %p46 = scmp.eq.s32.totalorder %s20, 0
    %p47 = por %p45, %p46
    %s48 = ssub.s32 %s14, %s21
    %p49 = scmp.eq.s32.totalorder %s48, 0
    %s51 = sadd.s32 %s50, 1
    %s52 = scalar_select %p49, %s50, %s51
    %p55 = pneg %p49
    %p56 = scmp.eq.s32.totalorder %s14, 1
    %p57 = por %p55, %p56
    %p58 = scmp.ne.s32.totalorder %s50, %s53
    %p59 = scmp.eq.s32.totalorder %s14, 0
    %p60 = por %p58, %p59
    %p61 = scmp.ne.s32.totalorder %s50, %s53
    %p62 = scmp.eq.s32.totalorder %s19, 1
    %p63 = por %p61, %p62
    %p64 = scmp.ne.s32.totalorder %s53, %s54
    %p65 = scmp.eq.s32.totalorder %s19, 0
    %p66 = por %p64, %p65
    %p67 = scmp.ne.s32.totalorder %s53, %s54
    %p68 = scmp.eq.s32.totalorder %s20, 1
    %p69 = por %p67, %p68
    %p71 = scmp.ne.s32.totalorder %s54, %s70
    %p72 = scmp.eq.s32.totalorder %s20, 0
    %p73 = por %p71, %p72
    %s75 = sadd.s32 %s74, 1
    %p78 = scmp.eq.s32.totalorder %s14, 1
    %p79 = scmp.ne.s32.totalorder %s74, %s76
    %p80 = scmp.eq.s32.totalorder %s14, 0
    %p81 = por %p79, %p80
    %p82 = scmp.ne.s32.totalorder %s74, %s76
    %p83 = scmp.eq.s32.totalorder %s19, 1
    %p84 = por %p82, %p83
    %p85 = scmp.ne.s32.totalorder %s76, %s77
    %p86 = scmp.eq.s32.totalorder %s19, 0
    %p87 = por %p85, %p86
    %p88 = scmp.ne.s32.totalorder %s76, %s77
    %p89 = scmp.eq.s32.totalorder %s20, 1
    %p90 = por %p88, %p89
    %p92 = scmp.ne.s32.totalorder %s77, %s91
    %p93 = scmp.eq.s32.totalorder %s20, 0
    %p94 = por %p92, %p93
    %s96 = sadd.s32 %s95, 1
    %p99 = scmp.eq.s32.totalorder %s14, 1
    %p100 = scmp.ne.s32.totalorder %s95, %s97
    %p101 = scmp.eq.s32.totalorder %s14, 0
    %p102 = por %p100, %p101
    %p103 = scmp.ne.s32.totalorder %s95, %s97
    %p104 = scmp.eq.s32.totalorder %s19, 1
    %p105 = por %p103, %p104
    %p106 = scmp.ne.s32.totalorder %s97, %s98
    %p107 = scmp.eq.s32.totalorder %s19, 0
    %p108 = por %p106, %p107
    %p109 = scmp.ne.s32.totalorder %s97, %s98
    %p110 = scmp.eq.s32.totalorder %s20, 1
    %p111 = por %p109, %p110
    %p113 = scmp.ne.s32.totalorder %s98, %s112
    %p114 = scmp.eq.s32.totalorder %s20, 0
    %p115 = por %p113, %p114
    %s116 = ssub.s32 %s14, %s21
    %p117 = scmp.eq.s32.totalorder %s116, 0
    %s119 = sadd.s32 %s118, 1
    %s120 = scalar_select %p117, %s118, %s119
    %p123 = pneg %p117
    %p124 = scmp.eq.s32.totalorder %s14, 1
    %p125 = por %p123, %p124
    %p126 = scmp.ne.s32.totalorder %s118, %s121
    %p127 = scmp.eq.s32.totalorder %s14, 0
    %p128 = por %p126, %p127
    %p129 = scmp.ne.s32.totalorder %s118, %s121
    %p130 = scmp.eq.s32.totalorder %s19, 1
    %p131 = por %p129, %p130
    %p132 = scmp.ne.s32.totalorder %s121, %s122
    %p133 = scmp.eq.s32.totalorder %s19, 0
    %p134 = por %p132, %p133
    %p135 = scmp.ne.s32.totalorder %s121, %s122
    %p136 = scmp.eq.s32.totalorder %s20, 1
    %p137 = por %p135, %p136
    %p139 = scmp.ne.s32.totalorder %s122, %s138
    %p140 = scmp.eq.s32.totalorder %s20, 0
    %p141 = por %p139, %p140
    %s142 = ssub.s32 %s14, %s21
    %p143 = scmp.eq.s32.totalorder %s142, 0
    %s145 = sadd.s32 %s144, 1
    %s146 = scalar_select %p143, %s144, %s145
    %p149 = pneg %p143
    %p150 = scmp.eq.s32.totalorder %s14, 1
    %p151 = por %p149, %p150
    %p152 = scmp.ne.s32.totalorder %s144, %s147
    %p153 = scmp.eq.s32.totalorder %s14, 0
    %p154 = por %p152, %p153
    %p155 = scmp.ne.s32.totalorder %s144, %s147
    %p156 = scmp.eq.s32.totalorder %s19, 1
    %p157 = por %p155, %p156
    %p158 = scmp.ne.s32.totalorder %s147, %s148
    %p159 = scmp.eq.s32.totalorder %s19, 0
    %p160 = por %p158, %p159
    %p161 = scmp.ne.s32.totalorder %s147, %s148
    %p162 = scmp.eq.s32.totalorder %s20, 1
    %p163 = por %p161, %p162
    %p165 = scmp.ne.s32.totalorder %s148, %s164
    %p166 = scmp.eq.s32.totalorder %s20, 0
    %p167 = por %p165, %p166
    %s168 = ssub.s32 %s14, %s21
    %p169 = scmp.eq.s32.totalorder %s168, 0
    %s171 = sadd.s32 %s170, 1
    %s172 = scalar_select %p169, %s170, %s171
    %p175 = pneg %p169
    %p176 = scmp.eq.s32.totalorder %s14, 1
    %p177 = por %p175, %p176
    %p178 = scmp.ne.s32.totalorder %s170, %s173
    %p179 = scmp.eq.s32.totalorder %s14, 0
    %p180 = por %p178, %p179
    %p181 = scmp.ne.s32.totalorder %s170, %s173
    %p182 = scmp.eq.s32.totalorder %s19, 1
    %p183 = por %p181, %p182
    %p184 = scmp.ne.s32.totalorder %s173, %s174
    %p185 = scmp.eq.s32.totalorder %s19, 0
    %p186 = por %p184, %p185
    %p187 = scmp.ne.s32.totalorder %s173, %s174
    %p188 = scmp.eq.s32.totalorder %s20, 1
    %p189 = por %p187, %p188
    %p191 = scmp.ne.s32.totalorder %s174, %s190
    %p192 = scmp.eq.s32.totalorder %s20, 0
    %p193 = por %p191, %p192
    %s194 = ssub.s32 %s14, %s21
    %p195 = scmp.eq.s32.totalorder %s194, 0
    %s197 = sadd.s32 %s196, 1
    %s198 = scalar_select %p195, %s196, %s197
    %p201 = pneg %p195
    %p202 = scmp.eq.s32.totalorder %s14, 1
    %p203 = por %p201, %p202
    %p204 = scmp.ne.s32.totalorder %s196, %s199
    %p205 = scmp.eq.s32.totalorder %s14, 0
    %p206 = por %p204, %p205
    %p207 = scmp.ne.s32.totalorder %s196, %s199
    %p208 = scmp.eq.s32.totalorder %s19, 1
    %p209 = por %p207, %p208
    %p210 = scmp.ne.s32.totalorder %s199, %s200
    %p211 = scmp.eq.s32.totalorder %s19, 0
    %p212 = por %p210, %p211
    %p213 = scmp.ne.s32.totalorder %s199, %s200
    %p214 = scmp.eq.s32.totalorder %s20, 1
    %p215 = por %p213, %p214
    %p217 = scmp.ne.s32.totalorder %s200, %s216
    %p218 = scmp.eq.s32.totalorder %s20, 0
    %p219 = por %p217, %p218
    %p220 = scmp.le.s32.totalorder 1, %s14
    %p221 = scmp.lt.s32.totalorder %s14, 3
    %p222 = pnand %p220, %p221
    %p223 = pneg %p222
    // Predicated region
    $region9: #{conv_module_forward.2} parent=5 // pred_check
      _
    $region10: #{conv_module_forward.2} parent=5 // pred_check_branch
      %225 = sbr.rel (%p222) target = $region12
    $region11: #{conv_module_forward.2} parent=5 // pred_region
      %s226 = ssub.s32 %s14, 1
      // Predicated region
      $region13: #{conv_module_forward.2} parent=11 // pred_check
        %p227 = pneg %p87
      $region14: #{conv_module_forward.2} parent=11 // pred_check_branch
        %229 = sbr.rel (%p227) target = $region16
      $region15: #{conv_module_forward.2} parent=11 // pred_region
        _
      $region16: #{conv_module_forward.2} parent=11 // pred_fallthru
        _
      // Predicated region
      $region17: #{conv_module_forward.2} parent=11 // pred_check
        %p230 = pneg %p108
      $region18: #{conv_module_forward.2} parent=11 // pred_check_branch
        %232 = sbr.rel (%p230) target = $region20
      $region19: #{conv_module_forward.2} parent=11 // pred_region
        _
      $region20: #{conv_module_forward.2} parent=11 // pred_fallthru
        _
    $region12: #{conv_module_forward.2} parent=5 // pred_fallthru
      _
    %p233 = scmp.lt.s32.totalorder %s14, 2
    // Predicated region
    $region21: #{conv_module_forward.2} parent=5 // pred_check
      %p234 = pneg %p233
    $region22: #{conv_module_forward.2} parent=5 // pred_check_branch
      %236 = sbr.rel (%p234) target = $region24
    $region23: #{conv_module_forward.2} parent=5 // pred_region
      // Predicated region
      $region25: #{conv_module_forward.2} parent=23 // pred_check
        %p237 = pneg %p34
      $region26: #{conv_module_forward.2} parent=23 // pred_check_branch
        %239 = sbr.rel (%p237) target = $region28
      $region27: #{conv_module_forward.2} parent=23 // pred_region
        %p240 = scmp.lt.s32.totalorder %s14, 1
        %s241 = scalar_select %p240, %s14, 1
        %s242 = smul.addr %s241, 54
        %s243 = smul.addr %s242, 8
        %s244 = scalar_lea.vmem %s0, %s243
      $region28: #{conv_module_forward.2} parent=23 // pred_fallthru
        _
      // Predicated region
      $region29: #{conv_module_forward.2} parent=23 // pred_check
        %p245 = pneg %p60
      $region30: #{conv_module_forward.2} parent=23 // pred_check_branch
        %247 = sbr.rel (%p245) target = $region32
      $region31: #{conv_module_forward.2} parent=23 // pred_region
        %p248 = scmp.lt.s32.totalorder %s14, 1
        %s249 = scalar_select %p248, %s14, 1
        %s250 = smul.addr %s249, 54
        %s251 = smul.addr %s250, 8
        %s252 = scalar_lea.vmem %s1, %s251
      $region32: #{conv_module_forward.2} parent=23 // pred_fallthru
        _
    $region24: #{conv_module_forward.2} parent=5 // pred_fallthru
      _
    %p253 = scmp.le.s32.totalorder 1, %s14
    %p254 = scmp.lt.s32.totalorder %s14, 3
    %p255 = pnand %p253, %p254
    %p256 = pneg %p255
    // Predicated region
    $region33: #{conv_module_forward.2} parent=5 // pred_check
      _
    $region34: #{conv_module_forward.2} parent=5 // pred_check_branch
      %258 = sbr.rel (%p255) target = $region36
    $region35: #{conv_module_forward.2} parent=5 // pred_region
      %s259 = ssub.s32 %s14, 1
      %p260 = scmp.lt.s32.totalorder %s19, 1
      %s261 = scalar_select %p260, %s19, 1
      %s262 = smul.addr %s261, 54
      %s263 = smul.addr %s262, 8
      %s264 = scalar_lea.vmem %s0, %s263
      %p265 = pneg %p40
      %p266 = pneg %p37
      %p267 = scmp.lt.s32.totalorder %s19, 1
      %s268 = scalar_select %p267, %s19, 1
      %s269 = smul.addr %s268, 54
      %s270 = smul.addr %s269, 8
      %s271 = scalar_lea.vmem %s1, %s270
      %p272 = pneg %p66
      %p273 = pneg %p63
      %p274 = pneg %p87
      %p275 = pneg %p84
      %p276 = pneg %p108
      %p277 = pneg %p105
      %p278 = pneg %p134
      %p279 = pneg %p131
      %p280 = scmp.lt.s32.totalorder %s19, 1
      %s281 = scalar_select %p280, %s19, 1
      %s282 = smul.addr %s281, 32
      %s283 = smul.addr %s282, 8
      %s284 = scalar_lea.vmem %s4, %s283
      %p285 = pneg %p160
      %p286 = pneg %p157
      %p287 = scmp.lt.s32.totalorder %s19, 1
      %s288 = scalar_select %p287, %s19, 1
      %s289 = smul.addr %s288, 32
      %s290 = smul.addr %s289, 8
      %s291 = scalar_lea.vmem %s5, %s290
      %p292 = pneg %p186
      %p293 = pneg %p183
      %p294 = scmp.lt.s32.totalorder %s19, 1
      %s295 = scalar_select %p294, %s19, 1
      %s296 = scalar_lea.vmem %s6, %s295
      %p297 = pneg %p212
      %p298 = pneg %p209
      %p299 = scmp.lt.s32.totalorder %s19, 1
      %s300 = scalar_select %p299, %s19, 1
      %s301 = scalar_lea.vmem %s7, %s300
      %p302 = scmp.lt.s32.totalorder %s19, 1
      %s303 = scalar_select %p302, %s19, 1
      %s304 = smul.addr %s303, 54
      %s305 = smul.addr %s304, 8
      %s306 = scalar_lea.vmem %s0, %s305
      %p307 = scmp.lt.s32.totalorder %s19, 1
      %s308 = scalar_select %p307, %s19, 1
      %s309 = smul.addr %s308, 54
      %s310 = smul.addr %s309, 8
      %s311 = scalar_lea.vmem %s1, %s310
      %p312 = scmp.lt.s32.totalorder %s19, 1
      %s313 = scalar_select %p312, %s19, 1
      %s314 = smul.addr %s313, 32
      %s315 = smul.addr %s314, 8
      %s316 = scalar_lea.vmem %s4, %s315
      %p317 = scmp.lt.s32.totalorder %s19, 1
      %s318 = scalar_select %p317, %s19, 1
      %s319 = smul.addr %s318, 32
      %s320 = smul.addr %s319, 8
      %s321 = scalar_lea.vmem %s5, %s320
      %p322 = scmp.lt.s32.totalorder %s19, 1
      %s323 = scalar_select %p322, %s19, 1
      %s324 = scalar_lea.vmem %s6, %s323
      %p325 = scmp.lt.s32.totalorder %s19, 1
      %s326 = scalar_select %p325, %s19, 1
      %s327 = scalar_lea.vmem %s7, %s326
      %v329 = vld [vmem:[%s306] sm:$0xff]
      %v330 = vld [vmem:[%s306 + $0x8] sm:$0xff]
      %v331 = vld [vmem:[%s306 + $0x10] sm:$0x3]
      %v332 = vld [vmem:[%s306 + $0x18] sm:$0xff]
      %v333 = vld [vmem:[%s306 + $0x20] sm:$0xff]
      %v334 = vld [vmem:[%s306 + $0x28] sm:$0x3]
      %v335 = vld [vmem:[%s306 + $0x30] sm:$0xff]
      %v336 = vld [vmem:[%s306 + $0x38] sm:$0xff]
      %v337 = vld [vmem:[%s306 + $0x40] sm:$0x3]
      %v338 = vld [vmem:[%s306 + $0x48] sm:$0xff]
      %v339 = vld [vmem:[%s306 + $0x50] sm:$0xff]
      %v340 = vld [vmem:[%s306 + $0x58] sm:$0x3]
      %v341 = vld [vmem:[%s306 + $0x60] sm:$0xff]
      %v342 = vld [vmem:[%s306 + $0x68] sm:$0xff]
      %v343 = vld [vmem:[%s306 + $0x70] sm:$0x3]
      %v344 = vld [vmem:[%s306 + $0x78] sm:$0xff]
      %v345 = vld [vmem:[%s306 + $0x80] sm:$0xff]
      %v346 = vld [vmem:[%s306 + $0x88] sm:$0x3]
      %v347 = vld [vmem:[%s306 + $0x90] sm:$0xff]
      %v348 = vld [vmem:[%s306 + $0x98] sm:$0xff]
      %v349 = vld [vmem:[%s306 + $0xa0] sm:$0x3]
      %v350 = vld [vmem:[%s306 + $0xa8] sm:$0xff]
      %v351 = vld [vmem:[%s306 + $0xb0] sm:$0xff]
      %v352 = vld [vmem:[%s306 + $0xb8] sm:$0x3]
      %v353 = vld [vmem:[%s306 + $0xc0] sm:$0xff]
      %v354 = vld [vmem:[%s306 + $0xc8] sm:$0xff]
      %v355 = vld [vmem:[%s306 + $0xd0] sm:$0x3]
      %v356 = vld [vmem:[%s306 + $0xd8] sm:$0xff]
      %v357 = vld [vmem:[%s306 + $0xe0] sm:$0xff]
      %v358 = vld [vmem:[%s306 + $0xe8] sm:$0x3]
      %v359 = vld [vmem:[%s306 + $0xf0] sm:$0xff]
      %v360 = vld [vmem:[%s306 + $0xf8] sm:$0xff]
      %v361 = vld [vmem:[%s306 + $0x100] sm:$0x3]
      %v362 = vld [vmem:[%s306 + $0x108] sm:$0xff]
      %v363 = vld [vmem:[%s306 + $0x110] sm:$0xff]
      %v364 = vld [vmem:[%s306 + $0x118] sm:$0x3]
      %v365 = vld [vmem:[%s306 + $0x120] sm:$0xff]
      %v366 = vld [vmem:[%s306 + $0x128] sm:$0xff]
      %v367 = vld [vmem:[%s306 + $0x130] sm:$0x3]
      %v368 = vld [vmem:[%s306 + $0x138] sm:$0xff]
      %v369 = vld [vmem:[%s306 + $0x140] sm:$0xff]
      %v370 = vld [vmem:[%s306 + $0x148] sm:$0x3]
      %v371 = vld [vmem:[%s306 + $0x150] sm:$0xff]
      %v372 = vld [vmem:[%s306 + $0x158] sm:$0xff]
      %v373 = vld [vmem:[%s306 + $0x160] sm:$0x3]
      %v374 = vld [vmem:[%s306 + $0x168] sm:$0xff]
      %v375 = vld [vmem:[%s306 + $0x170] sm:$0xff]
      %v376 = vld [vmem:[%s306 + $0x178] sm:$0x3]
      %v377 = vld [vmem:[%s306 + $0x180] sm:$0xff]
      %v378 = vld [vmem:[%s306 + $0x188] sm:$0xff]
      %v379 = vld [vmem:[%s306 + $0x190] sm:$0x3]
      %v380 = vld [vmem:[%s306 + $0x198] sm:$0xff]
      %v381 = vld [vmem:[%s306 + $0x1a0] sm:$0xff]
      %v382 = vld [vmem:[%s306 + $0x1a8] sm:$0x3]
      %v383 = vld [vmem:[%s311] sm:$0xff]
      %v384 = vld [vmem:[%s311 + $0x8] sm:$0xff]
      %v385 = vld [vmem:[%s311 + $0x10] sm:$0x3]
      %v386 = vld [vmem:[%s311 + $0x18] sm:$0xff]
      %v387 = vld [vmem:[%s311 + $0x20] sm:$0xff]
      %v388 = vld [vmem:[%s311 + $0x28] sm:$0x3]
      %v389 = vld [vmem:[%s311 + $0x30] sm:$0xff]
      %v390 = vld [vmem:[%s311 + $0x38] sm:$0xff]
      %v391 = vld [vmem:[%s311 + $0x40] sm:$0x3]
      %v392 = vld [vmem:[%s311 + $0x48] sm:$0xff]
      %v393 = vld [vmem:[%s311 + $0x50] sm:$0xff]
      %v394 = vld [vmem:[%s311 + $0x58] sm:$0x3]
      %v395 = vld [vmem:[%s311 + $0x60] sm:$0xff]
      %v396 = vld [vmem:[%s311 + $0x68] sm:$0xff]
      %v397 = vld [vmem:[%s311 + $0x70] sm:$0x3]
      %v398 = vld [vmem:[%s311 + $0x78] sm:$0xff]
      %v399 = vld [vmem:[%s311 + $0x80] sm:$0xff]
      %v400 = vld [vmem:[%s311 + $0x88] sm:$0x3]
      %v401 = vld [vmem:[%s311 + $0x90] sm:$0xff]
      %v402 = vld [vmem:[%s311 + $0x98] sm:$0xff]
      %v403 = vld [vmem:[%s311 + $0xa0] sm:$0x3]
      %v404 = vld [vmem:[%s311 + $0xa8] sm:$0xff]
      %v405 = vld [vmem:[%s311 + $0xb0] sm:$0xff]
      %v406 = vld [vmem:[%s311 + $0xb8] sm:$0x3]
      %v407 = vld [vmem:[%s311 + $0xc0] sm:$0xff]
      %v408 = vld [vmem:[%s311 + $0xc8] sm:$0xff]
      %v409 = vld [vmem:[%s311 + $0xd0] sm:$0x3]
      %v410 = vld [vmem:[%s311 + $0xd8] sm:$0xff]
      %v411 = vld [vmem:[%s311 + $0xe0] sm:$0xff]
      %v412 = vld [vmem:[%s311 + $0xe8] sm:$0x3]
      %v413 = vld [vmem:[%s311 + $0xf0] sm:$0xff]
      %v414 = vld [vmem:[%s311 + $0xf8] sm:$0xff]
      %v415 = vld [vmem:[%s311 + $0x100] sm:$0x3]
      %v416 = vld [vmem:[%s311 + $0x108] sm:$0xff]
      %v417 = vld [vmem:[%s311 + $0x110] sm:$0xff]
      %v418 = vld [vmem:[%s311 + $0x118] sm:$0x3]
      %v419 = vld [vmem:[%s311 + $0x120] sm:$0xff]
      %v420 = vld [vmem:[%s311 + $0x128] sm:$0xff]
      %v421 = vld [vmem:[%s311 + $0x130] sm:$0x3]
      %v422 = vld [vmem:[%s311 + $0x138] sm:$0xff]
      %v423 = vld [vmem:[%s311 + $0x140] sm:$0xff]
      %v424 = vld [vmem:[%s311 + $0x148] sm:$0x3]
      %v425 = vld [vmem:[%s311 + $0x150] sm:$0xff]
      %v426 = vld [vmem:[%s311 + $0x158] sm:$0xff]
      %v427 = vld [vmem:[%s311 + $0x160] sm:$0x3]
      %v428 = vld [vmem:[%s311 + $0x168] sm:$0xff]
      %v429 = vld [vmem:[%s311 + $0x170] sm:$0xff]
      %v430 = vld [vmem:[%s311 + $0x178] sm:$0x3]
      %v431 = vld [vmem:[%s311 + $0x180] sm:$0xff]
      %v432 = vld [vmem:[%s311 + $0x188] sm:$0xff]
      %v433 = vld [vmem:[%s311 + $0x190] sm:$0x3]
      %v434 = vld [vmem:[%s311 + $0x198] sm:$0xff]
      %v435 = vld [vmem:[%s311 + $0x1a0] sm:$0xff]
      %v436 = vld [vmem:[%s311 + $0x1a8] sm:$0x3]
      %v437 = vmul.f32 %v329, %v383
      %v438 = vmul.f32 %v330, %v384
      %v439 = vmul.f32 %v331, %v385
      %v440 = vmul.f32 %v332, %v386
      %v441 = vmul.f32 %v333, %v387
      %v442 = vmul.f32 %v334, %v388
      %v443 = vmul.f32 %v335, %v389
      %v444 = vmul.f32 %v336, %v390
      %v445 = vmul.f32 %v337, %v391
      %v446 = vmul.f32 %v338, %v392
      %v447 = vmul.f32 %v339, %v393
      %v448 = vmul.f32 %v340, %v394
      %v449 = vmul.f32 %v341, %v395
      %v450 = vmul.f32 %v342, %v396
      %v451 = vmul.f32 %v343, %v397
      %v452 = vmul.f32 %v344, %v398
      %v453 = vmul.f32 %v345, %v399
      %v454 = vmul.f32 %v346, %v400
      %v455 = vmul.f32 %v347, %v401
      %v456 = vmul.f32 %v348, %v402
      %v457 = vmul.f32 %v349, %v403
      %v458 = vmul.f32 %v350, %v404
      %v459 = vmul.f32 %v351, %v405
      %v460 = vmul.f32 %v352, %v406
      %v461 = vmul.f32 %v353, %v407
      %v462 = vmul.f32 %v354, %v408
      %v463 = vmul.f32 %v355, %v409
      %v464 = vmul.f32 %v356, %v410
      %v465 = vmul.f32 %v357, %v411
      %v466 = vmul.f32 %v358, %v412
      %v467 = vmul.f32 %v359, %v413
      %v468 = vmul.f32 %v360, %v414
      %v469 = vmul.f32 %v361, %v415
      %v470 = vmul.f32 %v362, %v416
      %v471 = vmul.f32 %v363, %v417
      %v472 = vmul.f32 %v364, %v418
      %v473 = vmul.f32 %v365, %v419
      %v474 = vmul.f32 %v366, %v420
      %v475 = vmul.f32 %v367, %v421
      %v476 = vmul.f32 %v368, %v422
      %v477 = vmul.f32 %v369, %v423
      %v478 = vmul.f32 %v370, %v424
      %v479 = vmul.f32 %v371, %v425
      %v480 = vmul.f32 %v372, %v426
      %v481 = vmul.f32 %v373, %v427
      %v482 = vmul.f32 %v374, %v428
      %v483 = vmul.f32 %v375, %v429
      %v484 = vmul.f32 %v376, %v430
      %v485 = vmul.f32 %v377, %v431
      %v486 = vmul.f32 %v378, %v432
      %v487 = vmul.f32 %v379, %v433
      %v488 = vmul.f32 %v380, %v434
      %v489 = vmul.f32 %v381, %v435
      %v490 = vmul.f32 %v382, %v436
      %vm491 = vcmask 31744
      %492 = vst.msk [vmem:[#allocation2] sm:$0xff] %vm491, %v437
      %493 = vst.msk [vmem:[#allocation2 + $0x8] sm:$0xff] %vm491, %v438
      %vm494 = vcmask 25600
      %495 = vst.msk [vmem:[#allocation2 + $0x10] sm:$0x3] %vm494, %v439
      %496 = vst.msk [vmem:[#allocation2 + $0x18] sm:$0xff] %vm491, %v440
      %497 = vst.msk [vmem:[#allocation2 + $0x20] sm:$0xff] %vm491, %v441
      %498 = vst.msk [vmem:[#allocation2 + $0x28] sm:$0x3] %vm494, %v442
      %499 = vst.msk [vmem:[#allocation2 + $0x30] sm:$0xff] %vm491, %v443
      %500 = vst.msk [vmem:[#allocation2 + $0x38] sm:$0xff] %vm491, %v444
      %501 = vst.msk [vmem:[#allocation2 + $0x40] sm:$0x3] %vm494, %v445
      %502 = vst.msk [vmem:[#allocation2 + $0x48] sm:$0xff] %vm491, %v446
      %503 = vst.msk [vmem:[#allocation2 + $0x50] sm:$0xff] %vm491, %v447
      %504 = vst.msk [vmem:[#allocation2 + $0x58] sm:$0x3] %vm494, %v448
      %505 = vst.msk [vmem:[#allocation2 + $0x60] sm:$0xff] %vm491, %v449
      %506 = vst.msk [vmem:[#allocation2 + $0x68] sm:$0xff] %vm491, %v450
      %507 = vst.msk [vmem:[#allocation2 + $0x70] sm:$0x3] %vm494, %v451
      %508 = vst.msk [vmem:[#allocation2 + $0x78] sm:$0xff] %vm491, %v452
      %509 = vst.msk [vmem:[#allocation2 + $0x80] sm:$0xff] %vm491, %v453
      %510 = vst.msk [vmem:[#allocation2 + $0x88] sm:$0x3] %vm494, %v454
      %511 = vst.msk [vmem:[#allocation2 + $0x90] sm:$0xff] %vm491, %v455
      %512 = vst.msk [vmem:[#allocation2 + $0x98] sm:$0xff] %vm491, %v456
      %513 = vst.msk [vmem:[#allocation2 + $0xa0] sm:$0x3] %vm494, %v457
      %514 = vst.msk [vmem:[#allocation2 + $0xa8] sm:$0xff] %vm491, %v458
      %515 = vst.msk [vmem:[#allocation2 + $0xb0] sm:$0xff] %vm491, %v459
      %516 = vst.msk [vmem:[#allocation2 + $0xb8] sm:$0x3] %vm494, %v460
      %517 = vst.msk [vmem:[#allocation2 + $0xc0] sm:$0xff] %vm491, %v461
      %518 = vst.msk [vmem:[#allocation2 + $0xc8] sm:$0xff] %vm491, %v462
      %519 = vst.msk [vmem:[#allocation2 + $0xd0] sm:$0x3] %vm494, %v463
      %520 = vst.msk [vmem:[#allocation2 + $0xd8] sm:$0xff] %vm491, %v464
      %521 = vst.msk [vmem:[#allocation2 + $0xe0] sm:$0xff] %vm491, %v465
      %522 = vst.msk [vmem:[#allocation2 + $0xe8] sm:$0x3] %vm494, %v466
      %523 = vst.msk [vmem:[#allocation2 + $0xf0] sm:$0xff] %vm491, %v467
      %524 = vst.msk [vmem:[#allocation2 + $0xf8] sm:$0xff] %vm491, %v468
      %525 = vst.msk [vmem:[#allocation2 + $0x100] sm:$0x3] %vm494, %v469
      %526 = vst.msk [vmem:[#allocation2 + $0x108] sm:$0xff] %vm491, %v470
      %527 = vst.msk [vmem:[#allocation2 + $0x110] sm:$0xff] %vm491, %v471
      %528 = vst.msk [vmem:[#allocation2 + $0x118] sm:$0x3] %vm494, %v472
      %529 = vst.msk [vmem:[#allocation2 + $0x120] sm:$0xff] %vm491, %v473
      %530 = vst.msk [vmem:[#allocation2 + $0x128] sm:$0xff] %vm491, %v474
      %531 = vst.msk [vmem:[#allocation2 + $0x130] sm:$0x3] %vm494, %v475
      %532 = vst.msk [vmem:[#allocation2 + $0x138] sm:$0xff] %vm491, %v476
      %533 = vst.msk [vmem:[#allocation2 + $0x140] sm:$0xff] %vm491, %v477
      %534 = vst.msk [vmem:[#allocation2 + $0x148] sm:$0x3] %vm494, %v478
      %535 = vst.msk [vmem:[#allocation2 + $0x150] sm:$0xff] %vm491, %v479
      %536 = vst.msk [vmem:[#allocation2 + $0x158] sm:$0xff] %vm491, %v480
      %537 = vst.msk [vmem:[#allocation2 + $0x160] sm:$0x3] %vm494, %v481
      %538 = vst.msk [vmem:[#allocation2 + $0x168] sm:$0xff] %vm491, %v482
      %539 = vst.msk [vmem:[#allocation2 + $0x170] sm:$0xff] %vm491, %v483
      %540 = vst.msk [vmem:[#allocation2 + $0x178] sm:$0x3] %vm494, %v484
      %541 = vst.msk [vmem:[#allocation2 + $0x180] sm:$0xff] %vm491, %v485
      %542 = vst.msk [vmem:[#allocation2 + $0x188] sm:$0xff] %vm491, %v486
      %543 = vst.msk [vmem:[#allocation2 + $0x190] sm:$0x3] %vm494, %v487
      %544 = vst.msk [vmem:[#allocation2 + $0x198] sm:$0xff] %vm491, %v488
      %545 = vst.msk [vmem:[#allocation2 + $0x1a0] sm:$0xff] %vm491, %v489
      %546 = vst.msk [vmem:[#allocation2 + $0x1a8] sm:$0x3] %vm494, %v490
      %601 = vrot.lane.b32.xlu0 %v383, 4
      %v602 = vpop.permute.xlu0 %601
      %603 = vrot.lane.b32.xlu0 %v384, 4
      %v604 = vpop.permute.xlu0 %603
      %605 = vrot.lane.b32.xlu0 %v385, 4
      %v606 = vpop.permute.xlu0 %605
      %607 = vrot.lane.b32.xlu0 %v386, 4
      %v608 = vpop.permute.xlu0 %607
      %609 = vrot.lane.b32.xlu0 %v387, 4
      %v610 = vpop.permute.xlu0 %609
      %611 = vrot.lane.b32.xlu0 %v388, 4
      %v612 = vpop.permute.xlu0 %611
      %613 = vrot.lane.b32.xlu0 %v389, 4
      %v614 = vpop.permute.xlu0 %613
      %615 = vrot.lane.b32.xlu0 %v390, 4
      %v616 = vpop.permute.xlu0 %615
      %617 = vrot.lane.b32.xlu0 %v391, 4
      %v618 = vpop.permute.xlu0 %617
      %619 = vrot.lane.b32.xlu0 %v392, 4
      %v620 = vpop.permute.xlu0 %619
      %621 = vrot.lane.b32.xlu0 %v393, 4
      %v622 = vpop.permute.xlu0 %621
      %623 = vrot.lane.b32.xlu0 %v394, 4
      %v624 = vpop.permute.xlu0 %623
      %625 = vrot.lane.b32.xlu0 %v395, 4
      %v626 = vpop.permute.xlu0 %625
      %627 = vrot.lane.b32.xlu0 %v396, 4
      %v628 = vpop.permute.xlu0 %627
      %629 = vrot.lane.b32.xlu0 %v397, 4
      %v630 = vpop.permute.xlu0 %629
      %631 = vrot.lane.b32.xlu0 %v398, 4
      %v632 = vpop.permute.xlu0 %631
      %633 = vrot.lane.b32.xlu0 %v399, 4
      %v634 = vpop.permute.xlu0 %633
      %635 = vrot.lane.b32.xlu0 %v400, 4
      %v636 = vpop.permute.xlu0 %635
      %637 = vrot.lane.b32.xlu0 %v401, 4
      %v638 = vpop.permute.xlu0 %637
      %639 = vrot.lane.b32.xlu0 %v402, 4
      %v640 = vpop.permute.xlu0 %639
      %641 = vrot.lane.b32.xlu0 %v403, 4
      %v642 = vpop.permute.xlu0 %641
      %643 = vrot.lane.b32.xlu0 %v404, 4
      %v644 = vpop.permute.xlu0 %643
      %645 = vrot.lane.b32.xlu0 %v405, 4
      %v646 = vpop.permute.xlu0 %645
      %647 = vrot.lane.b32.xlu0 %v406, 4
      %v648 = vpop.permute.xlu0 %647
      %649 = vrot.lane.b32.xlu0 %v407, 4
      %v650 = vpop.permute.xlu0 %649
      %651 = vrot.lane.b32.xlu0 %v408, 4
      %v652 = vpop.permute.xlu0 %651
      %653 = vrot.lane.b32.xlu0 %v409, 4
      %v654 = vpop.permute.xlu0 %653
      %655 = vrot.lane.b32.xlu0 %v410, 4
      %v656 = vpop.permute.xlu0 %655
      %657 = vrot.lane.b32.xlu0 %v411, 4
      %v658 = vpop.permute.xlu0 %657
      %659 = vrot.lane.b32.xlu0 %v412, 4
      %v660 = vpop.permute.xlu0 %659
      %661 = vrot.lane.b32.xlu0 %v413, 4
      %v662 = vpop.permute.xlu0 %661
      %663 = vrot.lane.b32.xlu0 %v414, 4
      %v664 = vpop.permute.xlu0 %663
      %665 = vrot.lane.b32.xlu0 %v415, 4
      %v666 = vpop.permute.xlu0 %665
      %667 = vrot.lane.b32.xlu0 %v416, 4
      %v668 = vpop.permute.xlu0 %667
      %669 = vrot.lane.b32.xlu0 %v417, 4
      %v670 = vpop.permute.xlu0 %669
      %671 = vrot.lane.b32.xlu0 %v418, 4
      %v672 = vpop.permute.xlu0 %671
      %673 = vrot.lane.b32.xlu0 %v419, 4
      %v674 = vpop.permute.xlu0 %673
      %675 = vrot.lane.b32.xlu0 %v420, 4
      %v676 = vpop.permute.xlu0 %675
      %677 = vrot.lane.b32.xlu0 %v421, 4
      %v678 = vpop.permute.xlu0 %677
      %679 = vrot.lane.b32.xlu0 %v422, 4
      %v680 = vpop.permute.xlu0 %679
      %681 = vrot.lane.b32.xlu0 %v423, 4
      %v682 = vpop.permute.xlu0 %681
      %683 = vrot.lane.b32.xlu0 %v424, 4
      %v684 = vpop.permute.xlu0 %683
      %685 = vrot.lane.b32.xlu0 %v425, 4
      %v686 = vpop.permute.xlu0 %685
      %687 = vrot.lane.b32.xlu0 %v426, 4
      %v688 = vpop.permute.xlu0 %687
      %689 = vrot.lane.b32.xlu0 %v427, 4
      %v690 = vpop.permute.xlu0 %689
      %691 = vrot.lane.b32.xlu0 %v428, 4
      %v692 = vpop.permute.xlu0 %691
      %693 = vrot.lane.b32.xlu0 %v429, 4
      %v694 = vpop.permute.xlu0 %693
      %695 = vrot.lane.b32.xlu0 %v430, 4
      %v696 = vpop.permute.xlu0 %695
      %697 = vrot.lane.b32.xlu0 %v431, 4
      %v698 = vpop.permute.xlu0 %697
      %699 = vrot.lane.b32.xlu0 %v432, 4
      %v700 = vpop.permute.xlu0 %699
      %701 = vrot.lane.b32.xlu0 %v433, 4
      %v702 = vpop.permute.xlu0 %701
      %703 = vrot.lane.b32.xlu0 %v434, 4
      %v704 = vpop.permute.xlu0 %703
      %705 = vrot.lane.b32.xlu0 %v435, 4
      %v706 = vpop.permute.xlu0 %705
      %707 = vrot.lane.b32.xlu0 %v436, 4
      %v708 = vpop.permute.xlu0 %707
      %vm763 = vcmask 64544
      %764 = vst.msk [vmem:[#allocation2] sm:$0xff] %vm763, %v602
      %765 = vst.msk [vmem:[#allocation2 + $0x8] sm:$0xff] %vm763, %v604
      %vm766 = vcmask 58400
      %767 = vst.msk [vmem:[#allocation2 + $0x10] sm:$0x3] %vm766, %v606
      %768 = vst.msk [vmem:[#allocation2 + $0x18] sm:$0xff] %vm763, %v608
      %769 = vst.msk [vmem:[#allocation2 + $0x20] sm:$0xff] %vm763, %v610
      %770 = vst.msk [vmem:[#allocation2 + $0x28] sm:$0x3] %vm766, %v612
      %771 = vst.msk [vmem:[#allocation2 + $0x30] sm:$0xff] %vm763, %v614
      %772 = vst.msk [vmem:[#allocation2 + $0x38] sm:$0xff] %vm763, %v616
      %773 = vst.msk [vmem:[#allocation2 + $0x40] sm:$0x3] %vm766, %v618
      %774 = vst.msk [vmem:[#allocation2 + $0x48] sm:$0xff] %vm763, %v620
      %775 = vst.msk [vmem:[#allocation2 + $0x50] sm:$0xff] %vm763, %v622
      %776 = vst.msk [vmem:[#allocation2 + $0x58] sm:$0x3] %vm766, %v624
      %777 = vst.msk [vmem:[#allocation2 + $0x60] sm:$0xff] %vm763, %v626
      %778 = vst.msk [vmem:[#allocation2 + $0x68] sm:$0xff] %vm763, %v628
      %779 = vst.msk [vmem:[#allocation2 + $0x70] sm:$0x3] %vm766, %v630
      %780 = vst.msk [vmem:[#allocation2 + $0x78] sm:$0xff] %vm763, %v632
      %781 = vst.msk [vmem:[#allocation2 + $0x80] sm:$0xff] %vm763, %v634
      %782 = vst.msk [vmem:[#allocation2 + $0x88] sm:$0x3] %vm766, %v636
      %783 = vst.msk [vmem:[#allocation2 + $0x90] sm:$0xff] %vm763, %v638
      %784 = vst.msk [vmem:[#allocation2 + $0x98] sm:$0xff] %vm763, %v640
      %785 = vst.msk [vmem:[#allocation2 + $0xa0] sm:$0x3] %vm766, %v642
      %786 = vst.msk [vmem:[#allocation2 + $0xa8] sm:$0xff] %vm763, %v644
      %787 = vst.msk [vmem:[#allocation2 + $0xb0] sm:$0xff] %vm763, %v646
      %788 = vst.msk [vmem:[#allocation2 + $0xb8] sm:$0x3] %vm766, %v648
      %789 = vst.msk [vmem:[#allocation2 + $0xc0] sm:$0xff] %vm763, %v650
      %790 = vst.msk [vmem:[#allocation2 + $0xc8] sm:$0xff] %vm763, %v652
      %791 = vst.msk [vmem:[#allocation2 + $0xd0] sm:$0x3] %vm766, %v654
      %792 = vst.msk [vmem:[#allocation2 + $0xd8] sm:$0xff] %vm763, %v656
      %793 = vst.msk [vmem:[#allocation2 + $0xe0] sm:$0xff] %vm763, %v658
      %794 = vst.msk [vmem:[#allocation2 + $0xe8] sm:$0x3] %vm766, %v660
      %795 = vst.msk [vmem:[#allocation2 + $0xf0] sm:$0xff] %vm763, %v662
      %796 = vst.msk [vmem:[#allocation2 + $0xf8] sm:$0xff] %vm763, %v664
      %797 = vst.msk [vmem:[#allocation2 + $0x100] sm:$0x3] %vm766, %v666
      %798 = vst.msk [vmem:[#allocation2 + $0x108] sm:$0xff] %vm763, %v668
      %799 = vst.msk [vmem:[#allocation2 + $0x110] sm:$0xff] %vm763, %v670
      %800 = vst.msk [vmem:[#allocation2 + $0x118] sm:$0x3] %vm766, %v672
      %801 = vst.msk [vmem:[#allocation2 + $0x120] sm:$0xff] %vm763, %v674
      %802 = vst.msk [vmem:[#allocation2 + $0x128] sm:$0xff] %vm763, %v676
      %803 = vst.msk [vmem:[#allocation2 + $0x130] sm:$0x3] %vm766, %v678
      %804 = vst.msk [vmem:[#allocation2 + $0x138] sm:$0xff] %vm763, %v680
      %805 = vst.msk [vmem:[#allocation2 + $0x140] sm:$0xff] %vm763, %v682
      %806 = vst.msk [vmem:[#allocation2 + $0x148] sm:$0x3] %vm766, %v684
      %807 = vst.msk [vmem:[#allocation2 + $0x150] sm:$0xff] %vm763, %v686
      %808 = vst.msk [vmem:[#allocation2 + $0x158] sm:$0xff] %vm763, %v688
      %809 = vst.msk [vmem:[#allocation2 + $0x160] sm:$0x3] %vm766, %v690
      %810 = vst.msk [vmem:[#allocation2 + $0x168] sm:$0xff] %vm763, %v692
      %811 = vst.msk [vmem:[#allocation2 + $0x170] sm:$0xff] %vm763, %v694
      %812 = vst.msk [vmem:[#allocation2 + $0x178] sm:$0x3] %vm766, %v696
      %813 = vst.msk [vmem:[#allocation2 + $0x180] sm:$0xff] %vm763, %v698
      %814 = vst.msk [vmem:[#allocation2 + $0x188] sm:$0xff] %vm763, %v700
      %815 = vst.msk [vmem:[#allocation2 + $0x190] sm:$0x3] %vm766, %v702
      %816 = vst.msk [vmem:[#allocation2 + $0x198] sm:$0xff] %vm763, %v704
      %817 = vst.msk [vmem:[#allocation2 + $0x1a0] sm:$0xff] %vm763, %v706
      %818 = vst.msk [vmem:[#allocation2 + $0x1a8] sm:$0x3] %vm766, %v708
      %v819 = vld [vmem:[#allocation2] sm:$0xff]
      %v820 = vld [vmem:[#allocation2 + $0x8] sm:$0xff]
      %v821 = vld [vmem:[#allocation2 + $0x18] sm:$0xff]
      %v822 = vld [vmem:[#allocation2 + $0x20] sm:$0xff]
      %v823 = vld [vmem:[#allocation2 + $0x30] sm:$0xff]
      %v824 = vld [vmem:[#allocation2 + $0x38] sm:$0xff]
      %v825 = vld [vmem:[#allocation2 + $0x48] sm:$0xff]
      %v826 = vld [vmem:[#allocation2 + $0x50] sm:$0xff]
      %v827 = vld [vmem:[#allocation2 + $0x60] sm:$0xff]
      %v828 = vld [vmem:[#allocation2 + $0x68] sm:$0xff]
      %v829 = vld [vmem:[#allocation2 + $0x78] sm:$0xff]
      %v830 = vld [vmem:[#allocation2 + $0x80] sm:$0xff]
      %v831 = vld [vmem:[#allocation2 + $0x90] sm:$0xff]
      %v832 = vld [vmem:[#allocation2 + $0x98] sm:$0xff]
      %v833 = vld [vmem:[#allocation2 + $0xa8] sm:$0xff]
      %v834 = vld [vmem:[#allocation2 + $0xb0] sm:$0xff]
      %v835 = vld [vmem:[#allocation2 + $0xc0] sm:$0xff]
      %v836 = vld [vmem:[#allocation2 + $0xc8] sm:$0xff]
      %v837 = vld [vmem:[#allocation2 + $0xd8] sm:$0xff]
      %v838 = vld [vmem:[#allocation2 + $0xe0] sm:$0xff]
      %v839 = vld [vmem:[#allocation2 + $0xf0] sm:$0xff]
      %v840 = vld [vmem:[#allocation2 + $0xf8] sm:$0xff]
      %v841 = vld [vmem:[#allocation2 + $0x108] sm:$0xff]
      %v842 = vld [vmem:[#allocation2 + $0x110] sm:$0xff]
      %v843 = vld [vmem:[#allocation2 + $0x120] sm:$0xff]
      %v844 = vld [vmem:[#allocation2 + $0x128] sm:$0xff]
      %v845 = vld [vmem:[#allocation2 + $0x138] sm:$0xff]
      %v846 = vld [vmem:[#allocation2 + $0x140] sm:$0xff]
      %v847 = vld [vmem:[#allocation2 + $0x150] sm:$0xff]
      %v848 = vld [vmem:[#allocation2 + $0x158] sm:$0xff]
      %v849 = vld [vmem:[#allocation2 + $0x168] sm:$0xff]
      %v850 = vld [vmem:[#allocation2 + $0x170] sm:$0xff]
      %vm851 = vcmask 64512
      %852 = vst.msk [vmem:[#allocation3] sm:$0xff] %vm851, %v819
      %853 = vst.msk [vmem:[#allocation3 + $0x8] sm:$0xff] %vm851, %v820
      %854 = vst.msk [vmem:[#allocation3 + $0x10] sm:$0xff] %vm851, %v821
      %855 = vst.msk [vmem:[#allocation3 + $0x18] sm:$0xff] %vm851, %v822
      %856 = vst.msk [vmem:[#allocation3 + $0x20] sm:$0xff] %vm851, %v823
      %857 = vst.msk [vmem:[#allocation3 + $0x28] sm:$0xff] %vm851, %v824
      %858 = vst.msk [vmem:[#allocation3 + $0x30] sm:$0xff] %vm851, %v825
      %859 = vst.msk [vmem:[#allocation3 + $0x38] sm:$0xff] %vm851, %v826
      %860 = vst.msk [vmem:[#allocation3 + $0x40] sm:$0xff] %vm851, %v827
      %861 = vst.msk [vmem:[#allocation3 + $0x48] sm:$0xff] %vm851, %v828
      %862 = vst.msk [vmem:[#allocation3 + $0x50] sm:$0xff] %vm851, %v829
      %863 = vst.msk [vmem:[#allocation3 + $0x58] sm:$0xff] %vm851, %v830
      %864 = vst.msk [vmem:[#allocation3 + $0x60] sm:$0xff] %vm851, %v831
      %865 = vst.msk [vmem:[#allocation3 + $0x68] sm:$0xff] %vm851, %v832
      %866 = vst.msk [vmem:[#allocation3 + $0x70] sm:$0xff] %vm851, %v833
      %867 = vst.msk [vmem:[#allocation3 + $0x78] sm:$0xff] %vm851, %v834
      %868 = vst.msk [vmem:[#allocation3 + $0x80] sm:$0xff] %vm851, %v835
      %869 = vst.msk [vmem:[#allocation3 + $0x88] sm:$0xff] %vm851, %v836
      %870 = vst.msk [vmem:[#allocation3 + $0x90] sm:$0xff] %vm851, %v837
      %871 = vst.msk [vmem:[#allocation3 + $0x98] sm:$0xff] %vm851, %v838
      %872 = vst.msk [vmem:[#allocation3 + $0xa0] sm:$0xff] %vm851, %v839
      %873 = vst.msk [vmem:[#allocation3 + $0xa8] sm:$0xff] %vm851, %v840
      %874 = vst.msk [vmem:[#allocation3 + $0xb0] sm:$0xff] %vm851, %v841
      %875 = vst.msk [vmem:[#allocation3 + $0xb8] sm:$0xff] %vm851, %v842
      %876 = vst.msk [vmem:[#allocation3 + $0xc0] sm:$0xff] %vm851, %v843
      %877 = vst.msk [vmem:[#allocation3 + $0xc8] sm:$0xff] %vm851, %v844
      %878 = vst.msk [vmem:[#allocation3 + $0xd0] sm:$0xff] %vm851, %v845
      %879 = vst.msk [vmem:[#allocation3 + $0xd8] sm:$0xff] %vm851, %v846
      %880 = vst.msk [vmem:[#allocation3 + $0xe0] sm:$0xff] %vm851, %v847
      %881 = vst.msk [vmem:[#allocation3 + $0xe8] sm:$0xff] %vm851, %v848
      %882 = vst.msk [vmem:[#allocation3 + $0xf0] sm:$0xff] %vm851, %v849
      %883 = vst.msk [vmem:[#allocation3 + $0xf8] sm:$0xff] %vm851, %v850
      %v884 = vld [vmem:[#allocation2 + $0x1] sm:$0xff]
      %v885 = vld [vmem:[#allocation2 + $0x9] sm:$0xff]
      %v886 = vld [vmem:[#allocation2 + $0x19] sm:$0xff]
      %v887 = vld [vmem:[#allocation2 + $0x21] sm:$0xff]
      %v888 = vld [vmem:[#allocation2 + $0x31] sm:$0xff]
      %v889 = vld [vmem:[#allocation2 + $0x39] sm:$0xff]
      %v890 = vld [vmem:[#allocation2 + $0x49] sm:$0xff]
      %v891 = vld [vmem:[#allocation2 + $0x51] sm:$0xff]
      %v892 = vld [vmem:[#allocation2 + $0x61] sm:$0xff]
      %v893 = vld [vmem:[#allocation2 + $0x69] sm:$0xff]
      %v894 = vld [vmem:[#allocation2 + $0x79] sm:$0xff]
      %v895 = vld [vmem:[#allocation2 + $0x81] sm:$0xff]
      %v896 = vld [vmem:[#allocation2 + $0x91] sm:$0xff]
      %v897 = vld [vmem:[#allocation2 + $0x99] sm:$0xff]
      %v898 = vld [vmem:[#allocation2 + $0xa9] sm:$0xff]
      %v899 = vld [vmem:[#allocation2 + $0xb1] sm:$0xff]
      %v900 = vld [vmem:[#allocation2 + $0xc1] sm:$0xff]
      %v901 = vld [vmem:[#allocation2 + $0xc9] sm:$0xff]
      %v902 = vld [vmem:[#allocation2 + $0xd9] sm:$0xff]
      %v903 = vld [vmem:[#allocation2 + $0xe1] sm:$0xff]
      %v904 = vld [vmem:[#allocation2 + $0xf1] sm:$0xff]
      %v905 = vld [vmem:[#allocation2 + $0xf9] sm:$0xff]
      %v906 = vld [vmem:[#allocation2 + $0x109] sm:$0xff]
      %v907 = vld [vmem:[#allocation2 + $0x111] sm:$0xff]
      %v908 = vld [vmem:[#allocation2 + $0x121] sm:$0xff]
      %v909 = vld [vmem:[#allocation2 + $0x129] sm:$0xff]
      %v910 = vld [vmem:[#allocation2 + $0x139] sm:$0xff]
      %v911 = vld [vmem:[#allocation2 + $0x141] sm:$0xff]
      %v912 = vld [vmem:[#allocation2 + $0x151] sm:$0xff]
      %v913 = vld [vmem:[#allocation2 + $0x159] sm:$0xff]
      %v914 = vld [vmem:[#allocation2 + $0x169] sm:$0xff]
      %v915 = vld [vmem:[#allocation2 + $0x171] sm:$0xff]
      %948 = vrot.lane.b32.xlu0 %v884, 8
      %v949 = vpop.permute.xlu0 %948
      %950 = vrot.lane.b32.xlu0 %v885, 8
      %v951 = vpop.permute.xlu0 %950
      %952 = vrot.lane.b32.xlu0 %v886, 8
      %v953 = vpop.permute.xlu0 %952
      %954 = vrot.lane.b32.xlu0 %v887, 8
      %v955 = vpop.permute.xlu0 %954
      %956 = vrot.lane.b32.xlu0 %v888, 8
      %v957 = vpop.permute.xlu0 %956
      %958 = vrot.lane.b32.xlu0 %v889, 8
      %v959 = vpop.permute.xlu0 %958
      %960 = vrot.lane.b32.xlu0 %v890, 8
      %v961 = vpop.permute.xlu0 %960
      %962 = vrot.lane.b32.xlu0 %v891, 8
      %v963 = vpop.permute.xlu0 %962
      %964 = vrot.lane.b32.xlu0 %v892, 8
      %v965 = vpop.permute.xlu0 %964
      %966 = vrot.lane.b32.xlu0 %v893, 8
      %v967 = vpop.permute.xlu0 %966
      %968 = vrot.lane.b32.xlu0 %v894, 8
      %v969 = vpop.permute.xlu0 %968
      %970 = vrot.lane.b32.xlu0 %v895, 8
      %v971 = vpop.permute.xlu0 %970
      %972 = vrot.lane.b32.xlu0 %v896, 8
      %v973 = vpop.permute.xlu0 %972
      %974 = vrot.lane.b32.xlu0 %v897, 8
      %v975 = vpop.permute.xlu0 %974
      %976 = vrot.lane.b32.xlu0 %v898, 8
      %v977 = vpop.permute.xlu0 %976
      %978 = vrot.lane.b32.xlu0 %v899, 8
      %v979 = vpop.permute.xlu0 %978
      %980 = vrot.lane.b32.xlu0 %v900, 8
      %v981 = vpop.permute.xlu0 %980
      %982 = vrot.lane.b32.xlu0 %v901, 8
      %v983 = vpop.permute.xlu0 %982
      %984 = vrot.lane.b32.xlu0 %v902, 8
      %v985 = vpop.permute.xlu0 %984
      %986 = vrot.lane.b32.xlu0 %v903, 8
      %v987 = vpop.permute.xlu0 %986
      %988 = vrot.lane.b32.xlu0 %v904, 8
      %v989 = vpop.permute.xlu0 %988
      %990 = vrot.lane.b32.xlu0 %v905, 8
      %v991 = vpop.permute.xlu0 %990
      %992 = vrot.lane.b32.xlu0 %v906, 8
      %v993 = vpop.permute.xlu0 %992
      %994 = vrot.lane.b32.xlu0 %v907, 8
      %v995 = vpop.permute.xlu0 %994
      %996 = vrot.lane.b32.xlu0 %v908, 8
      %v997 = vpop.permute.xlu0 %996
      %998 = vrot.lane.b32.xlu0 %v909, 8
      %v999 = vpop.permute.xlu0 %998
      %1000 = vrot.lane.b32.xlu0 %v910, 8
      %v1001 = vpop.permute.xlu0 %1000
      %1002 = vrot.lane.b32.xlu0 %v911, 8
      %v1003 = vpop.permute.xlu0 %1002
      %1004 = vrot.lane.b32.xlu0 %v912, 8
      %v1005 = vpop.permute.xlu0 %1004
      %1006 = vrot.lane.b32.xlu0 %v913, 8
      %v1007 = vpop.permute.xlu0 %1006
      %1008 = vrot.lane.b32.xlu0 %v914, 8
      %v1009 = vpop.permute.xlu0 %1008
      %1010 = vrot.lane.b32.xlu0 %v915, 8
      %v1011 = vpop.permute.xlu0 %1010
      %vm1044 = vcmask 130112
      %1045 = vst.msk [vmem:[#allocation3] sm:$0xff] %vm1044, %v949
      %1046 = vst.msk [vmem:[#allocation3 + $0x8] sm:$0xff] %vm1044, %v951
      %1047 = vst.msk [vmem:[#allocation3 + $0x10] sm:$0xff] %vm1044, %v953
      %1048 = vst.msk [vmem:[#allocation3 + $0x18] sm:$0xff] %vm1044, %v955
      %1049 = vst.msk [vmem:[#allocation3 + $0x20] sm:$0xff] %vm1044, %v957
      %1050 = vst.msk [vmem:[#allocation3 + $0x28] sm:$0xff] %vm1044, %v959
      %1051 = vst.msk [vmem:[#allocation3 + $0x30] sm:$0xff] %vm1044, %v961
      %1052 = vst.msk [vmem:[#allocation3 + $0x38] sm:$0xff] %vm1044, %v963
      %1053 = vst.msk [vmem:[#allocation3 + $0x40] sm:$0xff] %vm1044, %v965
      %1054 = vst.msk [vmem:[#allocation3 + $0x48] sm:$0xff] %vm1044, %v967
      %1055 = vst.msk [vmem:[#allocation3 + $0x50] sm:$0xff] %vm1044, %v969
      %1056 = vst.msk [vmem:[#allocation3 + $0x58] sm:$0xff] %vm1044, %v971
      %1057 = vst.msk [vmem:[#allocation3 + $0x60] sm:$0xff] %vm1044, %v973
      %1058 = vst.msk [vmem:[#allocation3 + $0x68] sm:$0xff] %vm1044, %v975
      %1059 = vst.msk [vmem:[#allocation3 + $0x70] sm:$0xff] %vm1044, %v977
      %1060 = vst.msk [vmem:[#allocation3 + $0x78] sm:$0xff] %vm1044, %v979
      %1061 = vst.msk [vmem:[#allocation3 + $0x80] sm:$0xff] %vm1044, %v981
      %1062 = vst.msk [vmem:[#allocation3 + $0x88] sm:$0xff] %vm1044, %v983
      %1063 = vst.msk [vmem:[#allocation3 + $0x90] sm:$0xff] %vm1044, %v985
      %1064 = vst.msk [vmem:[#allocation3 + $0x98] sm:$0xff] %vm1044, %v987
      %1065 = vst.msk [vmem:[#allocation3 + $0xa0] sm:$0xff] %vm1044, %v989
      %1066 = vst.msk [vmem:[#allocation3 + $0xa8] sm:$0xff] %vm1044, %v991
      %1067 = vst.msk [vmem:[#allocation3 + $0xb0] sm:$0xff] %vm1044, %v993
      %1068 = vst.msk [vmem:[#allocation3 + $0xb8] sm:$0xff] %vm1044, %v995
      %1069 = vst.msk [vmem:[#allocation3 + $0xc0] sm:$0xff] %vm1044, %v997
      %1070 = vst.msk [vmem:[#allocation3 + $0xc8] sm:$0xff] %vm1044, %v999
      %1071 = vst.msk [vmem:[#allocation3 + $0xd0] sm:$0xff] %vm1044, %v1001
      %1072 = vst.msk [vmem:[#allocation3 + $0xd8] sm:$0xff] %vm1044, %v1003
      %1073 = vst.msk [vmem:[#allocation3 + $0xe0] sm:$0xff] %vm1044, %v1005
      %1074 = vst.msk [vmem:[#allocation3 + $0xe8] sm:$0xff] %vm1044, %v1007
      %1075 = vst.msk [vmem:[#allocation3 + $0xf0] sm:$0xff] %vm1044, %v1009
      %1076 = vst.msk [vmem:[#allocation3 + $0xf8] sm:$0xff] %vm1044, %v1011
      %v1077 = vld [vmem:[#allocation2 + $0x2] sm:$0xff]
      %v1078 = vld [vmem:[#allocation2 + $0xa] sm:$0xff]
      %v1079 = vld [vmem:[#allocation2 + $0x1a] sm:$0xff]
      %v1080 = vld [vmem:[#allocation2 + $0x22] sm:$0xff]
      %v1081 = vld [vmem:[#allocation2 + $0x32] sm:$0xff]
      %v1082 = vld [vmem:[#allocation2 + $0x3a] sm:$0xff]
      %v1083 = vld [vmem:[#allocation2 + $0x4a] sm:$0xff]
      %v1084 = vld [vmem:[#allocation2 + $0x52] sm:$0xff]
      %v1085 = vld [vmem:[#allocation2 + $0x62] sm:$0xff]
      %v1086 = vld [vmem:[#allocation2 + $0x6a] sm:$0xff]
      %v1087 = vld [vmem:[#allocation2 + $0x7a] sm:$0xff]
      %v1088 = vld [vmem:[#allocation2 + $0x82] sm:$0xff]
      %v1089 = vld [vmem:[#allocation2 + $0x92] sm:$0xff]
      %v1090 = vld [vmem:[#allocation2 + $0x9a] sm:$0xff]
      %v1091 = vld [vmem:[#allocation2 + $0xaa] sm:$0xff]
      %v1092 = vld [vmem:[#allocation2 + $0xb2] sm:$0xff]
      %v1093 = vld [vmem:[#allocation2 + $0xc2] sm:$0xff]
      %v1094 = vld [vmem:[#allocation2 + $0xca] sm:$0xff]
      %v1095 = vld [vmem:[#allocation2 + $0xda] sm:$0xff]
      %v1096 = vld [vmem:[#allocation2 + $0xe2] sm:$0xff]
      %v1097 = vld [vmem:[#allocation2 + $0xf2] sm:$0xff]
      %v1098 = vld [vmem:[#allocation2 + $0xfa] sm:$0xff]
      %v1099 = vld [vmem:[#allocation2 + $0x10a] sm:$0xff]
      %v1100 = vld [vmem:[#allocation2 + $0x112] sm:$0xff]
      %v1101 = vld [vmem:[#allocation2 + $0x122] sm:$0xff]
      %v1102 = vld [vmem:[#allocation2 + $0x12a] sm:$0xff]
      %v1103 = vld [vmem:[#allocation2 + $0x13a] sm:$0xff]
      %v1104 = vld [vmem:[#allocation2 + $0x142] sm:$0xff]
      %v1105 = vld [vmem:[#allocation2 + $0x152] sm:$0xff]
      %v1106 = vld [vmem:[#allocation2 + $0x15a] sm:$0xff]
      %v1107 = vld [vmem:[#allocation2 + $0x16a] sm:$0xff]
      %v1108 = vld [vmem:[#allocation2 + $0x172] sm:$0xff]
      %1141 = vrot.lane.b32.xlu0 %v1077, 16
      %v1142 = vpop.permute.xlu0 %1141
      %1143 = vrot.lane.b32.xlu0 %v1078, 16
      %v1144 = vpop.permute.xlu0 %1143
      %1145 = vrot.lane.b32.xlu0 %v1079, 16
      %v1146 = vpop.permute.xlu0 %1145
      %1147 = vrot.lane.b32.xlu0 %v1080, 16
      %v1148 = vpop.permute.xlu0 %1147
      %1149 = vrot.lane.b32.xlu0 %v1081, 16
      %v1150 = vpop.permute.xlu0 %1149
      %1151 = vrot.lane.b32.xlu0 %v1082, 16
      %v1152 = vpop.permute.xlu0 %1151
      %1153 = vrot.lane.b32.xlu0 %v1083, 16
      %v1154 = vpop.permute.xlu0 %1153
      %1155 = vrot.lane.b32.xlu0 %v1084, 16
      %v1156 = vpop.permute.xlu0 %1155
      %1157 = vrot.lane.b32.xlu0 %v1085, 16
      %v1158 = vpop.permute.xlu0 %1157
      %1159 = vrot.lane.b32.xlu0 %v1086, 16
      %v1160 = vpop.permute.xlu0 %1159
      %1161 = vrot.lane.b32.xlu0 %v1087, 16
      %v1162 = vpop.permute.xlu0 %1161
      %1163 = vrot.lane.b32.xlu0 %v1088, 16
      %v1164 = vpop.permute.xlu0 %1163
      %1165 = vrot.lane.b32.xlu0 %v1089, 16
      %v1166 = vpop.permute.xlu0 %1165
      %1167 = vrot.lane.b32.xlu0 %v1090, 16
      %v1168 = vpop.permute.xlu0 %1167
      %1169 = vrot.lane.b32.xlu0 %v1091, 16
      %v1170 = vpop.permute.xlu0 %1169
      %1171 = vrot.lane.b32.xlu0 %v1092, 16
      %v1172 = vpop.permute.xlu0 %1171
      %1173 = vrot.lane.b32.xlu0 %v1093, 16
      %v1174 = vpop.permute.xlu0 %1173
      %1175 = vrot.lane.b32.xlu0 %v1094, 16
      %v1176 = vpop.permute.xlu0 %1175
      %1177 = vrot.lane.b32.xlu0 %v1095, 16
      %v1178 = vpop.permute.xlu0 %1177
      %1179 = vrot.lane.b32.xlu0 %v1096, 16
      %v1180 = vpop.permute.xlu0 %1179
      %1181 = vrot.lane.b32.xlu0 %v1097, 16
      %v1182 = vpop.permute.xlu0 %1181
      %1183 = vrot.lane.b32.xlu0 %v1098, 16
      %v1184 = vpop.permute.xlu0 %1183
      %1185 = vrot.lane.b32.xlu0 %v1099, 16
      %v1186 = vpop.permute.xlu0 %1185
      %1187 = vrot.lane.b32.xlu0 %v1100, 16
      %v1188 = vpop.permute.xlu0 %1187
      %1189 = vrot.lane.b32.xlu0 %v1101, 16
      %v1190 = vpop.permute.xlu0 %1189
      %1191 = vrot.lane.b32.xlu0 %v1102, 16
      %v1192 = vpop.permute.xlu0 %1191
      %1193 = vrot.lane.b32.xlu0 %v1103, 16
      %v1194 = vpop.permute.xlu0 %1193
      %1195 = vrot.lane.b32.xlu0 %v1104, 16
      %v1196 = vpop.permute.xlu0 %1195
      %1197 = vrot.lane.b32.xlu0 %v1105, 16
      %v1198 = vpop.permute.xlu0 %1197
      %1199 = vrot.lane.b32.xlu0 %v1106, 16
      %v1200 = vpop.permute.xlu0 %1199
      %1201 = vrot.lane.b32.xlu0 %v1107, 16
      %v1202 = vpop.permute.xlu0 %1201
      %1203 = vrot.lane.b32.xlu0 %v1108, 16
      %v1204 = vpop.permute.xlu0 %1203
      %vm1237 = vcmask 195712
      %1238 = vst.msk [vmem:[#allocation3] sm:$0xff] %vm1237, %v1142
      %1239 = vst.msk [vmem:[#allocation3 + $0x8] sm:$0xff] %vm1237, %v1144
      %1240 = vst.msk [vmem:[#allocation3 + $0x10] sm:$0xff] %vm1237, %v1146
      %1241 = vst.msk [vmem:[#allocation3 + $0x18] sm:$0xff] %vm1237, %v1148
      %1242 = vst.msk [vmem:[#allocation3 + $0x20] sm:$0xff] %vm1237, %v1150
      %1243 = vst.msk [vmem:[#allocation3 + $0x28] sm:$0xff] %vm1237, %v1152
      %1244 = vst.msk [vmem:[#allocation3 + $0x30] sm:$0xff] %vm1237, %v1154
      %1245 = vst.msk [vmem:[#allocation3 + $0x38] sm:$0xff] %vm1237, %v1156
      %1246 = vst.msk [vmem:[#allocation3 + $0x40] sm:$0xff] %vm1237, %v1158
      %1247 = vst.msk [vmem:[#allocation3 + $0x48] sm:$0xff] %vm1237, %v1160
      %1248 = vst.msk [vmem:[#allocation3 + $0x50] sm:$0xff] %vm1237, %v1162
      %1249 = vst.msk [vmem:[#allocation3 + $0x58] sm:$0xff] %vm1237, %v1164
      %1250 = vst.msk [vmem:[#allocation3 + $0x60] sm:$0xff] %vm1237, %v1166
      %1251 = vst.msk [vmem:[#allocation3 + $0x68] sm:$0xff] %vm1237, %v1168
      %1252 = vst.msk [vmem:[#allocation3 + $0x70] sm:$0xff] %vm1237, %v1170
      %1253 = vst.msk [vmem:[#allocation3 + $0x78] sm:$0xff] %vm1237, %v1172
      %1254 = vst.msk [vmem:[#allocation3 + $0x80] sm:$0xff] %vm1237, %v1174
      %1255 = vst.msk [vmem:[#allocation3 + $0x88] sm:$0xff] %vm1237, %v1176
      %1256 = vst.msk [vmem:[#allocation3 + $0x90] sm:$0xff] %vm1237, %v1178
      %1257 = vst.msk [vmem:[#allocation3 + $0x98] sm:$0xff] %vm1237, %v1180
      %1258 = vst.msk [vmem:[#allocation3 + $0xa0] sm:$0xff] %vm1237, %v1182
      %1259 = vst.msk [vmem:[#allocation3 + $0xa8] sm:$0xff] %vm1237, %v1184
      %1260 = vst.msk [vmem:[#allocation3 + $0xb0] sm:$0xff] %vm1237, %v1186
      %1261 = vst.msk [vmem:[#allocation3 + $0xb8] sm:$0xff] %vm1237, %v1188
      %1262 = vst.msk [vmem:[#allocation3 + $0xc0] sm:$0xff] %vm1237, %v1190
      %1263 = vst.msk [vmem:[#allocation3 + $0xc8] sm:$0xff] %vm1237, %v1192
      %1264 = vst.msk [vmem:[#allocation3 + $0xd0] sm:$0xff] %vm1237, %v1194
      %1265 = vst.msk [vmem:[#allocation3 + $0xd8] sm:$0xff] %vm1237, %v1196
      %1266 = vst.msk [vmem:[#allocation3 + $0xe0] sm:$0xff] %vm1237, %v1198
      %1267 = vst.msk [vmem:[#allocation3 + $0xe8] sm:$0xff] %vm1237, %v1200
      %1268 = vst.msk [vmem:[#allocation3 + $0xf0] sm:$0xff] %vm1237, %v1202
      %1269 = vst.msk [vmem:[#allocation3 + $0xf8] sm:$0xff] %vm1237, %v1204
      %s1270 = scalar_lea.vmem [#allocation2], 24
      %v1271 = vld [vmem:[%s1270] sm:$0xff]
      %v1272 = vld [vmem:[%s1270 + $0x8] sm:$0xff]
      %v1273 = vld [vmem:[%s1270 + $0x18] sm:$0xff]
      %v1274 = vld [vmem:[%s1270 + $0x20] sm:$0xff]
      %v1275 = vld [vmem:[%s1270 + $0x30] sm:$0xff]
      %v1276 = vld [vmem:[%s1270 + $0x38] sm:$0xff]
      %v1277 = vld [vmem:[%s1270 + $0x48] sm:$0xff]
      %v1278 = vld [vmem:[%s1270 + $0x50] sm:$0xff]
      %v1279 = vld [vmem:[%s1270 + $0x60] sm:$0xff]
      %v1280 = vld [vmem:[%s1270 + $0x68] sm:$0xff]
      %v1281 = vld [vmem:[%s1270 + $0x78] sm:$0xff]
      %v1282 = vld [vmem:[%s1270 + $0x80] sm:$0xff]
      %v1283 = vld [vmem:[%s1270 + $0x90] sm:$0xff]
      %v1284 = vld [vmem:[%s1270 + $0x98] sm:$0xff]
      %v1285 = vld [vmem:[%s1270 + $0xa8] sm:$0xff]
      %v1286 = vld [vmem:[%s1270 + $0xb0] sm:$0xff]
      %v1287 = vld [vmem:[%s1270 + $0xc0] sm:$0xff]
      %v1288 = vld [vmem:[%s1270 + $0xc8] sm:$0xff]
      %v1289 = vld [vmem:[%s1270 + $0xd8] sm:$0xff]
      %v1290 = vld [vmem:[%s1270 + $0xe0] sm:$0xff]
      %v1291 = vld [vmem:[%s1270 + $0xf0] sm:$0xff]
      %v1292 = vld [vmem:[%s1270 + $0xf8] sm:$0xff]
      %v1293 = vld [vmem:[%s1270 + $0x108] sm:$0xff]
      %v1294 = vld [vmem:[%s1270 + $0x110] sm:$0xff]
      %v1295 = vld [vmem:[%s1270 + $0x120] sm:$0xff]
      %v1296 = vld [vmem:[%s1270 + $0x128] sm:$0xff]
      %v1297 = vld [vmem:[%s1270 + $0x138] sm:$0xff]
      %v1298 = vld [vmem:[%s1270 + $0x140] sm:$0xff]
      %v1299 = vld [vmem:[%s1270 + $0x150] sm:$0xff]
      %v1300 = vld [vmem:[%s1270 + $0x158] sm:$0xff]
      %v1301 = vld [vmem:[%s1270 + $0x168] sm:$0xff]
      %v1302 = vld [vmem:[%s1270 + $0x170] sm:$0xff]
      %1335 = vrot.lane.b32.xlu0 %v1271, 24
      %v1336 = vpop.permute.xlu0 %1335
      %1337 = vrot.lane.b32.xlu0 %v1272, 24
      %v1338 = vpop.permute.xlu0 %1337
      %1339 = vrot.lane.b32.xlu0 %v1273, 24
      %v1340 = vpop.permute.xlu0 %1339
      %1341 = vrot.lane.b32.xlu0 %v1274, 24
      %v1342 = vpop.permute.xlu0 %1341
      %1343 = vrot.lane.b32.xlu0 %v1275, 24
      %v1344 = vpop.permute.xlu0 %1343
      %1345 = vrot.lane.b32.xlu0 %v1276, 24
      %v1346 = vpop.permute.xlu0 %1345
      %1347 = vrot.lane.b32.xlu0 %v1277, 24
      %v1348 = vpop.permute.xlu0 %1347
      %1349 = vrot.lane.b32.xlu0 %v1278, 24
      %v1350 = vpop.permute.xlu0 %1349
      %1351 = vrot.lane.b32.xlu0 %v1279, 24
      %v1352 = vpop.permute.xlu0 %1351
      %1353 = vrot.lane.b32.xlu0 %v1280, 24
      %v1354 = vpop.permute.xlu0 %1353
      %1355 = vrot.lane.b32.xlu0 %v1281, 24
      %v1356 = vpop.permute.xlu0 %1355
      %1357 = vrot.lane.b32.xlu0 %v1282, 24
      %v1358 = vpop.permute.xlu0 %1357
      %1359 = vrot.lane.b32.xlu0 %v1283, 24
      %v1360 = vpop.permute.xlu0 %1359
      %1361 = vrot.lane.b32.xlu0 %v1284, 24
      %v1362 = vpop.permute.xlu0 %1361
      %1363 = vrot.lane.b32.xlu0 %v1285, 24
      %v1364 = vpop.permute.xlu0 %1363
      %1365 = vrot.lane.b32.xlu0 %v1286, 24
      %v1366 = vpop.permute.xlu0 %1365
      %1367 = vrot.lane.b32.xlu0 %v1287, 24
      %v1368 = vpop.permute.xlu0 %1367
      %1369 = vrot.lane.b32.xlu0 %v1288, 24
      %v1370 = vpop.permute.xlu0 %1369
      %1371 = vrot.lane.b32.xlu0 %v1289, 24
      %v1372 = vpop.permute.xlu0 %1371
      %1373 = vrot.lane.b32.xlu0 %v1290, 24
      %v1374 = vpop.permute.xlu0 %1373
      %1375 = vrot.lane.b32.xlu0 %v1291, 24
      %v1376 = vpop.permute.xlu0 %1375
      %1377 = vrot.lane.b32.xlu0 %v1292, 24
      %v1378 = vpop.permute.xlu0 %1377
      %1379 = vrot.lane.b32.xlu0 %v1293, 24
      %v1380 = vpop.permute.xlu0 %1379
      %1381 = vrot.lane.b32.xlu0 %v1294, 24
      %v1382 = vpop.permute.xlu0 %1381
      %1383 = vrot.lane.b32.xlu0 %v1295, 24
      %v1384 = vpop.permute.xlu0 %1383
      %1385 = vrot.lane.b32.xlu0 %v1296, 24
      %v1386 = vpop.permute.xlu0 %1385
      %1387 = vrot.lane.b32.xlu0 %v1297, 24
      %v1388 = vpop.permute.xlu0 %1387
      %1389 = vrot.lane.b32.xlu0 %v1298, 24
      %v1390 = vpop.permute.xlu0 %1389
      %1391 = vrot.lane.b32.xlu0 %v1299, 24
      %v1392 = vpop.permute.xlu0 %1391
      %1393 = vrot.lane.b32.xlu0 %v1300, 24
      %v1394 = vpop.permute.xlu0 %1393
      %1395 = vrot.lane.b32.xlu0 %v1301, 24
      %v1396 = vpop.permute.xlu0 %1395
      %1397 = vrot.lane.b32.xlu0 %v1302, 24
      %v1398 = vpop.permute.xlu0 %1397
      %vm1431 = vcmask 261312
      %1432 = vst.msk [vmem:[#allocation3] sm:$0xff] %vm1431, %v1336
      %1433 = vst.msk [vmem:[#allocation3 + $0x8] sm:$0xff] %vm1431, %v1338
      %1434 = vst.msk [vmem:[#allocation3 + $0x10] sm:$0xff] %vm1431, %v1340
      %1435 = vst.msk [vmem:[#allocation3 + $0x18] sm:$0xff] %vm1431, %v1342
      %1436 = vst.msk [vmem:[#allocation3 + $0x20] sm:$0xff] %vm1431, %v1344
      %1437 = vst.msk [vmem:[#allocation3 + $0x28] sm:$0xff] %vm1431, %v1346
      %1438 = vst.msk [vmem:[#allocation3 + $0x30] sm:$0xff] %vm1431, %v1348
      %1439 = vst.msk [vmem:[#allocation3 + $0x38] sm:$0xff] %vm1431, %v1350
      %1440 = vst.msk [vmem:[#allocation3 + $0x40] sm:$0xff] %vm1431, %v1352
      %1441 = vst.msk [vmem:[#allocation3 + $0x48] sm:$0xff] %vm1431, %v1354
      %1442 = vst.msk [vmem:[#allocation3 + $0x50] sm:$0xff] %vm1431, %v1356
      %1443 = vst.msk [vmem:[#allocation3 + $0x58] sm:$0xff] %vm1431, %v1358
      %1444 = vst.msk [vmem:[#allocation3 + $0x60] sm:$0xff] %vm1431, %v1360
      %1445 = vst.msk [vmem:[#allocation3 + $0x68] sm:$0xff] %vm1431, %v1362
      %1446 = vst.msk [vmem:[#allocation3 + $0x70] sm:$0xff] %vm1431, %v1364
      %1447 = vst.msk [vmem:[#allocation3 + $0x78] sm:$0xff] %vm1431, %v1366
      %1448 = vst.msk [vmem:[#allocation3 + $0x80] sm:$0xff] %vm1431, %v1368
      %1449 = vst.msk [vmem:[#allocation3 + $0x88] sm:$0xff] %vm1431, %v1370
      %1450 = vst.msk [vmem:[#allocation3 + $0x90] sm:$0xff] %vm1431, %v1372
      %1451 = vst.msk [vmem:[#allocation3 + $0x98] sm:$0xff] %vm1431, %v1374
      %1452 = vst.msk [vmem:[#allocation3 + $0xa0] sm:$0xff] %vm1431, %v1376
      %1453 = vst.msk [vmem:[#allocation3 + $0xa8] sm:$0xff] %vm1431, %v1378
      %1454 = vst.msk [vmem:[#allocation3 + $0xb0] sm:$0xff] %vm1431, %v1380
      %1455 = vst.msk [vmem:[#allocation3 + $0xb8] sm:$0xff] %vm1431, %v1382
      %1456 = vst.msk [vmem:[#allocation3 + $0xc0] sm:$0xff] %vm1431, %v1384
      %1457 = vst.msk [vmem:[#allocation3 + $0xc8] sm:$0xff] %vm1431, %v1386
      %1458 = vst.msk [vmem:[#allocation3 + $0xd0] sm:$0xff] %vm1431, %v1388
      %1459 = vst.msk [vmem:[#allocation3 + $0xd8] sm:$0xff] %vm1431, %v1390
      %1460 = vst.msk [vmem:[#allocation3 + $0xe0] sm:$0xff] %vm1431, %v1392
      %1461 = vst.msk [vmem:[#allocation3 + $0xe8] sm:$0xff] %vm1431, %v1394
      %1462 = vst.msk [vmem:[#allocation3 + $0xf0] sm:$0xff] %vm1431, %v1396
      %1463 = vst.msk [vmem:[#allocation3 + $0xf8] sm:$0xff] %vm1431, %v1398
      %v1464 = vld [vmem:[%s1270 + $0x1] sm:$0xff]
      %v1465 = vld [vmem:[%s1270 + $0x9] sm:$0xff]
      %v1466 = vld [vmem:[%s1270 + $0x19] sm:$0xff]
      %v1467 = vld [vmem:[%s1270 + $0x21] sm:$0xff]
      %v1468 = vld [vmem:[%s1270 + $0x31] sm:$0xff]
      %v1469 = vld [vmem:[%s1270 + $0x39] sm:$0xff]
      %v1470 = vld [vmem:[%s1270 + $0x49] sm:$0xff]
      %v1471 = vld [vmem:[%s1270 + $0x51] sm:$0xff]
      %v1472 = vld [vmem:[%s1270 + $0x61] sm:$0xff]
      %v1473 = vld [vmem:[%s1270 + $0x69] sm:$0xff]
      %v1474 = vld [vmem:[%s1270 + $0x79] sm:$0xff]
      %v1475 = vld [vmem:[%s1270 + $0x81] sm:$0xff]
      %v1476 = vld [vmem:[%s1270 + $0x91] sm:$0xff]
      %v1477 = vld [vmem:[%s1270 + $0x99] sm:$0xff]
      %v1478 = vld [vmem:[%s1270 + $0xa9] sm:$0xff]
      %v1479 = vld [vmem:[%s1270 + $0xb1] sm:$0xff]
      %v1480 = vld [vmem:[%s1270 + $0xc1] sm:$0xff]
      %v1481 = vld [vmem:[%s1270 + $0xc9] sm:$0xff]
      %v1482 = vld [vmem:[%s1270 + $0xd9] sm:$0xff]
      %v1483 = vld [vmem:[%s1270 + $0xe1] sm:$0xff]
      %v1484 = vld [vmem:[%s1270 + $0xf1] sm:$0xff]
      %v1485 = vld [vmem:[%s1270 + $0xf9] sm:$0xff]
      %v1486 = vld [vmem:[%s1270 + $0x109] sm:$0xff]
      %v1487 = vld [vmem:[%s1270 + $0x111] sm:$0xff]
      %v1488 = vld [vmem:[%s1270 + $0x121] sm:$0xff]
      %v1489 = vld [vmem:[%s1270 + $0x129] sm:$0xff]
      %v1490 = vld [vmem:[%s1270 + $0x139] sm:$0xff]
      %v1491 = vld [vmem:[%s1270 + $0x141] sm:$0xff]
      %v1492 = vld [vmem:[%s1270 + $0x151] sm:$0xff]
      %v1493 = vld [vmem:[%s1270 + $0x159] sm:$0xff]
      %v1494 = vld [vmem:[%s1270 + $0x169] sm:$0xff]
      %v1495 = vld [vmem:[%s1270 + $0x171] sm:$0xff]
      %1528 = vrot.lane.b32.xlu0 %v1464, 32
      %v1529 = vpop.permute.xlu0 %1528
      %1530 = vrot.lane.b32.xlu0 %v1465, 32
      %v1531 = vpop.permute.xlu0 %1530
      %1532 = vrot.lane.b32.xlu0 %v1466, 32
      %v1533 = vpop.permute.xlu0 %1532
      %1534 = vrot.lane.b32.xlu0 %v1467, 32
      %v1535 = vpop.permute.xlu0 %1534
      %1536 = vrot.lane.b32.xlu0 %v1468, 32
      %v1537 = vpop.permute.xlu0 %1536
      %1538 = vrot.lane.b32.xlu0 %v1469, 32
      %v1539 = vpop.permute.xlu0 %1538
      %1540 = vrot.lane.b32.xlu0 %v1470, 32
      %v1541 = vpop.permute.xlu0 %1540
      %1542 = vrot.lane.b32.xlu0 %v1471, 32
      %v1543 = vpop.permute.xlu0 %1542
      %1544 = vrot.lane.b32.xlu0 %v1472, 32
      %v1545 = vpop.permute.xlu0 %1544
      %1546 = vrot.lane.b32.xlu0 %v1473, 32
      %v1547 = vpop.permute.xlu0 %1546
      %1548 = vrot.lane.b32.xlu0 %v1474, 32
      %v1549 = vpop.permute.xlu0 %1548
      %1550 = vrot.lane.b32.xlu0 %v1475, 32
      %v1551 = vpop.permute.xlu0 %1550
      %1552 = vrot.lane.b32.xlu0 %v1476, 32
      %v1553 = vpop.permute.xlu0 %1552
      %1554 = vrot.lane.b32.xlu0 %v1477, 32
      %v1555 = vpop.permute.xlu0 %1554
      %1556 = vrot.lane.b32.xlu0 %v1478, 32
      %v1557 = vpop.permute.xlu0 %1556
      %1558 = vrot.lane.b32.xlu0 %v1479, 32
      %v1559 = vpop.permute.xlu0 %1558
      %1560 = vrot.lane.b32.xlu0 %v1480, 32
      %v1561 = vpop.permute.xlu0 %1560
      %1562 = vrot.lane.b32.xlu0 %v1481, 32
      %v1563 = vpop.permute.xlu0 %1562
      %1564 = vrot.lane.b32.xlu0 %v1482, 32
      %v1565 = vpop.permute.xlu0 %1564
      %1566 = vrot.lane.b32.xlu0 %v1483, 32
      %v1567 = vpop.permute.xlu0 %1566
      %1568 = vrot.lane.b32.xlu0 %v1484, 32
      %v1569 = vpop.permute.xlu0 %1568
      %1570 = vrot.lane.b32.xlu0 %v1485, 32
      %v1571 = vpop.permute.xlu0 %1570
      %1572 = vrot.lane.b32.xlu0 %v1486, 32
      %v1573 = vpop.permute.xlu0 %1572
      %1574 = vrot.lane.b32.xlu0 %v1487, 32
      %v1575 = vpop.permute.xlu0 %1574
      %1576 = vrot.lane.b32.xlu0 %v1488, 32
      %v1577 = vpop.permute.xlu0 %1576
      %1578 = vrot.lane.b32.xlu0 %v1489, 32
      %v1579 = vpop.permute.xlu0 %1578
      %1580 = vrot.lane.b32.xlu0 %v1490, 32
      %v1581 = vpop.permute.xlu0 %1580
      %1582 = vrot.lane.b32.xlu0 %v1491, 32
      %v1583 = vpop.permute.xlu0 %1582
      %1584 = vrot.lane.b32.xlu0 %v1492, 32
      %v1585 = vpop.permute.xlu0 %1584
      %1586 = vrot.lane.b32.xlu0 %v1493, 32
      %v1587 = vpop.permute.xlu0 %1586
      %1588 = vrot.lane.b32.xlu0 %v1494, 32
      %v1589 = vpop.permute.xlu0 %1588
      %1590 = vrot.lane.b32.xlu0 %v1495, 32
      %v1591 = vpop.permute.xlu0 %1590
      %vm1624 = vcmask 326912
      %1625 = vst.msk [vmem:[#allocation3] sm:$0xff] %vm1624, %v1529
      %1626 = vst.msk [vmem:[#allocation3 + $0x8] sm:$0xff] %vm1624, %v1531
      %1627 = vst.msk [vmem:[#allocation3 + $0x10] sm:$0xff] %vm1624, %v1533
      %1628 = vst.msk [vmem:[#allocation3 + $0x18] sm:$0xff] %vm1624, %v1535
      %1629 = vst.msk [vmem:[#allocation3 + $0x20] sm:$0xff] %vm1624, %v1537
      %1630 = vst.msk [vmem:[#allocation3 + $0x28] sm:$0xff] %vm1624, %v1539
      %1631 = vst.msk [vmem:[#allocation3 + $0x30] sm:$0xff] %vm1624, %v1541
      %1632 = vst.msk [vmem:[#allocation3 + $0x38] sm:$0xff] %vm1624, %v1543
      %1633 = vst.msk [vmem:[#allocation3 + $0x40] sm:$0xff] %vm1624, %v1545
      %1634 = vst.msk [vmem:[#allocation3 + $0x48] sm:$0xff] %vm1624, %v1547
      %1635 = vst.msk [vmem:[#allocation3 + $0x50] sm:$0xff] %vm1624, %v1549
      %1636 = vst.msk [vmem:[#allocation3 + $0x58] sm:$0xff] %vm1624, %v1551
      %1637 = vst.msk [vmem:[#allocation3 + $0x60] sm:$0xff] %vm1624, %v1553
      %1638 = vst.msk [vmem:[#allocation3 + $0x68] sm:$0xff] %vm1624, %v1555
      %1639 = vst.msk [vmem:[#allocation3 + $0x70] sm:$0xff] %vm1624, %v1557
      %1640 = vst.msk [vmem:[#allocation3 + $0x78] sm:$0xff] %vm1624, %v1559
      %1641 = vst.msk [vmem:[#allocation3 + $0x80] sm:$0xff] %vm1624, %v1561
      %1642 = vst.msk [vmem:[#allocation3 + $0x88] sm:$0xff] %vm1624, %v1563
      %1643 = vst.msk [vmem:[#allocation3 + $0x90] sm:$0xff] %vm1624, %v1565
      %1644 = vst.msk [vmem:[#allocation3 + $0x98] sm:$0xff] %vm1624, %v1567
      %1645 = vst.msk [vmem:[#allocation3 + $0xa0] sm:$0xff] %vm1624, %v1569
      %1646 = vst.msk [vmem:[#allocation3 + $0xa8] sm:$0xff] %vm1624, %v1571
      %1647 = vst.msk [vmem:[#allocation3 + $0xb0] sm:$0xff] %vm1624, %v1573
      %1648 = vst.msk [vmem:[#allocation3 + $0xb8] sm:$0xff] %vm1624, %v1575
      %1649 = vst.msk [vmem:[#allocation3 + $0xc0] sm:$0xff] %vm1624, %v1577
      %1650 = vst.msk [vmem:[#allocation3 + $0xc8] sm:$0xff] %vm1624, %v1579
      %1651 = vst.msk [vmem:[#allocation3 + $0xd0] sm:$0xff] %vm1624, %v1581
      %1652 = vst.msk [vmem:[#allocation3 + $0xd8] sm:$0xff] %vm1624, %v1583
      %1653 = vst.msk [vmem:[#allocation3 + $0xe0] sm:$0xff] %vm1624, %v1585
      %1654 = vst.msk [vmem:[#allocation3 + $0xe8] sm:$0xff] %vm1624, %v1587
      %1655 = vst.msk [vmem:[#allocation3 + $0xf0] sm:$0xff] %vm1624, %v1589
      %1656 = vst.msk [vmem:[#allocation3 + $0xf8] sm:$0xff] %vm1624, %v1591
      %v1657 = vld [vmem:[%s1270 + $0x2] sm:$0xff]
      %v1658 = vld [vmem:[%s1270 + $0xa] sm:$0xff]
      %v1659 = vld [vmem:[%s1270 + $0x1a] sm:$0xff]
      %v1660 = vld [vmem:[%s1270 + $0x22] sm:$0xff]
      %v1661 = vld [vmem:[%s1270 + $0x32] sm:$0xff]
      %v1662 = vld [vmem:[%s1270 + $0x3a] sm:$0xff]
      %v1663 = vld [vmem:[%s1270 + $0x4a] sm:$0xff]
      %v1664 = vld [vmem:[%s1270 + $0x52] sm:$0xff]
      %v1665 = vld [vmem:[%s1270 + $0x62] sm:$0xff]
      %v1666 = vld [vmem:[%s1270 + $0x6a] sm:$0xff]
      %v1667 = vld [vmem:[%s1270 + $0x7a] sm:$0xff]
      %v1668 = vld [vmem:[%s1270 + $0x82] sm:$0xff]
      %v1669 = vld [vmem:[%s1270 + $0x92] sm:$0xff]
      %v1670 = vld [vmem:[%s1270 + $0x9a] sm:$0xff]
      %v1671 = vld [vmem:[%s1270 + $0xaa] sm:$0xff]
      %v1672 = vld [vmem:[%s1270 + $0xb2] sm:$0xff]
      %v1673 = vld [vmem:[%s1270 + $0xc2] sm:$0xff]
      %v1674 = vld [vmem:[%s1270 + $0xca] sm:$0xff]
      %v1675 = vld [vmem:[%s1270 + $0xda] sm:$0xff]
      %v1676 = vld [vmem:[%s1270 + $0xe2] sm:$0xff]
      %v1677 = vld [vmem:[%s1270 + $0xf2] sm:$0xff]
      %v1678 = vld [vmem:[%s1270 + $0xfa] sm:$0xff]
      %v1679 = vld [vmem:[%s1270 + $0x10a] sm:$0xff]
      %v1680 = vld [vmem:[%s1270 + $0x112] sm:$0xff]
      %v1681 = vld [vmem:[%s1270 + $0x122] sm:$0xff]
      %v1682 = vld [vmem:[%s1270 + $0x12a] sm:$0xff]
      %v1683 = vld [vmem:[%s1270 + $0x13a] sm:$0xff]
      %v1684 = vld [vmem:[%s1270 + $0x142] sm:$0xff]
      %v1685 = vld [vmem:[%s1270 + $0x152] sm:$0xff]
      %v1686 = vld [vmem:[%s1270 + $0x15a] sm:$0xff]
      %v1687 = vld [vmem:[%s1270 + $0x16a] sm:$0xff]
      %v1688 = vld [vmem:[%s1270 + $0x172] sm:$0xff]
      %1721 = vrot.lane.b32.xlu0 %v1657, 40
      %v1722 = vpop.permute.xlu0 %1721
      %1723 = vrot.lane.b32.xlu0 %v1658, 40
      %v1724 = vpop.permute.xlu0 %1723
      %1725 = vrot.lane.b32.xlu0 %v1659, 40
      %v1726 = vpop.permute.xlu0 %1725
      %1727 = vrot.lane.b32.xlu0 %v1660, 40
      %v1728 = vpop.permute.xlu0 %1727
      %1729 = vrot.lane.b32.xlu0 %v1661, 40
      %v1730 = vpop.permute.xlu0 %1729
      %1731 = vrot.lane.b32.xlu0 %v1662, 40
      %v1732 = vpop.permute.xlu0 %1731
      %1733 = vrot.lane.b32.xlu0 %v1663, 40
      %v1734 = vpop.permute.xlu0 %1733
      %1735 = vrot.lane.b32.xlu0 %v1664, 40
      %v1736 = vpop.permute.xlu0 %1735
      %1737 = vrot.lane.b32.xlu0 %v1665, 40
      %v1738 = vpop.permute.xlu0 %1737
      %1739 = vrot.lane.b32.xlu0 %v1666, 40
      %v1740 = vpop.permute.xlu0 %1739
      %1741 = vrot.lane.b32.xlu0 %v1667, 40
      %v1742 = vpop.permute.xlu0 %1741
      %1743 = vrot.lane.b32.xlu0 %v1668, 40
      %v1744 = vpop.permute.xlu0 %1743
      %1745 = vrot.lane.b32.xlu0 %v1669, 40
      %v1746 = vpop.permute.xlu0 %1745
      %1747 = vrot.lane.b32.xlu0 %v1670, 40
      %v1748 = vpop.permute.xlu0 %1747
      %1749 = vrot.lane.b32.xlu0 %v1671, 40
      %v1750 = vpop.permute.xlu0 %1749
      %1751 = vrot.lane.b32.xlu0 %v1672, 40
      %v1752 = vpop.permute.xlu0 %1751
      %1753 = vrot.lane.b32.xlu0 %v1673, 40
      %v1754 = vpop.permute.xlu0 %1753
      %1755 = vrot.lane.b32.xlu0 %v1674, 40
      %v1756 = vpop.permute.xlu0 %1755
      %1757 = vrot.lane.b32.xlu0 %v1675, 40
      %v1758 = vpop.permute.xlu0 %1757
      %1759 = vrot.lane.b32.xlu0 %v1676, 40
      %v1760 = vpop.permute.xlu0 %1759
      %1761 = vrot.lane.b32.xlu0 %v1677, 40
      %v1762 = vpop.permute.xlu0 %1761
      %1763 = vrot.lane.b32.xlu0 %v1678, 40
      %v1764 = vpop.permute.xlu0 %1763
      %1765 = vrot.lane.b32.xlu0 %v1679, 40
      %v1766 = vpop.permute.xlu0 %1765
      %1767 = vrot.lane.b32.xlu0 %v1680, 40
      %v1768 = vpop.permute.xlu0 %1767
      %1769 = vrot.lane.b32.xlu0 %v1681, 40
      %v1770 = vpop.permute.xlu0 %1769
      %1771 = vrot.lane.b32.xlu0 %v1682, 40
      %v1772 = vpop.permute.xlu0 %1771
      %1773 = vrot.lane.b32.xlu0 %v1683, 40
      %v1774 = vpop.permute.xlu0 %1773
      %1775 = vrot.lane.b32.xlu0 %v1684, 40
      %v1776 = vpop.permute.xlu0 %1775
      %1777 = vrot.lane.b32.xlu0 %v1685, 40
      %v1778 = vpop.permute.xlu0 %1777
      %1779 = vrot.lane.b32.xlu0 %v1686, 40
      %v1780 = vpop.permute.xlu0 %1779
      %1781 = vrot.lane.b32.xlu0 %v1687, 40
      %v1782 = vpop.permute.xlu0 %1781
      %1783 = vrot.lane.b32.xlu0 %v1688, 40
      %v1784 = vpop.permute.xlu0 %1783
      %vm1817 = vcmask 392512
      %1818 = vst.msk [vmem:[#allocation3] sm:$0xff] %vm1817, %v1722
      %1819 = vst.msk [vmem:[#allocation3 + $0x8] sm:$0xff] %vm1817, %v1724
      %1820 = vst.msk [vmem:[#allocation3 + $0x10] sm:$0xff] %vm1817, %v1726
      %1821 = vst.msk [vmem:[#allocation3 + $0x18] sm:$0xff] %vm1817, %v1728
      %1822 = vst.msk [vmem:[#allocation3 + $0x20] sm:$0xff] %vm1817, %v1730
      %1823 = vst.msk [vmem:[#allocation3 + $0x28] sm:$0xff] %vm1817, %v1732
      %1824 = vst.msk [vmem:[#allocation3 + $0x30] sm:$0xff] %vm1817, %v1734
      %1825 = vst.msk [vmem:[#allocation3 + $0x38] sm:$0xff] %vm1817, %v1736
      %1826 = vst.msk [vmem:[#allocation3 + $0x40] sm:$0xff] %vm1817, %v1738
      %1827 = vst.msk [vmem:[#allocation3 + $0x48] sm:$0xff] %vm1817, %v1740
      %1828 = vst.msk [vmem:[#allocation3 + $0x50] sm:$0xff] %vm1817, %v1742
      %1829 = vst.msk [vmem:[#allocation3 + $0x58] sm:$0xff] %vm1817, %v1744
      %1830 = vst.msk [vmem:[#allocation3 + $0x60] sm:$0xff] %vm1817, %v1746
      %1831 = vst.msk [vmem:[#allocation3 + $0x68] sm:$0xff] %vm1817, %v1748
      %1832 = vst.msk [vmem:[#allocation3 + $0x70] sm:$0xff] %vm1817, %v1750
      %1833 = vst.msk [vmem:[#allocation3 + $0x78] sm:$0xff] %vm1817, %v1752
      %1834 = vst.msk [vmem:[#allocation3 + $0x80] sm:$0xff] %vm1817, %v1754
      %1835 = vst.msk [vmem:[#allocation3 + $0x88] sm:$0xff] %vm1817, %v1756
      %1836 = vst.msk [vmem:[#allocation3 + $0x90] sm:$0xff] %vm1817, %v1758
      %1837 = vst.msk [vmem:[#allocation3 + $0x98] sm:$0xff] %vm1817, %v1760
      %1838 = vst.msk [vmem:[#allocation3 + $0xa0] sm:$0xff] %vm1817, %v1762
      %1839 = vst.msk [vmem:[#allocation3 + $0xa8] sm:$0xff] %vm1817, %v1764
      %1840 = vst.msk [vmem:[#allocation3 + $0xb0] sm:$0xff] %vm1817, %v1766
      %1841 = vst.msk [vmem:[#allocation3 + $0xb8] sm:$0xff] %vm1817, %v1768
      %1842 = vst.msk [vmem:[#allocation3 + $0xc0] sm:$0xff] %vm1817, %v1770
      %1843 = vst.msk [vmem:[#allocation3 + $0xc8] sm:$0xff] %vm1817, %v1772
      %1844 = vst.msk [vmem:[#allocation3 + $0xd0] sm:$0xff] %vm1817, %v1774
      %1845 = vst.msk [vmem:[#allocation3 + $0xd8] sm:$0xff] %vm1817, %v1776
      %1846 = vst.msk [vmem:[#allocation3 + $0xe0] sm:$0xff] %vm1817, %v1778
      %1847 = vst.msk [vmem:[#allocation3 + $0xe8] sm:$0xff] %vm1817, %v1780
      %1848 = vst.msk [vmem:[#allocation3 + $0xf0] sm:$0xff] %vm1817, %v1782
      %1849 = vst.msk [vmem:[#allocation3 + $0xf8] sm:$0xff] %vm1817, %v1784
      %s1850 = scalar_lea.vmem [#allocation2], 48
      %v1851 = vld [vmem:[%s1850] sm:$0xff]
      %v1852 = vld [vmem:[%s1850 + $0x8] sm:$0xff]
      %v1853 = vld [vmem:[%s1850 + $0x18] sm:$0xff]
      %v1854 = vld [vmem:[%s1850 + $0x20] sm:$0xff]
      %v1855 = vld [vmem:[%s1850 + $0x30] sm:$0xff]
      %v1856 = vld [vmem:[%s1850 + $0x38] sm:$0xff]
      %v1857 = vld [vmem:[%s1850 + $0x48] sm:$0xff]
      %v1858 = vld [vmem:[%s1850 + $0x50] sm:$0xff]
      %v1859 = vld [vmem:[%s1850 + $0x60] sm:$0xff]
      %v1860 = vld [vmem:[%s1850 + $0x68] sm:$0xff]
      %v1861 = vld [vmem:[%s1850 + $0x78] sm:$0xff]
      %v1862 = vld [vmem:[%s1850 + $0x80] sm:$0xff]
      %v1863 = vld [vmem:[%s1850 + $0x90] sm:$0xff]
      %v1864 = vld [vmem:[%s1850 + $0x98] sm:$0xff]
      %v1865 = vld [vmem:[%s1850 + $0xa8] sm:$0xff]
      %v1866 = vld [vmem:[%s1850 + $0xb0] sm:$0xff]
      %v1867 = vld [vmem:[%s1850 + $0xc0] sm:$0xff]
      %v1868 = vld [vmem:[%s1850 + $0xc8] sm:$0xff]
      %v1869 = vld [vmem:[%s1850 + $0xd8] sm:$0xff]
      %v1870 = vld [vmem:[%s1850 + $0xe0] sm:$0xff]
      %v1871 = vld [vmem:[%s1850 + $0xf0] sm:$0xff]
      %v1872 = vld [vmem:[%s1850 + $0xf8] sm:$0xff]
      %v1873 = vld [vmem:[%s1850 + $0x108] sm:$0xff]
      %v1874 = vld [vmem:[%s1850 + $0x110] sm:$0xff]
      %v1875 = vld [vmem:[%s1850 + $0x120] sm:$0xff]
      %v1876 = vld [vmem:[%s1850 + $0x128] sm:$0xff]
      %v1877 = vld [vmem:[%s1850 + $0x138] sm:$0xff]
      %v1878 = vld [vmem:[%s1850 + $0x140] sm:$0xff]
      %v1879 = vld [vmem:[%s1850 + $0x150] sm:$0xff]
      %v1880 = vld [vmem:[%s1850 + $0x158] sm:$0xff]
      %v1881 = vld [vmem:[%s1850 + $0x168] sm:$0xff]
      %v1882 = vld [vmem:[%s1850 + $0x170] sm:$0xff]
      %1915 = vrot.lane.b32.xlu0 %v1851, 48
      %v1916 = vpop.permute.xlu0 %1915
      %1917 = vrot.lane.b32.xlu0 %v1852, 48
      %v1918 = vpop.permute.xlu0 %1917
      %1919 = vrot.lane.b32.xlu0 %v1853, 48
      %v1920 = vpop.permute.xlu0 %1919
      %1921 = vrot.lane.b32.xlu0 %v1854, 48
      %v1922 = vpop.permute.xlu0 %1921
      %1923 = vrot.lane.b32.xlu0 %v1855, 48
      %v1924 = vpop.permute.xlu0 %1923
      %1925 = vrot.lane.b32.xlu0 %v1856, 48
      %v1926 = vpop.permute.xlu0 %1925
      %1927 = vrot.lane.b32.xlu0 %v1857, 48
      %v1928 = vpop.permute.xlu0 %1927
      %1929 = vrot.lane.b32.xlu0 %v1858, 48
      %v1930 = vpop.permute.xlu0 %1929
      %1931 = vrot.lane.b32.xlu0 %v1859, 48
      %v1932 = vpop.permute.xlu0 %1931
      %1933 = vrot.lane.b32.xlu0 %v1860, 48
      %v1934 = vpop.permute.xlu0 %1933
      %1935 = vrot.lane.b32.xlu0 %v1861, 48
      %v1936 = vpop.permute.xlu0 %1935
      %1937 = vrot.lane.b32.xlu0 %v1862, 48
      %v1938 = vpop.permute.xlu0 %1937
      %1939 = vrot.lane.b32.xlu0 %v1863, 48
      %v1940 = vpop.permute.xlu0 %1939
      %1941 = vrot.lane.b32.xlu0 %v1864, 48
      %v1942 = vpop.permute.xlu0 %1941
      %1943 = vrot.lane.b32.xlu0 %v1865, 48
      %v1944 = vpop.permute.xlu0 %1943
      %1945 = vrot.lane.b32.xlu0 %v1866, 48
      %v1946 = vpop.permute.xlu0 %1945
      %1947 = vrot.lane.b32.xlu0 %v1867, 48
      %v1948 = vpop.permute.xlu0 %1947
      %1949 = vrot.lane.b32.xlu0 %v1868, 48
      %v1950 = vpop.permute.xlu0 %1949
      %1951 = vrot.lane.b32.xlu0 %v1869, 48
      %v1952 = vpop.permute.xlu0 %1951
      %1953 = vrot.lane.b32.xlu0 %v1870, 48
      %v1954 = vpop.permute.xlu0 %1953
      %1955 = vrot.lane.b32.xlu0 %v1871, 48
      %v1956 = vpop.permute.xlu0 %1955
      %1957 = vrot.lane.b32.xlu0 %v1872, 48
      %v1958 = vpop.permute.xlu0 %1957
      %1959 = vrot.lane.b32.xlu0 %v1873, 48
      %v1960 = vpop.permute.xlu0 %1959
      %1961 = vrot.lane.b32.xlu0 %v1874, 48
      %v1962 = vpop.permute.xlu0 %1961
      %1963 = vrot.lane.b32.xlu0 %v1875, 48
      %v1964 = vpop.permute.xlu0 %1963
      %1965 = vrot.lane.b32.xlu0 %v1876, 48
      %v1966 = vpop.permute.xlu0 %1965
      %1967 = vrot.lane.b32.xlu0 %v1877, 48
      %v1968 = vpop.permute.xlu0 %1967
      %1969 = vrot.lane.b32.xlu0 %v1878, 48
      %v1970 = vpop.permute.xlu0 %1969
      %1971 = vrot.lane.b32.xlu0 %v1879, 48
      %v1972 = vpop.permute.xlu0 %1971
      %1973 = vrot.lane.b32.xlu0 %v1880, 48
      %v1974 = vpop.permute.xlu0 %1973
      %1975 = vrot.lane.b32.xlu0 %v1881, 48
      %v1976 = vpop.permute.xlu0 %1975
      %1977 = vrot.lane.b32.xlu0 %v1882, 48
      %v1978 = vpop.permute.xlu0 %1977
      %vm2011 = vcmask 458112
      %2012 = vst.msk [vmem:[#allocation3] sm:$0xff] %vm2011, %v1916
      %2013 = vst.msk [vmem:[#allocation3 + $0x8] sm:$0xff] %vm2011, %v1918
      %2014 = vst.msk [vmem:[#allocation3 + $0x10] sm:$0xff] %vm2011, %v1920
      %2015 = vst.msk [vmem:[#allocation3 + $0x18] sm:$0xff] %vm2011, %v1922
      %2016 = vst.msk [vmem:[#allocation3 + $0x20] sm:$0xff] %vm2011, %v1924
      %2017 = vst.msk [vmem:[#allocation3 + $0x28] sm:$0xff] %vm2011, %v1926
      %2018 = vst.msk [vmem:[#allocation3 + $0x30] sm:$0xff] %vm2011, %v1928
      %2019 = vst.msk [vmem:[#allocation3 + $0x38] sm:$0xff] %vm2011, %v1930
      %2020 = vst.msk [vmem:[#allocation3 + $0x40] sm:$0xff] %vm2011, %v1932
      %2021 = vst.msk [vmem:[#allocation3 + $0x48] sm:$0xff] %vm2011, %v1934
      %2022 = vst.msk [vmem:[#allocation3 + $0x50] sm:$0xff] %vm2011, %v1936
      %2023 = vst.msk [vmem:[#allocation3 + $0x58] sm:$0xff] %vm2011, %v1938
      %2024 = vst.msk [vmem:[#allocation3 + $0x60] sm:$0xff] %vm2011, %v1940
      %2025 = vst.msk [vmem:[#allocation3 + $0x68] sm:$0xff] %vm2011, %v1942
      %2026 = vst.msk [vmem:[#allocation3 + $0x70] sm:$0xff] %vm2011, %v1944
      %2027 = vst.msk [vmem:[#allocation3 + $0x78] sm:$0xff] %vm2011, %v1946
      %2028 = vst.msk [vmem:[#allocation3 + $0x80] sm:$0xff] %vm2011, %v1948
      %2029 = vst.msk [vmem:[#allocation3 + $0x88] sm:$0xff] %vm2011, %v1950
      %2030 = vst.msk [vmem:[#allocation3 + $0x90] sm:$0xff] %vm2011, %v1952
      %2031 = vst.msk [vmem:[#allocation3 + $0x98] sm:$0xff] %vm2011, %v1954
      %2032 = vst.msk [vmem:[#allocation3 + $0xa0] sm:$0xff] %vm2011, %v1956
      %2033 = vst.msk [vmem:[#allocation3 + $0xa8] sm:$0xff] %vm2011, %v1958
      %2034 = vst.msk [vmem:[#allocation3 + $0xb0] sm:$0xff] %vm2011, %v1960
      %2035 = vst.msk [vmem:[#allocation3 + $0xb8] sm:$0xff] %vm2011, %v1962
      %2036 = vst.msk [vmem:[#allocation3 + $0xc0] sm:$0xff] %vm2011, %v1964
      %2037 = vst.msk [vmem:[#allocation3 + $0xc8] sm:$0xff] %vm2011, %v1966
      %2038 = vst.msk [vmem:[#allocation3 + $0xd0] sm:$0xff] %vm2011, %v1968
      %2039 = vst.msk [vmem:[#allocation3 + $0xd8] sm:$0xff] %vm2011, %v1970
      %2040 = vst.msk [vmem:[#allocation3 + $0xe0] sm:$0xff] %vm2011, %v1972
      %2041 = vst.msk [vmem:[#allocation3 + $0xe8] sm:$0xff] %vm2011, %v1974
      %2042 = vst.msk [vmem:[#allocation3 + $0xf0] sm:$0xff] %vm2011, %v1976
      %2043 = vst.msk [vmem:[#allocation3 + $0xf8] sm:$0xff] %vm2011, %v1978
      %v2044 = vld [vmem:[%s1850 + $0x1] sm:$0xff]
      %v2045 = vld [vmem:[%s1850 + $0x9] sm:$0xff]
      %v2046 = vld [vmem:[%s1850 + $0x19] sm:$0xff]
      %v2047 = vld [vmem:[%s1850 + $0x21] sm:$0xff]
      %v2048 = vld [vmem:[%s1850 + $0x31] sm:$0xff]
      %v2049 = vld [vmem:[%s1850 + $0x39] sm:$0xff]
      %v2050 = vld [vmem:[%s1850 + $0x49] sm:$0xff]
      %v2051 = vld [vmem:[%s1850 + $0x51] sm:$0xff]
      %v2052 = vld [vmem:[%s1850 + $0x61] sm:$0xff]
      %v2053 = vld [vmem:[%s1850 + $0x69] sm:$0xff]
      %v2054 = vld [vmem:[%s1850 + $0x79] sm:$0xff]
      %v2055 = vld [vmem:[%s1850 + $0x81] sm:$0xff]
      %v2056 = vld [vmem:[%s1850 + $0x91] sm:$0xff]
      %v2057 = vld [vmem:[%s1850 + $0x99] sm:$0xff]
      %v2058 = vld [vmem:[%s1850 + $0xa9] sm:$0xff]
      %v2059 = vld [vmem:[%s1850 + $0xb1] sm:$0xff]
      %v2060 = vld [vmem:[%s1850 + $0xc1] sm:$0xff]
      %v2061 = vld [vmem:[%s1850 + $0xc9] sm:$0xff]
      %v2062 = vld [vmem:[%s1850 + $0xd9] sm:$0xff]
      %v2063 = vld [vmem:[%s1850 + $0xe1] sm:$0xff]
      %v2064 = vld [vmem:[%s1850 + $0xf1] sm:$0xff]
      %v2065 = vld [vmem:[%s1850 + $0xf9] sm:$0xff]
      %v2066 = vld [vmem:[%s1850 + $0x109] sm:$0xff]
      %v2067 = vld [vmem:[%s1850 + $0x111] sm:$0xff]
      %v2068 = vld [vmem:[%s1850 + $0x121] sm:$0xff]
      %v2069 = vld [vmem:[%s1850 + $0x129] sm:$0xff]
      %v2070 = vld [vmem:[%s1850 + $0x139] sm:$0xff]
      %v2071 = vld [vmem:[%s1850 + $0x141] sm:$0xff]
      %v2072 = vld [vmem:[%s1850 + $0x151] sm:$0xff]
      %v2073 = vld [vmem:[%s1850 + $0x159] sm:$0xff]
      %v2074 = vld [vmem:[%s1850 + $0x169] sm:$0xff]
      %v2075 = vld [vmem:[%s1850 + $0x171] sm:$0xff]
      %2108 = vrot.lane.b32.xlu0 %v2044, 56
      %v2109 = vpop.permute.xlu0 %2108
      %2110 = vrot.lane.b32.xlu0 %v2045, 56
      %v2111 = vpop.permute.xlu0 %2110
      %2112 = vrot.lane.b32.xlu0 %v2046, 56
      %v2113 = vpop.permute.xlu0 %2112
      %2114 = vrot.lane.b32.xlu0 %v2047, 56
      %v2115 = vpop.permute.xlu0 %2114
      %2116 = vrot.lane.b32.xlu0 %v2048, 56
      %v2117 = vpop.permute.xlu0 %2116
      %2118 = vrot.lane.b32.xlu0 %v2049, 56
      %v2119 = vpop.permute.xlu0 %2118
      %2120 = vrot.lane.b32.xlu0 %v2050, 56
      %v2121 = vpop.permute.xlu0 %2120
      %2122 = vrot.lane.b32.xlu0 %v2051, 56
      %v2123 = vpop.permute.xlu0 %2122
      %2124 = vrot.lane.b32.xlu0 %v2052, 56
      %v2125 = vpop.permute.xlu0 %2124
      %2126 = vrot.lane.b32.xlu0 %v2053, 56
      %v2127 = vpop.permute.xlu0 %2126
      %2128 = vrot.lane.b32.xlu0 %v2054, 56
      %v2129 = vpop.permute.xlu0 %2128
      %2130 = vrot.lane.b32.xlu0 %v2055, 56
      %v2131 = vpop.permute.xlu0 %2130
      %2132 = vrot.lane.b32.xlu0 %v2056, 56
      %v2133 = vpop.permute.xlu0 %2132
      %2134 = vrot.lane.b32.xlu0 %v2057, 56
      %v2135 = vpop.permute.xlu0 %2134
      %2136 = vrot.lane.b32.xlu0 %v2058, 56
      %v2137 = vpop.permute.xlu0 %2136
      %2138 = vrot.lane.b32.xlu0 %v2059, 56
      %v2139 = vpop.permute.xlu0 %2138
      %2140 = vrot.lane.b32.xlu0 %v2060, 56
      %v2141 = vpop.permute.xlu0 %2140
      %2142 = vrot.lane.b32.xlu0 %v2061, 56
      %v2143 = vpop.permute.xlu0 %2142
      %2144 = vrot.lane.b32.xlu0 %v2062, 56
      %v2145 = vpop.permute.xlu0 %2144
      %2146 = vrot.lane.b32.xlu0 %v2063, 56
      %v2147 = vpop.permute.xlu0 %2146
      %2148 = vrot.lane.b32.xlu0 %v2064, 56
      %v2149 = vpop.permute.xlu0 %2148
      %2150 = vrot.lane.b32.xlu0 %v2065, 56
      %v2151 = vpop.permute.xlu0 %2150
      %2152 = vrot.lane.b32.xlu0 %v2066, 56
      %v2153 = vpop.permute.xlu0 %2152
      %2154 = vrot.lane.b32.xlu0 %v2067, 56
      %v2155 = vpop.permute.xlu0 %2154
      %2156 = vrot.lane.b32.xlu0 %v2068, 56
      %v2157 = vpop.permute.xlu0 %2156
      %2158 = vrot.lane.b32.xlu0 %v2069, 56
      %v2159 = vpop.permute.xlu0 %2158
      %2160 = vrot.lane.b32.xlu0 %v2070, 56
      %v2161 = vpop.permute.xlu0 %2160
      %2162 = vrot.lane.b32.xlu0 %v2071, 56
      %v2163 = vpop.permute.xlu0 %2162
      %2164 = vrot.lane.b32.xlu0 %v2072, 56
      %v2165 = vpop.permute.xlu0 %2164
      %2166 = vrot.lane.b32.xlu0 %v2073, 56
      %v2167 = vpop.permute.xlu0 %2166
      %2168 = vrot.lane.b32.xlu0 %v2074, 56
      %v2169 = vpop.permute.xlu0 %2168
      %2170 = vrot.lane.b32.xlu0 %v2075, 56
      %v2171 = vpop.permute.xlu0 %2170
      %vm2204 = vcmask 523712
      %2205 = vst.msk [vmem:[#allocation3] sm:$0xff] %vm2204, %v2109
      %2206 = vst.msk [vmem:[#allocation3 + $0x8] sm:$0xff] %vm2204, %v2111
      %2207 = vst.msk [vmem:[#allocation3 + $0x10] sm:$0xff] %vm2204, %v2113
      %2208 = vst.msk [vmem:[#allocation3 + $0x18] sm:$0xff] %vm2204, %v2115
      %2209 = vst.msk [vmem:[#allocation3 + $0x20] sm:$0xff] %vm2204, %v2117
      %2210 = vst.msk [vmem:[#allocation3 + $0x28] sm:$0xff] %vm2204, %v2119
      %2211 = vst.msk [vmem:[#allocation3 + $0x30] sm:$0xff] %vm2204, %v2121
      %2212 = vst.msk [vmem:[#allocation3 + $0x38] sm:$0xff] %vm2204, %v2123
      %2213 = vst.msk [vmem:[#allocation3 + $0x40] sm:$0xff] %vm2204, %v2125
      %2214 = vst.msk [vmem:[#allocation3 + $0x48] sm:$0xff] %vm2204, %v2127
      %2215 = vst.msk [vmem:[#allocation3 + $0x50] sm:$0xff] %vm2204, %v2129
      %2216 = vst.msk [vmem:[#allocation3 + $0x58] sm:$0xff] %vm2204, %v2131
      %2217 = vst.msk [vmem:[#allocation3 + $0x60] sm:$0xff] %vm2204, %v2133
      %2218 = vst.msk [vmem:[#allocation3 + $0x68] sm:$0xff] %vm2204, %v2135
      %2219 = vst.msk [vmem:[#allocation3 + $0x70] sm:$0xff] %vm2204, %v2137
      %2220 = vst.msk [vmem:[#allocation3 + $0x78] sm:$0xff] %vm2204, %v2139
      %2221 = vst.msk [vmem:[#allocation3 + $0x80] sm:$0xff] %vm2204, %v2141
      %2222 = vst.msk [vmem:[#allocation3 + $0x88] sm:$0xff] %vm2204, %v2143
      %2223 = vst.msk [vmem:[#allocation3 + $0x90] sm:$0xff] %vm2204, %v2145
      %2224 = vst.msk [vmem:[#allocation3 + $0x98] sm:$0xff] %vm2204, %v2147
      %2225 = vst.msk [vmem:[#allocation3 + $0xa0] sm:$0xff] %vm2204, %v2149
      %2226 = vst.msk [vmem:[#allocation3 + $0xa8] sm:$0xff] %vm2204, %v2151
      %2227 = vst.msk [vmem:[#allocation3 + $0xb0] sm:$0xff] %vm2204, %v2153
      %2228 = vst.msk [vmem:[#allocation3 + $0xb8] sm:$0xff] %vm2204, %v2155
      %2229 = vst.msk [vmem:[#allocation3 + $0xc0] sm:$0xff] %vm2204, %v2157
      %2230 = vst.msk [vmem:[#allocation3 + $0xc8] sm:$0xff] %vm2204, %v2159
      %2231 = vst.msk [vmem:[#allocation3 + $0xd0] sm:$0xff] %vm2204, %v2161
      %2232 = vst.msk [vmem:[#allocation3 + $0xd8] sm:$0xff] %vm2204, %v2163
      %2233 = vst.msk [vmem:[#allocation3 + $0xe0] sm:$0xff] %vm2204, %v2165
      %2234 = vst.msk [vmem:[#allocation3 + $0xe8] sm:$0xff] %vm2204, %v2167
      %2235 = vst.msk [vmem:[#allocation3 + $0xf0] sm:$0xff] %vm2204, %v2169
      %2236 = vst.msk [vmem:[#allocation3 + $0xf8] sm:$0xff] %vm2204, %v2171
      %v2237 = vld [vmem:[%s1850 + $0x2] sm:$0xff]
      %v2238 = vld [vmem:[%s1850 + $0xa] sm:$0xff]
      %v2239 = vld [vmem:[%s1850 + $0x1a] sm:$0xff]
      %v2240 = vld [vmem:[%s1850 + $0x22] sm:$0xff]
      %v2241 = vld [vmem:[%s1850 + $0x32] sm:$0xff]
      %v2242 = vld [vmem:[%s1850 + $0x3a] sm:$0xff]
      %v2243 = vld [vmem:[%s1850 + $0x4a] sm:$0xff]
      %v2244 = vld [vmem:[%s1850 + $0x52] sm:$0xff]
      %v2245 = vld [vmem:[%s1850 + $0x62] sm:$0xff]
      %v2246 = vld [vmem:[%s1850 + $0x6a] sm:$0xff]
      %v2247 = vld [vmem:[%s1850 + $0x7a] sm:$0xff]
      %v2248 = vld [vmem:[%s1850 + $0x82] sm:$0xff]
      %v2249 = vld [vmem:[%s1850 + $0x92] sm:$0xff]
      %v2250 = vld [vmem:[%s1850 + $0x9a] sm:$0xff]
      %v2251 = vld [vmem:[%s1850 + $0xaa] sm:$0xff]
      %v2252 = vld [vmem:[%s1850 + $0xb2] sm:$0xff]
      %v2253 = vld [vmem:[%s1850 + $0xc2] sm:$0xff]
      %v2254 = vld [vmem:[%s1850 + $0xca] sm:$0xff]
      %v2255 = vld [vmem:[%s1850 + $0xda] sm:$0xff]
      %v2256 = vld [vmem:[%s1850 + $0xe2] sm:$0xff]
      %v2257 = vld [vmem:[%s1850 + $0xf2] sm:$0xff]
      %v2258 = vld [vmem:[%s1850 + $0xfa] sm:$0xff]
      %v2259 = vld [vmem:[%s1850 + $0x10a] sm:$0xff]
      %v2260 = vld [vmem:[%s1850 + $0x112] sm:$0xff]
      %v2261 = vld [vmem:[%s1850 + $0x122] sm:$0xff]
      %v2262 = vld [vmem:[%s1850 + $0x12a] sm:$0xff]
      %v2263 = vld [vmem:[%s1850 + $0x13a] sm:$0xff]
      %v2264 = vld [vmem:[%s1850 + $0x142] sm:$0xff]
      %v2265 = vld [vmem:[%s1850 + $0x152] sm:$0xff]
      %v2266 = vld [vmem:[%s1850 + $0x15a] sm:$0xff]
      %v2267 = vld [vmem:[%s1850 + $0x16a] sm:$0xff]
      %v2268 = vld [vmem:[%s1850 + $0x172] sm:$0xff]
      %2301 = vrot.lane.b32.xlu0 %v2237, 64
      %v2302 = vpop.permute.xlu0 %2301
      %2303 = vrot.lane.b32.xlu0 %v2238, 64
      %v2304 = vpop.permute.xlu0 %2303
      %2305 = vrot.lane.b32.xlu0 %v2239, 64
      %v2306 = vpop.permute.xlu0 %2305
      %2307 = vrot.lane.b32.xlu0 %v2240, 64
      %v2308 = vpop.permute.xlu0 %2307
      %2309 = vrot.lane.b32.xlu0 %v2241, 64
      %v2310 = vpop.permute.xlu0 %2309
      %2311 = vrot.lane.b32.xlu0 %v2242, 64
      %v2312 = vpop.permute.xlu0 %2311
      %2313 = vrot.lane.b32.xlu0 %v2243, 64
      %v2314 = vpop.permute.xlu0 %2313
      %2315 = vrot.lane.b32.xlu0 %v2244, 64
      %v2316 = vpop.permute.xlu0 %2315
      %2317 = vrot.lane.b32.xlu0 %v2245, 64
      %v2318 = vpop.permute.xlu0 %2317
      %2319 = vrot.lane.b32.xlu0 %v2246, 64
      %v2320 = vpop.permute.xlu0 %2319
      %2321 = vrot.lane.b32.xlu0 %v2247, 64
      %v2322 = vpop.permute.xlu0 %2321
      %2323 = vrot.lane.b32.xlu0 %v2248, 64
      %v2324 = vpop.permute.xlu0 %2323
      %2325 = vrot.lane.b32.xlu0 %v2249, 64
      %v2326 = vpop.permute.xlu0 %2325
      %2327 = vrot.lane.b32.xlu0 %v2250, 64
      %v2328 = vpop.permute.xlu0 %2327
      %2329 = vrot.lane.b32.xlu0 %v2251, 64
      %v2330 = vpop.permute.xlu0 %2329
      %2331 = vrot.lane.b32.xlu0 %v2252, 64
      %v2332 = vpop.permute.xlu0 %2331
      %2333 = vrot.lane.b32.xlu0 %v2253, 64
      %v2334 = vpop.permute.xlu0 %2333
      %2335 = vrot.lane.b32.xlu0 %v2254, 64
      %v2336 = vpop.permute.xlu0 %2335
      %2337 = vrot.lane.b32.xlu0 %v2255, 64
      %v2338 = vpop.permute.xlu0 %2337
      %2339 = vrot.lane.b32.xlu0 %v2256, 64
      %v2340 = vpop.permute.xlu0 %2339
      %2341 = vrot.lane.b32.xlu0 %v2257, 64
      %v2342 = vpop.permute.xlu0 %2341
      %2343 = vrot.lane.b32.xlu0 %v2258, 64
      %v2344 = vpop.permute.xlu0 %2343
      %2345 = vrot.lane.b32.xlu0 %v2259, 64
      %v2346 = vpop.permute.xlu0 %2345
      %2347 = vrot.lane.b32.xlu0 %v2260, 64
      %v2348 = vpop.permute.xlu0 %2347
      %2349 = vrot.lane.b32.xlu0 %v2261, 64
      %v2350 = vpop.permute.xlu0 %2349
      %2351 = vrot.lane.b32.xlu0 %v2262, 64
      %v2352 = vpop.permute.xlu0 %2351
      %2353 = vrot.lane.b32.xlu0 %v2263, 64
      %v2354 = vpop.permute.xlu0 %2353
      %2355 = vrot.lane.b32.xlu0 %v2264, 64
      %v2356 = vpop.permute.xlu0 %2355
      %2357 = vrot.lane.b32.xlu0 %v2265, 64
      %v2358 = vpop.permute.xlu0 %2357
      %2359 = vrot.lane.b32.xlu0 %v2266, 64
      %v2360 = vpop.permute.xlu0 %2359
      %2361 = vrot.lane.b32.xlu0 %v2267, 64
      %v2362 = vpop.permute.xlu0 %2361
      %2363 = vrot.lane.b32.xlu0 %v2268, 64
      %v2364 = vpop.permute.xlu0 %2363
      %vm2397 = vcmask 589312
      %2398 = vst.msk [vmem:[#allocation3] sm:$0xff] %vm2397, %v2302
      %2399 = vst.msk [vmem:[#allocation3 + $0x8] sm:$0xff] %vm2397, %v2304
      %2400 = vst.msk [vmem:[#allocation3 + $0x10] sm:$0xff] %vm2397, %v2306
      %2401 = vst.msk [vmem:[#allocation3 + $0x18] sm:$0xff] %vm2397, %v2308
      %2402 = vst.msk [vmem:[#allocation3 + $0x20] sm:$0xff] %vm2397, %v2310
      %2403 = vst.msk [vmem:[#allocation3 + $0x28] sm:$0xff] %vm2397, %v2312
      %2404 = vst.msk [vmem:[#allocation3 + $0x30] sm:$0xff] %vm2397, %v2314
      %2405 = vst.msk [vmem:[#allocation3 + $0x38] sm:$0xff] %vm2397, %v2316
      %2406 = vst.msk [vmem:[#allocation3 + $0x40] sm:$0xff] %vm2397, %v2318
      %2407 = vst.msk [vmem:[#allocation3 + $0x48] sm:$0xff] %vm2397, %v2320
      %2408 = vst.msk [vmem:[#allocation3 + $0x50] sm:$0xff] %vm2397, %v2322
      %2409 = vst.msk [vmem:[#allocation3 + $0x58] sm:$0xff] %vm2397, %v2324
      %2410 = vst.msk [vmem:[#allocation3 + $0x60] sm:$0xff] %vm2397, %v2326
      %2411 = vst.msk [vmem:[#allocation3 + $0x68] sm:$0xff] %vm2397, %v2328
      %2412 = vst.msk [vmem:[#allocation3 + $0x70] sm:$0xff] %vm2397, %v2330
      %2413 = vst.msk [vmem:[#allocation3 + $0x78] sm:$0xff] %vm2397, %v2332
      %2414 = vst.msk [vmem:[#allocation3 + $0x80] sm:$0xff] %vm2397, %v2334
      %2415 = vst.msk [vmem:[#allocation3 + $0x88] sm:$0xff] %vm2397, %v2336
      %2416 = vst.msk [vmem:[#allocation3 + $0x90] sm:$0xff] %vm2397, %v2338
      %2417 = vst.msk [vmem:[#allocation3 + $0x98] sm:$0xff] %vm2397, %v2340
      %2418 = vst.msk [vmem:[#allocation3 + $0xa0] sm:$0xff] %vm2397, %v2342
      %2419 = vst.msk [vmem:[#allocation3 + $0xa8] sm:$0xff] %vm2397, %v2344
      %2420 = vst.msk [vmem:[#allocation3 + $0xb0] sm:$0xff] %vm2397, %v2346
      %2421 = vst.msk [vmem:[#allocation3 + $0xb8] sm:$0xff] %vm2397, %v2348
      %2422 = vst.msk [vmem:[#allocation3 + $0xc0] sm:$0xff] %vm2397, %v2350
      %2423 = vst.msk [vmem:[#allocation3 + $0xc8] sm:$0xff] %vm2397, %v2352
      %2424 = vst.msk [vmem:[#allocation3 + $0xd0] sm:$0xff] %vm2397, %v2354
      %2425 = vst.msk [vmem:[#allocation3 + $0xd8] sm:$0xff] %vm2397, %v2356
      %2426 = vst.msk [vmem:[#allocation3 + $0xe0] sm:$0xff] %vm2397, %v2358
      %2427 = vst.msk [vmem:[#allocation3 + $0xe8] sm:$0xff] %vm2397, %v2360
      %2428 = vst.msk [vmem:[#allocation3 + $0xf0] sm:$0xff] %vm2397, %v2362
      %2429 = vst.msk [vmem:[#allocation3 + $0xf8] sm:$0xff] %vm2397, %v2364
      %v2430 = vld [vmem:[#allocation3] sm:$0xff]
      %v2431 = vld [vmem:[#allocation3 + $0x8] sm:$0xff]
      %v2432 = vld [vmem:[#allocation3 + $0x10] sm:$0xff]
      %v2433 = vld [vmem:[#allocation3 + $0x18] sm:$0xff]
      %v2434 = vld [vmem:[#allocation3 + $0x20] sm:$0xff]
      %v2435 = vld [vmem:[#allocation3 + $0x28] sm:$0xff]
      %v2436 = vld [vmem:[#allocation3 + $0x30] sm:$0xff]
      %v2437 = vld [vmem:[#allocation3 + $0x38] sm:$0xff]
      %v2438 = vld [vmem:[#allocation3 + $0x40] sm:$0xff]
      %v2439 = vld [vmem:[#allocation3 + $0x48] sm:$0xff]
      %v2440 = vld [vmem:[#allocation3 + $0x50] sm:$0xff]
      %v2441 = vld [vmem:[#allocation3 + $0x58] sm:$0xff]
      %v2442 = vld [vmem:[#allocation3 + $0x60] sm:$0xff]
      %v2443 = vld [vmem:[#allocation3 + $0x68] sm:$0xff]
      %v2444 = vld [vmem:[#allocation3 + $0x70] sm:$0xff]
      %v2445 = vld [vmem:[#allocation3 + $0x78] sm:$0xff]
      %v2446 = vld [vmem:[#allocation3 + $0x80] sm:$0xff]
      %v2447 = vld [vmem:[#allocation3 + $0x88] sm:$0xff]
      %v2448 = vld [vmem:[#allocation3 + $0x90] sm:$0xff]
      %v2449 = vld [vmem:[#allocation3 + $0x98] sm:$0xff]
      %v2450 = vld [vmem:[#allocation3 + $0xa0] sm:$0xff]
      %v2451 = vld [vmem:[#allocation3 + $0xa8] sm:$0xff]
      %v2452 = vld [vmem:[#allocation3 + $0xb0] sm:$0xff]
      %v2453 = vld [vmem:[#allocation3 + $0xb8] sm:$0xff]
      %v2454 = vld [vmem:[#allocation3 + $0xc0] sm:$0xff]
      %v2455 = vld [vmem:[#allocation3 + $0xc8] sm:$0xff]
      %v2456 = vld [vmem:[#allocation3 + $0xd0] sm:$0xff]
      %v2457 = vld [vmem:[#allocation3 + $0xd8] sm:$0xff]
      %v2458 = vld [vmem:[#allocation3 + $0xe0] sm:$0xff]
      %v2459 = vld [vmem:[#allocation3 + $0xe8] sm:$0xff]
      %v2460 = vld [vmem:[#allocation3 + $0xf0] sm:$0xff]
      %v2461 = vld [vmem:[#allocation3 + $0xf8] sm:$0xff]
      %v2462 = vpack.c.bf16 %v2431, %v2430
      %v2463 = vpack.c.bf16 %v2433, %v2432
      %v2464 = vpack.c.bf16 %v2435, %v2434
      %v2465 = vpack.c.bf16 %v2437, %v2436
      %v2466 = vpack.c.bf16 %v2439, %v2438
      %v2467 = vpack.c.bf16 %v2441, %v2440
      %v2468 = vpack.c.bf16 %v2443, %v2442
      %v2469 = vpack.c.bf16 %v2445, %v2444
      %v2470 = vpack.c.bf16 %v2447, %v2446
      %v2471 = vpack.c.bf16 %v2449, %v2448
      %v2472 = vpack.c.bf16 %v2451, %v2450
      %v2473 = vpack.c.bf16 %v2453, %v2452
      %v2474 = vpack.c.bf16 %v2455, %v2454
      %v2475 = vpack.c.bf16 %v2457, %v2456
      %v2476 = vpack.c.bf16 %v2459, %v2458
      %v2477 = vpack.c.bf16 %v2461, %v2460
      %v2478 = vld [vmem:[%s2] sm:$0xf]
      %v2479 = vld [vmem:[%s2 + $0x4] sm:$0xf]
      %v2480 = vld [vmem:[%s2 + $0x8] sm:$0xf]
      %v2481 = vld [vmem:[%s2 + $0xc] sm:$0xf]
      %v2482 = vld [vmem:[%s2 + $0x10] sm:$0xf]
      %v2483 = vld [vmem:[%s2 + $0x14] sm:$0xf]
      %v2484 = vld [vmem:[%s2 + $0x18] sm:$0xf]
      %v2485 = vld [vmem:[%s2 + $0x1c] sm:$0xf]
      %v2486 = vld [vmem:[%s2 + $0x20] sm:$0xf]
      %v2496 = vunpack.c.l.b16 %v2478
      %v2497 = vunpack.c.l.b16 %v2479
      %v2498 = vunpack.c.l.b16 %v2480
      %v2499 = vunpack.c.l.b16 %v2481
      %v2500 = vunpack.c.l.b16 %v2482
      %v2501 = vunpack.c.l.b16 %v2483
      %v2502 = vunpack.c.l.b16 %v2484
      %v2503 = vunpack.c.l.b16 %v2485
      %v2504 = vunpack.c.l.b16 %v2486
      %v2505 = vpack.c.b16 %v2497, %v2496
      %v2506 = vpack.c.b16 %v2499, %v2498
      %v2507 = vpack.c.b16 %v2501, %v2500
      %v2508 = vpack.c.b16 %v2503, %v2502
      %v2509 = vpack.c.b16 %v2504, %v2504
      %vm2514 = vcmask 588800
      %v2516 = vsel %vm2514, %v2462, 0
      %v2519 = vsel %vm2514, %v2463, 0
      %v2522 = vsel %vm2514, %v2464, 0
      %v2525 = vsel %vm2514, %v2465, 0
      %v2528 = vsel %vm2514, %v2466, 0
      %v2531 = vsel %vm2514, %v2467, 0
      %v2534 = vsel %vm2514, %v2468, 0
      %v2537 = vsel %vm2514, %v2469, 0
      %v2540 = vsel %vm2514, %v2470, 0
      %v2543 = vsel %vm2514, %v2471, 0
      %v2546 = vsel %vm2514, %v2472, 0
      %v2549 = vsel %vm2514, %v2473, 0
      %v2552 = vsel %vm2514, %v2474, 0
      %v2555 = vsel %vm2514, %v2475, 0
      %v2558 = vsel %vm2514, %v2476, 0
      %v2561 = vsel %vm2514, %v2477, 0
      %vm2563 = vcmask 1043456
      %v2565 = vsel %vm2563, %v2509, 0
      %2567 = vmatpush.bf16.msra.mxu0 0
      %2568 = vmatpush.bf16.msra.mxu0 0
      %2569 = vmatpush.bf16.msra.mxu0 0
      %2570 = vmatpush.bf16.msra.mxu0 %v2565
      %2571 = vmatpush.bf16.msra.mxu0 %v2508
      %2572 = vmatpush.bf16.msra.mxu0 %v2507
      %2573 = vmatpush.bf16.msra.mxu0 %v2506
      %2574 = vmatpush.bf16.msra.mxu0 %v2505
      %2575 = vmatmul.bf16.gmra.mxu0 %v2516
      %v2576 = vpop.f32.mrf.mxu0
      %v2577 = vadd.f32 0.0, %v2576
      %v2578 = vpop.f32.mrf.mxu0
      %v2579 = vadd.f32 0.0, %v2578
      %2580 = vmatmul.bf16.gmra.mxu0 %v2519
      %v2581 = vpop.f32.mrf.mxu0
      %v2582 = vadd.f32 0.0, %v2581
      %v2583 = vpop.f32.mrf.mxu0
      %v2584 = vadd.f32 0.0, %v2583
      %2585 = vmatmul.bf16.gmra.mxu0 %v2522
      %v2586 = vpop.f32.mrf.mxu0
      %v2587 = vadd.f32 0.0, %v2586
      %v2588 = vpop.f32.mrf.mxu0
      %v2589 = vadd.f32 0.0, %v2588
      %2590 = vmatmul.bf16.gmra.mxu0 %v2525
      %v2591 = vpop.f32.mrf.mxu0
      %v2592 = vadd.f32 0.0, %v2591
      %v2593 = vpop.f32.mrf.mxu0
      %v2594 = vadd.f32 0.0, %v2593
      %2595 = vmatmul.bf16.gmra.mxu0 %v2528
      %v2596 = vpop.f32.mrf.mxu0
      %v2597 = vadd.f32 0.0, %v2596
      %v2598 = vpop.f32.mrf.mxu0
      %v2599 = vadd.f32 0.0, %v2598
      %2600 = vmatmul.bf16.gmra.mxu0 %v2531
      %v2601 = vpop.f32.mrf.mxu0
      %v2602 = vadd.f32 0.0, %v2601
      %v2603 = vpop.f32.mrf.mxu0
      %v2604 = vadd.f32 0.0, %v2603
      %2605 = vmatmul.bf16.gmra.mxu0 %v2534
      %v2606 = vpop.f32.mrf.mxu0
      %v2607 = vadd.f32 0.0, %v2606
      %v2608 = vpop.f32.mrf.mxu0
      %v2609 = vadd.f32 0.0, %v2608
      %2610 = vmatmul.bf16.gmra.mxu0 %v2537
      %v2611 = vpop.f32.mrf.mxu0
      %v2612 = vadd.f32 0.0, %v2611
      %v2613 = vpop.f32.mrf.mxu0
      %v2614 = vadd.f32 0.0, %v2613
      %2615 = vmatmul.bf16.gmra.mxu0 %v2540
      %v2616 = vpop.f32.mrf.mxu0
      %v2617 = vadd.f32 0.0, %v2616
      %v2618 = vpop.f32.mrf.mxu0
      %v2619 = vadd.f32 0.0, %v2618
      %2620 = vmatmul.bf16.gmra.mxu0 %v2543
      %v2621 = vpop.f32.mrf.mxu0
      %v2622 = vadd.f32 0.0, %v2621
      %v2623 = vpop.f32.mrf.mxu0
      %v2624 = vadd.f32 0.0, %v2623
      %2625 = vmatmul.bf16.gmra.mxu0 %v2546
      %v2626 = vpop.f32.mrf.mxu0
      %v2627 = vadd.f32 0.0, %v2626
      %v2628 = vpop.f32.mrf.mxu0
      %v2629 = vadd.f32 0.0, %v2628
      %2630 = vmatmul.bf16.gmra.mxu0 %v2549
      %v2631 = vpop.f32.mrf.mxu0
      %v2632 = vadd.f32 0.0, %v2631
      %v2633 = vpop.f32.mrf.mxu0
      %v2634 = vadd.f32 0.0, %v2633
      %2635 = vmatmul.bf16.gmra.mxu0 %v2552
      %v2636 = vpop.f32.mrf.mxu0
      %v2637 = vadd.f32 0.0, %v2636
      %v2638 = vpop.f32.mrf.mxu0
      %v2639 = vadd.f32 0.0, %v2638
      %2640 = vmatmul.bf16.gmra.mxu0 %v2555
      %v2641 = vpop.f32.mrf.mxu0
      %v2642 = vadd.f32 0.0, %v2641
      %v2643 = vpop.f32.mrf.mxu0
      %v2644 = vadd.f32 0.0, %v2643
      %2645 = vmatmul.bf16.gmra.mxu0 %v2558
      %v2646 = vpop.f32.mrf.mxu0
      %v2647 = vadd.f32 0.0, %v2646
      %v2648 = vpop.f32.mrf.mxu0
      %v2649 = vadd.f32 0.0, %v2648
      %2650 = vmatmul.bf16.gmra.mxu0 %v2561
      %v2651 = vpop.f32.mrf.mxu0
      %v2652 = vadd.f32 0.0, %v2651
      %v2653 = vpop.f32.mrf.mxu0
      %v2654 = vadd.f32 0.0, %v2653
      %2655 = vdwg.mxu0
      %v2656 = vld [vmem:[%s3] sm:$0x1]
      %v2658 = vperm.slane %v2656, 0
      %v2660 = vadd.f32 %v2577, %v2658
      %v2661 = vadd.f32 %v2579, %v2658
      %v2662 = vadd.f32 %v2582, %v2658
      %v2663 = vadd.f32 %v2584, %v2658
      %v2664 = vadd.f32 %v2587, %v2658
      %v2665 = vadd.f32 %v2589, %v2658
      %v2666 = vadd.f32 %v2592, %v2658
      %v2667 = vadd.f32 %v2594, %v2658
      %v2668 = vadd.f32 %v2597, %v2658
      %v2669 = vadd.f32 %v2599, %v2658
      %v2670 = vadd.f32 %v2602, %v2658
      %v2671 = vadd.f32 %v2604, %v2658
      %v2672 = vadd.f32 %v2607, %v2658
      %v2673 = vadd.f32 %v2609, %v2658
      %v2674 = vadd.f32 %v2612, %v2658
      %v2675 = vadd.f32 %v2614, %v2658
      %v2676 = vadd.f32 %v2617, %v2658
      %v2677 = vadd.f32 %v2619, %v2658
      %v2678 = vadd.f32 %v2622, %v2658
      %v2679 = vadd.f32 %v2624, %v2658
      %v2680 = vadd.f32 %v2627, %v2658
      %v2681 = vadd.f32 %v2629, %v2658
      %v2682 = vadd.f32 %v2632, %v2658
      %v2683 = vadd.f32 %v2634, %v2658
      %v2684 = vadd.f32 %v2637, %v2658
      %v2685 = vadd.f32 %v2639, %v2658
      %v2686 = vadd.f32 %v2642, %v2658
      %v2687 = vadd.f32 %v2644, %v2658
      %v2688 = vadd.f32 %v2647, %v2658
      %v2689 = vadd.f32 %v2649, %v2658
      %v2690 = vadd.f32 %v2652, %v2658
      %v2691 = vadd.f32 %v2654, %v2658
      %vm2692 = vcmp.gt.f32.partialorder %v2577, 0.0
      %vm2693 = vcmp.gt.f32.partialorder %v2579, 0.0
      %vm2694 = vcmp.gt.f32.partialorder %v2582, 0.0
      %vm2695 = vcmp.gt.f32.partialorder %v2584, 0.0
      %vm2696 = vcmp.gt.f32.partialorder %v2587, 0.0
      %vm2697 = vcmp.gt.f32.partialorder %v2589, 0.0
      %vm2698 = vcmp.gt.f32.partialorder %v2592, 0.0
      %vm2699 = vcmp.gt.f32.partialorder %v2594, 0.0
      %vm2700 = vcmp.gt.f32.partialorder %v2597, 0.0
      %vm2701 = vcmp.gt.f32.partialorder %v2599, 0.0
      %vm2702 = vcmp.gt.f32.partialorder %v2602, 0.0
      %vm2703 = vcmp.gt.f32.partialorder %v2604, 0.0
      %vm2704 = vcmp.gt.f32.partialorder %v2607, 0.0
      %vm2705 = vcmp.gt.f32.partialorder %v2609, 0.0
      %vm2706 = vcmp.gt.f32.partialorder %v2612, 0.0
      %vm2707 = vcmp.gt.f32.partialorder %v2614, 0.0
      %vm2708 = vcmp.gt.f32.partialorder %v2617, 0.0
      %vm2709 = vcmp.gt.f32.partialorder %v2619, 0.0
      %vm2710 = vcmp.gt.f32.partialorder %v2622, 0.0
      %vm2711 = vcmp.gt.f32.partialorder %v2624, 0.0
      %vm2712 = vcmp.gt.f32.partialorder %v2627, 0.0
      %vm2713 = vcmp.gt.f32.partialorder %v2629, 0.0
      %vm2714 = vcmp.gt.f32.partialorder %v2632, 0.0
      %vm2715 = vcmp.gt.f32.partialorder %v2634, 0.0
      %vm2716 = vcmp.gt.f32.partialorder %v2637, 0.0
      %vm2717 = vcmp.gt.f32.partialorder %v2639, 0.0
      %vm2718 = vcmp.gt.f32.partialorder %v2642, 0.0
      %vm2719 = vcmp.gt.f32.partialorder %v2644, 0.0
      %vm2720 = vcmp.gt.f32.partialorder %v2647, 0.0
      %vm2721 = vcmp.gt.f32.partialorder %v2649, 0.0
      %vm2722 = vcmp.gt.f32.partialorder %v2652, 0.0
      %vm2723 = vcmp.gt.f32.partialorder %v2654, 0.0
      %v2724 = vsel %vm2692, 1, 0
      %v2725 = vsel %vm2693, 1, 0
      %v2726 = vsel %vm2694, 1, 0
      %v2727 = vsel %vm2695, 1, 0
      %v2728 = vsel %vm2696, 1, 0
      %v2729 = vsel %vm2697, 1, 0
      %v2730 = vsel %vm2698, 1, 0
      %v2731 = vsel %vm2699, 1, 0
      %v2732 = vsel %vm2700, 1, 0
      %v2733 = vsel %vm2701, 1, 0
      %v2734 = vsel %vm2702, 1, 0
      %v2735 = vsel %vm2703, 1, 0
      %v2736 = vsel %vm2704, 1, 0
      %v2737 = vsel %vm2705, 1, 0
      %v2738 = vsel %vm2706, 1, 0
      %v2739 = vsel %vm2707, 1, 0
      %v2740 = vsel %vm2708, 1, 0
      %v2741 = vsel %vm2709, 1, 0
      %v2742 = vsel %vm2710, 1, 0
      %v2743 = vsel %vm2711, 1, 0
      %v2744 = vsel %vm2712, 1, 0
      %v2745 = vsel %vm2713, 1, 0
      %v2746 = vsel %vm2714, 1, 0
      %v2747 = vsel %vm2715, 1, 0
      %v2748 = vsel %vm2716, 1, 0
      %v2749 = vsel %vm2717, 1, 0
      %v2750 = vsel %vm2718, 1, 0
      %v2751 = vsel %vm2719, 1, 0
      %v2752 = vsel %vm2720, 1, 0
      %v2753 = vsel %vm2721, 1, 0
      %v2754 = vsel %vm2722, 1, 0
      %v2755 = vsel %vm2723, 1, 0
      %2756 = vset.pattern.permute.xlu0 8
      %2757 = vperm.xlu0 %2756, %v2724
      %v2758 = vpop.permute.xlu0 %2757
      %2759 = vset.pattern.permute.xlu0 8
      %2760 = vperm.xlu0 %2759, %v2725
      %v2761 = vpop.permute.xlu0 %2760
      %2762 = vset.pattern.permute.xlu0 8
      %2763 = vperm.xlu0 %2762, %v2726
      %v2764 = vpop.permute.xlu0 %2763
      %2765 = vset.pattern.permute.xlu0 8
      %2766 = vperm.xlu0 %2765, %v2727
      %v2767 = vpop.permute.xlu0 %2766
      %2768 = vset.pattern.permute.xlu0 8
      %2769 = vperm.xlu0 %2768, %v2728
      %v2770 = vpop.permute.xlu0 %2769
      %2771 = vset.pattern.permute.xlu0 8
      %2772 = vperm.xlu0 %2771, %v2729
      %v2773 = vpop.permute.xlu0 %2772
      %2774 = vset.pattern.permute.xlu0 8
      %2775 = vperm.xlu0 %2774, %v2730
      %v2776 = vpop.permute.xlu0 %2775
      %2777 = vset.pattern.permute.xlu0 8
      %2778 = vperm.xlu0 %2777, %v2731
      %v2779 = vpop.permute.xlu0 %2778
      %2780 = vset.pattern.permute.xlu0 8
      %2781 = vperm.xlu0 %2780, %v2732
      %v2782 = vpop.permute.xlu0 %2781
      %2783 = vset.pattern.permute.xlu0 8
      %2784 = vperm.xlu0 %2783, %v2733
      %v2785 = vpop.permute.xlu0 %2784
      %2786 = vset.pattern.permute.xlu0 8
      %2787 = vperm.xlu0 %2786, %v2734
      %v2788 = vpop.permute.xlu0 %2787
      %2789 = vset.pattern.permute.xlu0 8
      %2790 = vperm.xlu0 %2789, %v2735
      %v2791 = vpop.permute.xlu0 %2790
      %2792 = vset.pattern.permute.xlu0 8
      %2793 = vperm.xlu0 %2792, %v2736
      %v2794 = vpop.permute.xlu0 %2793
      %2795 = vset.pattern.permute.xlu0 8
      %2796 = vperm.xlu0 %2795, %v2737
      %v2797 = vpop.permute.xlu0 %2796
      %2798 = vset.pattern.permute.xlu0 8
      %2799 = vperm.xlu0 %2798, %v2738
      %v2800 = vpop.permute.xlu0 %2799
      %2801 = vset.pattern.permute.xlu0 8
      %2802 = vperm.xlu0 %2801, %v2739
      %v2803 = vpop.permute.xlu0 %2802
      %2804 = vset.pattern.permute.xlu0 8
      %2805 = vperm.xlu0 %2804, %v2740
      %v2806 = vpop.permute.xlu0 %2805
      %2807 = vset.pattern.permute.xlu0 8
      %2808 = vperm.xlu0 %2807, %v2741
      %v2809 = vpop.permute.xlu0 %2808
      %2810 = vset.pattern.permute.xlu0 8
      %2811 = vperm.xlu0 %2810, %v2742
      %v2812 = vpop.permute.xlu0 %2811
      %2813 = vset.pattern.permute.xlu0 8
      %2814 = vperm.xlu0 %2813, %v2743
      %v2815 = vpop.permute.xlu0 %2814
      %2816 = vset.pattern.permute.xlu0 8
      %2817 = vperm.xlu0 %2816, %v2744
      %v2818 = vpop.permute.xlu0 %2817
      %2819 = vset.pattern.permute.xlu0 8
      %2820 = vperm.xlu0 %2819, %v2745
      %v2821 = vpop.permute.xlu0 %2820
      %2822 = vset.pattern.permute.xlu0 8
      %2823 = vperm.xlu0 %2822, %v2746
      %v2824 = vpop.permute.xlu0 %2823
      %2825 = vset.pattern.permute.xlu0 8
      %2826 = vperm.xlu0 %2825, %v2747
      %v2827 = vpop.permute.xlu0 %2826
      %2828 = vset.pattern.permute.xlu0 8
      %2829 = vperm.xlu0 %2828, %v2748
      %v2830 = vpop.permute.xlu0 %2829
      %2831 = vset.pattern.permute.xlu0 8
      %2832 = vperm.xlu0 %2831, %v2749
      %v2833 = vpop.permute.xlu0 %2832
      %2834 = vset.pattern.permute.xlu0 8
      %2835 = vperm.xlu0 %2834, %v2750
      %v2836 = vpop.permute.xlu0 %2835
      %2837 = vset.pattern.permute.xlu0 8
      %2838 = vperm.xlu0 %2837, %v2751
      %v2839 = vpop.permute.xlu0 %2838
      %2840 = vset.pattern.permute.xlu0 8
      %2841 = vperm.xlu0 %2840, %v2752
      %v2842 = vpop.permute.xlu0 %2841
      %2843 = vset.pattern.permute.xlu0 8
      %2844 = vperm.xlu0 %2843, %v2753
      %v2845 = vpop.permute.xlu0 %2844
      %2846 = vset.pattern.permute.xlu0 8
      %2847 = vperm.xlu0 %2846, %v2754
      %v2848 = vpop.permute.xlu0 %2847
      %2849 = vset.pattern.permute.xlu0 8
      %2850 = vperm.xlu0 %2849, %v2755
      %v2851 = vpop.permute.xlu0 %2850
      %vm2852 = vcmp.eq.s32.totalorder %v2758, 1
      %vm2853 = vcmp.eq.s32.totalorder %v2761, 1
      %vm2854 = vcmp.eq.s32.totalorder %v2764, 1
      %vm2855 = vcmp.eq.s32.totalorder %v2767, 1
      %vm2856 = vcmp.eq.s32.totalorder %v2770, 1
      %vm2857 = vcmp.eq.s32.totalorder %v2773, 1
      %vm2858 = vcmp.eq.s32.totalorder %v2776, 1
      %vm2859 = vcmp.eq.s32.totalorder %v2779, 1
      %vm2860 = vcmp.eq.s32.totalorder %v2782, 1
      %vm2861 = vcmp.eq.s32.totalorder %v2785, 1
      %vm2862 = vcmp.eq.s32.totalorder %v2788, 1
      %vm2863 = vcmp.eq.s32.totalorder %v2791, 1
      %vm2864 = vcmp.eq.s32.totalorder %v2794, 1
      %vm2865 = vcmp.eq.s32.totalorder %v2797, 1
      %vm2866 = vcmp.eq.s32.totalorder %v2800, 1
      %vm2867 = vcmp.eq.s32.totalorder %v2803, 1
      %vm2868 = vcmp.eq.s32.totalorder %v2806, 1
      %vm2869 = vcmp.eq.s32.totalorder %v2809, 1
      %vm2870 = vcmp.eq.s32.totalorder %v2812, 1
      %vm2871 = vcmp.eq.s32.totalorder %v2815, 1
      %vm2872 = vcmp.eq.s32.totalorder %v2818, 1
      %vm2873 = vcmp.eq.s32.totalorder %v2821, 1
      %vm2874 = vcmp.eq.s32.totalorder %v2824, 1
      %vm2875 = vcmp.eq.s32.totalorder %v2827, 1
      %vm2876 = vcmp.eq.s32.totalorder %v2830, 1
      %vm2877 = vcmp.eq.s32.totalorder %v2833, 1
      %vm2878 = vcmp.eq.s32.totalorder %v2836, 1
      %vm2879 = vcmp.eq.s32.totalorder %v2839, 1
      %vm2880 = vcmp.eq.s32.totalorder %v2842, 1
      %vm2881 = vcmp.eq.s32.totalorder %v2845, 1
      %vm2882 = vcmp.eq.s32.totalorder %v2848, 1
      %vm2883 = vcmp.eq.s32.totalorder %v2851, 1
      %v2884 = vsel %vm2852, %v2660, 0.0
      %v2885 = vsel %vm2853, %v2661, 0.0
      %v2886 = vsel %vm2854, %v2662, 0.0
      %v2887 = vsel %vm2855, %v2663, 0.0
      %v2888 = vsel %vm2856, %v2664, 0.0
      %v2889 = vsel %vm2857, %v2665, 0.0
      %v2890 = vsel %vm2858, %v2666, 0.0
      %v2891 = vsel %vm2859, %v2667, 0.0
      %v2892 = vsel %vm2860, %v2668, 0.0
      %v2893 = vsel %vm2861, %v2669, 0.0
      %v2894 = vsel %vm2862, %v2670, 0.0
      %v2895 = vsel %vm2863, %v2671, 0.0
      %v2896 = vsel %vm2864, %v2672, 0.0
      %v2897 = vsel %vm2865, %v2673, 0.0
      %v2898 = vsel %vm2866, %v2674, 0.0
      %v2899 = vsel %vm2867, %v2675, 0.0
      %v2900 = vsel %vm2868, %v2676, 0.0
      %v2901 = vsel %vm2869, %v2677, 0.0
      %v2902 = vsel %vm2870, %v2678, 0.0
      %v2903 = vsel %vm2871, %v2679, 0.0
      %v2904 = vsel %vm2872, %v2680, 0.0
      %v2905 = vsel %vm2873, %v2681, 0.0
      %v2906 = vsel %vm2874, %v2682, 0.0
      %v2907 = vsel %vm2875, %v2683, 0.0
      %v2908 = vsel %vm2876, %v2684, 0.0
      %v2909 = vsel %vm2877, %v2685, 0.0
      %v2910 = vsel %vm2878, %v2686, 0.0
      %v2911 = vsel %vm2879, %v2687, 0.0
      %v2912 = vsel %vm2880, %v2688, 0.0
      %v2913 = vsel %vm2881, %v2689, 0.0
      %v2914 = vsel %vm2882, %v2690, 0.0
      %v2915 = vsel %vm2883, %v2691, 0.0
      %2916 = vst.msk [vmem:[%s316] sm:$0xff] %vm851, %v2884
      %2917 = vst.msk [vmem:[%s316 + $0x8] sm:$0xff] %vm851, %v2885
      %2918 = vst.msk [vmem:[%s316 + $0x10] sm:$0xff] %vm851, %v2886
      %2919 = vst.msk [vmem:[%s316 + $0x18] sm:$0xff] %vm851, %v2887
      %2920 = vst.msk [vmem:[%s316 + $0x20] sm:$0xff] %vm851, %v2888
      %2921 = vst.msk [vmem:[%s316 + $0x28] sm:$0xff] %vm851, %v2889
      %2922 = vst.msk [vmem:[%s316 + $0x30] sm:$0xff] %vm851, %v2890
      %2923 = vst.msk [vmem:[%s316 + $0x38] sm:$0xff] %vm851, %v2891
      %2924 = vst.msk [vmem:[%s316 + $0x40] sm:$0xff] %vm851, %v2892
      %2925 = vst.msk [vmem:[%s316 + $0x48] sm:$0xff] %vm851, %v2893
      %2926 = vst.msk [vmem:[%s316 + $0x50] sm:$0xff] %vm851, %v2894
      %2927 = vst.msk [vmem:[%s316 + $0x58] sm:$0xff] %vm851, %v2895
      %2928 = vst.msk [vmem:[%s316 + $0x60] sm:$0xff] %vm851, %v2896
      %2929 = vst.msk [vmem:[%s316 + $0x68] sm:$0xff] %vm851, %v2897
      %2930 = vst.msk [vmem:[%s316 + $0x70] sm:$0xff] %vm851, %v2898
      %2931 = vst.msk [vmem:[%s316 + $0x78] sm:$0xff] %vm851, %v2899
      %2932 = vst.msk [vmem:[%s316 + $0x80] sm:$0xff] %vm851, %v2900
      %2933 = vst.msk [vmem:[%s316 + $0x88] sm:$0xff] %vm851, %v2901
      %2934 = vst.msk [vmem:[%s316 + $0x90] sm:$0xff] %vm851, %v2902
      %2935 = vst.msk [vmem:[%s316 + $0x98] sm:$0xff] %vm851, %v2903
      %2936 = vst.msk [vmem:[%s316 + $0xa0] sm:$0xff] %vm851, %v2904
      %2937 = vst.msk [vmem:[%s316 + $0xa8] sm:$0xff] %vm851, %v2905
      %2938 = vst.msk [vmem:[%s316 + $0xb0] sm:$0xff] %vm851, %v2906
      %2939 = vst.msk [vmem:[%s316 + $0xb8] sm:$0xff] %vm851, %v2907
      %2940 = vst.msk [vmem:[%s316 + $0xc0] sm:$0xff] %vm851, %v2908
      %2941 = vst.msk [vmem:[%s316 + $0xc8] sm:$0xff] %vm851, %v2909
      %2942 = vst.msk [vmem:[%s316 + $0xd0] sm:$0xff] %vm851, %v2910
      %2943 = vst.msk [vmem:[%s316 + $0xd8] sm:$0xff] %vm851, %v2911
      %2944 = vst.msk [vmem:[%s316 + $0xe0] sm:$0xff] %vm851, %v2912
      %2945 = vst.msk [vmem:[%s316 + $0xe8] sm:$0xff] %vm851, %v2913
      %2946 = vst.msk [vmem:[%s316 + $0xf0] sm:$0xff] %vm851, %v2914
      %2947 = vst.msk [vmem:[%s316 + $0xf8] sm:$0xff] %vm851, %v2915
      %v2948 = vsel %vm2692, 1.0, %v2577
      %v2949 = vsel %vm2693, 1.0, %v2579
      %v2950 = vsel %vm2694, 1.0, %v2582
      %v2951 = vsel %vm2695, 1.0, %v2584
      %v2952 = vsel %vm2696, 1.0, %v2587
      %v2953 = vsel %vm2697, 1.0, %v2589
      %v2954 = vsel %vm2698, 1.0, %v2592
      %v2955 = vsel %vm2699, 1.0, %v2594
      %v2956 = vsel %vm2700, 1.0, %v2597
      %v2957 = vsel %vm2701, 1.0, %v2599
      %v2958 = vsel %vm2702, 1.0, %v2602
      %v2959 = vsel %vm2703, 1.0, %v2604
      %v2960 = vsel %vm2704, 1.0, %v2607
      %v2961 = vsel %vm2705, 1.0, %v2609
      %v2962 = vsel %vm2706, 1.0, %v2612
      %v2963 = vsel %vm2707, 1.0, %v2614
      %v2964 = vsel %vm2708, 1.0, %v2617
      %v2965 = vsel %vm2709, 1.0, %v2619
      %v2966 = vsel %vm2710, 1.0, %v2622
      %v2967 = vsel %vm2711, 1.0, %v2624
      %v2968 = vsel %vm2712, 1.0, %v2627
      %v2969 = vsel %vm2713, 1.0, %v2629
      %v2970 = vsel %vm2714, 1.0, %v2632
      %v2971 = vsel %vm2715, 1.0, %v2634
      %v2972 = vsel %vm2716, 1.0, %v2637
      %v2973 = vsel %vm2717, 1.0, %v2639
      %v2974 = vsel %vm2718, 1.0, %v2642
      %v2975 = vsel %vm2719, 1.0, %v2644
      %v2976 = vsel %vm2720, 1.0, %v2647
      %v2977 = vsel %vm2721, 1.0, %v2649
      %v2978 = vsel %vm2722, 1.0, %v2652
      %v2979 = vsel %vm2723, 1.0, %v2654
      %3012 = vrot.lane.b32.xlu0 %v2948, 120
      %v3013 = vpop.permute.xlu0 %3012
      %3014 = vrot.lane.b32.xlu0 %v2949, 120
      %v3015 = vpop.permute.xlu0 %3014
      %3016 = vrot.lane.b32.xlu0 %v2950, 120
      %v3017 = vpop.permute.xlu0 %3016
      %3018 = vrot.lane.b32.xlu0 %v2951, 120
      %v3019 = vpop.permute.xlu0 %3018
      %3020 = vrot.lane.b32.xlu0 %v2952, 120
      %v3021 = vpop.permute.xlu0 %3020
      %3022 = vrot.lane.b32.xlu0 %v2953, 120
      %v3023 = vpop.permute.xlu0 %3022
      %3024 = vrot.lane.b32.xlu0 %v2954, 120
      %v3025 = vpop.permute.xlu0 %3024
      %3026 = vrot.lane.b32.xlu0 %v2955, 120
      %v3027 = vpop.permute.xlu0 %3026
      %3028 = vrot.lane.b32.xlu0 %v2956, 120
      %v3029 = vpop.permute.xlu0 %3028
      %3030 = vrot.lane.b32.xlu0 %v2957, 120
      %v3031 = vpop.permute.xlu0 %3030
      %3032 = vrot.lane.b32.xlu0 %v2958, 120
      %v3033 = vpop.permute.xlu0 %3032
      %3034 = vrot.lane.b32.xlu0 %v2959, 120
      %v3035 = vpop.permute.xlu0 %3034
      %3036 = vrot.lane.b32.xlu0 %v2960, 120
      %v3037 = vpop.permute.xlu0 %3036
      %3038 = vrot.lane.b32.xlu0 %v2961, 120
      %v3039 = vpop.permute.xlu0 %3038
      %3040 = vrot.lane.b32.xlu0 %v2962, 120
      %v3041 = vpop.permute.xlu0 %3040
      %3042 = vrot.lane.b32.xlu0 %v2963, 120
      %v3043 = vpop.permute.xlu0 %3042
      %3044 = vrot.lane.b32.xlu0 %v2964, 120
      %v3045 = vpop.permute.xlu0 %3044
      %3046 = vrot.lane.b32.xlu0 %v2965, 120
      %v3047 = vpop.permute.xlu0 %3046
      %3048 = vrot.lane.b32.xlu0 %v2966, 120
      %v3049 = vpop.permute.xlu0 %3048
      %3050 = vrot.lane.b32.xlu0 %v2967, 120
      %v3051 = vpop.permute.xlu0 %3050
      %3052 = vrot.lane.b32.xlu0 %v2968, 120
      %v3053 = vpop.permute.xlu0 %3052
      %3054 = vrot.lane.b32.xlu0 %v2969, 120
      %v3055 = vpop.permute.xlu0 %3054
      %3056 = vrot.lane.b32.xlu0 %v2970, 120
      %v3057 = vpop.permute.xlu0 %3056
      %3058 = vrot.lane.b32.xlu0 %v2971, 120
      %v3059 = vpop.permute.xlu0 %3058
      %3060 = vrot.lane.b32.xlu0 %v2972, 120
      %v3061 = vpop.permute.xlu0 %3060
      %3062 = vrot.lane.b32.xlu0 %v2973, 120
      %v3063 = vpop.permute.xlu0 %3062
      %3064 = vrot.lane.b32.xlu0 %v2974, 120
      %v3065 = vpop.permute.xlu0 %3064
      %3066 = vrot.lane.b32.xlu0 %v2975, 120
      %v3067 = vpop.permute.xlu0 %3066
      %3068 = vrot.lane.b32.xlu0 %v2976, 120
      %v3069 = vpop.permute.xlu0 %3068
      %3070 = vrot.lane.b32.xlu0 %v2977, 120
      %v3071 = vpop.permute.xlu0 %3070
      %3072 = vrot.lane.b32.xlu0 %v2978, 120
      %v3073 = vpop.permute.xlu0 %3072
      %3074 = vrot.lane.b32.xlu0 %v2979, 120
      %v3075 = vpop.permute.xlu0 %3074
      %vm3108 = vcmask 7168
      %3109 = vst.msk [vmem:[%s321] sm:$0xff] %vm3108, %v3013
      %3110 = vst.msk [vmem:[%s321 + $0x8] sm:$0xff] %vm3108, %v3015
      %3111 = vst.msk [vmem:[%s321 + $0x10] sm:$0xff] %vm3108, %v3017
      %3112 = vst.msk [vmem:[%s321 + $0x18] sm:$0xff] %vm3108, %v3019
      %3113 = vst.msk [vmem:[%s321 + $0x20] sm:$0xff] %vm3108, %v3021
      %3114 = vst.msk [vmem:[%s321 + $0x28] sm:$0xff] %vm3108, %v3023
      %3115 = vst.msk [vmem:[%s321 + $0x30] sm:$0xff] %vm3108, %v3025
      %3116 = vst.msk [vmem:[%s321 + $0x38] sm:$0xff] %vm3108, %v3027
      %3117 = vst.msk [vmem:[%s321 + $0x40] sm:$0xff] %vm3108, %v3029
      %3118 = vst.msk [vmem:[%s321 + $0x48] sm:$0xff] %vm3108, %v3031
      %3119 = vst.msk [vmem:[%s321 + $0x50] sm:$0xff] %vm3108, %v3033
      %3120 = vst.msk [vmem:[%s321 + $0x58] sm:$0xff] %vm3108, %v3035
      %3121 = vst.msk [vmem:[%s321 + $0x60] sm:$0xff] %vm3108, %v3037
      %3122 = vst.msk [vmem:[%s321 + $0x68] sm:$0xff] %vm3108, %v3039
      %3123 = vst.msk [vmem:[%s321 + $0x70] sm:$0xff] %vm3108, %v3041
      %3124 = vst.msk [vmem:[%s321 + $0x78] sm:$0xff] %vm3108, %v3043
      %3125 = vst.msk [vmem:[%s321 + $0x80] sm:$0xff] %vm3108, %v3045
      %3126 = vst.msk [vmem:[%s321 + $0x88] sm:$0xff] %vm3108, %v3047
      %3127 = vst.msk [vmem:[%s321 + $0x90] sm:$0xff] %vm3108, %v3049
      %3128 = vst.msk [vmem:[%s321 + $0x98] sm:$0xff] %vm3108, %v3051
      %3129 = vst.msk [vmem:[%s321 + $0xa0] sm:$0xff] %vm3108, %v3053
      %3130 = vst.msk [vmem:[%s321 + $0xa8] sm:$0xff] %vm3108, %v3055
      %3131 = vst.msk [vmem:[%s321 + $0xb0] sm:$0xff] %vm3108, %v3057
      %3132 = vst.msk [vmem:[%s321 + $0xb8] sm:$0xff] %vm3108, %v3059
      %3133 = vst.msk [vmem:[%s321 + $0xc0] sm:$0xff] %vm3108, %v3061
      %3134 = vst.msk [vmem:[%s321 + $0xc8] sm:$0xff] %vm3108, %v3063
      %3135 = vst.msk [vmem:[%s321 + $0xd0] sm:$0xff] %vm3108, %v3065
      %3136 = vst.msk [vmem:[%s321 + $0xd8] sm:$0xff] %vm3108, %v3067
      %3137 = vst.msk [vmem:[%s321 + $0xe0] sm:$0xff] %vm3108, %v3069
      %3138 = vst.msk [vmem:[%s321 + $0xe8] sm:$0xff] %vm3108, %v3071
      %3139 = vst.msk [vmem:[%s321 + $0xf0] sm:$0xff] %vm3108, %v3073
      %3140 = vst.msk [vmem:[%s321 + $0xf8] sm:$0xff] %vm3108, %v3075
      %v3141 = vsel %vm851, %v2884, 0.0
      %v3142 = vsel %vm851, %v2885, 0.0
      %v3143 = vadd.f32 %v3141, %v3142
      %v3144 = vsel %vm851, %v2886, 0.0
      %v3145 = vadd.f32 %v3143, %v3144
      %v3146 = vsel %vm851, %v2887, 0.0
      %v3147 = vadd.f32 %v3145, %v3146
      %v3148 = vsel %vm851, %v2888, 0.0
      %v3149 = vadd.f32 %v3147, %v3148
      %v3150 = vsel %vm851, %v2889, 0.0
      %v3151 = vadd.f32 %v3149, %v3150
      %v3152 = vsel %vm851, %v2890, 0.0
      %v3153 = vadd.f32 %v3151, %v3152
      %v3154 = vsel %vm851, %v2891, 0.0
      %v3155 = vadd.f32 %v3153, %v3154
      %v3156 = vsel %vm851, %v2892, 0.0
      %v3157 = vadd.f32 %v3155, %v3156
      %v3158 = vsel %vm851, %v2893, 0.0
      %v3159 = vadd.f32 %v3157, %v3158
      %v3160 = vsel %vm851, %v2894, 0.0
      %v3161 = vadd.f32 %v3159, %v3160
      %v3162 = vsel %vm851, %v2895, 0.0
      %v3163 = vadd.f32 %v3161, %v3162
      %v3164 = vsel %vm851, %v2896, 0.0
      %v3165 = vadd.f32 %v3163, %v3164
      %v3166 = vsel %vm851, %v2897, 0.0
      %v3167 = vadd.f32 %v3165, %v3166
      %v3168 = vsel %vm851, %v2898, 0.0
      %v3169 = vadd.f32 %v3167, %v3168
      %v3170 = vsel %vm851, %v2899, 0.0
      %v3171 = vadd.f32 %v3169, %v3170
      %v3172 = vsel %vm851, %v2900, 0.0
      %v3173 = vadd.f32 %v3171, %v3172
      %v3174 = vsel %vm851, %v2901, 0.0
      %v3175 = vadd.f32 %v3173, %v3174
      %v3176 = vsel %vm851, %v2902, 0.0
      %v3177 = vadd.f32 %v3175, %v3176
      %v3178 = vsel %vm851, %v2903, 0.0
      %v3179 = vadd.f32 %v3177, %v3178
      %v3180 = vsel %vm851, %v2904, 0.0
      %v3181 = vadd.f32 %v3179, %v3180
      %v3182 = vsel %vm851, %v2905, 0.0
      %v3183 = vadd.f32 %v3181, %v3182
      %v3184 = vsel %vm851, %v2906, 0.0
      %v3185 = vadd.f32 %v3183, %v3184
      %v3186 = vsel %vm851, %v2907, 0.0
      %v3187 = vadd.f32 %v3185, %v3186
      %v3188 = vsel %vm851, %v2908, 0.0
      %v3189 = vadd.f32 %v3187, %v3188
      %v3190 = vsel %vm851, %v2909, 0.0
      %v3191 = vadd.f32 %v3189, %v3190
      %v3192 = vsel %vm851, %v2910, 0.0
      %v3193 = vadd.f32 %v3191, %v3192
      %v3194 = vsel %vm851, %v2911, 0.0
      %v3195 = vadd.f32 %v3193, %v3194
      %v3196 = vsel %vm851, %v2912, 0.0
      %v3197 = vadd.f32 %v3195, %v3196
      %v3198 = vsel %vm851, %v2913, 0.0
      %v3199 = vadd.f32 %v3197, %v3198
      %v3200 = vsel %vm851, %v2914, 0.0
      %v3201 = vadd.f32 %v3199, %v3200
      %v3202 = vsel %vm851, %v2915, 0.0
      %v3203 = vadd.f32 %v3201, %v3202
      %v3204 = vrot.slane %v3203, 4
      %v3205 = vadd.f32 %v3203, %v3204
      %v3206 = vrot.slane %v3205, 2
      %v3207 = vadd.f32 %v3205, %v3206
      %v3208 = vrot.slane %v3207, 1
      %v3209 = vadd.f32 %v3207, %v3208
      %vm3210 = vcmask 57344
      %3211 = vst.msk [vmem:[%s324] sm:$0x1] %vm3210, %v3209
      %v3212 = vmul.f32 %v2884, %v2884
      %v3213 = vmul.f32 %v2885, %v2885
      %v3214 = vmul.f32 %v2886, %v2886
      %v3215 = vmul.f32 %v2887, %v2887
      %v3216 = vmul.f32 %v2888, %v2888
      %v3217 = vmul.f32 %v2889, %v2889
      %v3218 = vmul.f32 %v2890, %v2890
      %v3219 = vmul.f32 %v2891, %v2891
      %v3220 = vmul.f32 %v2892, %v2892
      %v3221 = vmul.f32 %v2893, %v2893
      %v3222 = vmul.f32 %v2894, %v2894
      %v3223 = vmul.f32 %v2895, %v2895
      %v3224 = vmul.f32 %v2896, %v2896
      %v3225 = vmul.f32 %v2897, %v2897
      %v3226 = vmul.f32 %v2898, %v2898
      %v3227 = vmul.f32 %v2899, %v2899
      %v3228 = vmul.f32 %v2900, %v2900
      %v3229 = vmul.f32 %v2901, %v2901
      %v3230 = vmul.f32 %v2902, %v2902
      %v3231 = vmul.f32 %v2903, %v2903
      %v3232 = vmul.f32 %v2904, %v2904
      %v3233 = vmul.f32 %v2905, %v2905
      %v3234 = vmul.f32 %v2906, %v2906
      %v3235 = vmul.f32 %v2907, %v2907
      %v3236 = vmul.f32 %v2908, %v2908
      %v3237 = vmul.f32 %v2909, %v2909
      %v3238 = vmul.f32 %v2910, %v2910
      %v3239 = vmul.f32 %v2911, %v2911
      %v3240 = vmul.f32 %v2912, %v2912
      %v3241 = vmul.f32 %v2913, %v2913
      %v3242 = vmul.f32 %v2914, %v2914
      %v3243 = vmul.f32 %v2915, %v2915
      %v3244 = vsel %vm851, %v3212, 0.0
      %v3245 = vsel %vm851, %v3213, 0.0
      %v3246 = vadd.f32 %v3244, %v3245
      %v3247 = vsel %vm851, %v3214, 0.0
      %v3248 = vadd.f32 %v3246, %v3247
      %v3249 = vsel %vm851, %v3215, 0.0
      %v3250 = vadd.f32 %v3248, %v3249
      %v3251 = vsel %vm851, %v3216, 0.0
      %v3252 = vadd.f32 %v3250, %v3251
      %v3253 = vsel %vm851, %v3217, 0.0
      %v3254 = vadd.f32 %v3252, %v3253
      %v3255 = vsel %vm851, %v3218, 0.0
      %v3256 = vadd.f32 %v3254, %v3255
      %v3257 = vsel %vm851, %v3219, 0.0
      %v3258 = vadd.f32 %v3256, %v3257
      %v3259 = vsel %vm851, %v3220, 0.0
      %v3260 = vadd.f32 %v3258, %v3259
      %v3261 = vsel %vm851, %v3221, 0.0
      %v3262 = vadd.f32 %v3260, %v3261
      %v3263 = vsel %vm851, %v3222, 0.0
      %v3264 = vadd.f32 %v3262, %v3263
      %v3265 = vsel %vm851, %v3223, 0.0
      %v3266 = vadd.f32 %v3264, %v3265
      %v3267 = vsel %vm851, %v3224, 0.0
      %v3268 = vadd.f32 %v3266, %v3267
      %v3269 = vsel %vm851, %v3225, 0.0
      %v3270 = vadd.f32 %v3268, %v3269
      %v3271 = vsel %vm851, %v3226, 0.0
      %v3272 = vadd.f32 %v3270, %v3271
      %v3273 = vsel %vm851, %v3227, 0.0
      %v3274 = vadd.f32 %v3272, %v3273
      %v3275 = vsel %vm851, %v3228, 0.0
      %v3276 = vadd.f32 %v3274, %v3275
      %v3277 = vsel %vm851, %v3229, 0.0
      %v3278 = vadd.f32 %v3276, %v3277
      %v3279 = vsel %vm851, %v3230, 0.0
      %v3280 = vadd.f32 %v3278, %v3279
      %v3281 = vsel %vm851, %v3231, 0.0
      %v3282 = vadd.f32 %v3280, %v3281
      %v3283 = vsel %vm851, %v3232, 0.0
      %v3284 = vadd.f32 %v3282, %v3283
      %v3285 = vsel %vm851, %v3233, 0.0
      %v3286 = vadd.f32 %v3284, %v3285
      %v3287 = vsel %vm851, %v3234, 0.0
      %v3288 = vadd.f32 %v3286, %v3287
      %v3289 = vsel %vm851, %v3235, 0.0
      %v3290 = vadd.f32 %v3288, %v3289
      %v3291 = vsel %vm851, %v3236, 0.0
      %v3292 = vadd.f32 %v3290, %v3291
      %v3293 = vsel %vm851, %v3237, 0.0
      %v3294 = vadd.f32 %v3292, %v3293
      %v3295 = vsel %vm851, %v3238, 0.0
      %v3296 = vadd.f32 %v3294, %v3295
      %v3297 = vsel %vm851, %v3239, 0.0
      %v3298 = vadd.f32 %v3296, %v3297
      %v3299 = vsel %vm851, %v3240, 0.0
      %v3300 = vadd.f32 %v3298, %v3299
      %v3301 = vsel %vm851, %v3241, 0.0
      %v3302 = vadd.f32 %v3300, %v3301
      %v3303 = vsel %vm851, %v3242, 0.0
      %v3304 = vadd.f32 %v3302, %v3303
      %v3305 = vsel %vm851, %v3243, 0.0
      %v3306 = vadd.f32 %v3304, %v3305
      %v3307 = vrot.slane %v3306, 4
      %v3308 = vadd.f32 %v3306, %v3307
      %v3309 = vrot.slane %v3308, 2
      %v3310 = vadd.f32 %v3308, %v3309
      %v3311 = vrot.slane %v3310, 1
      %v3312 = vadd.f32 %v3310, %v3311
      %3313 = vst.msk [vmem:[%s327] sm:$0x1] %vm3210, %v3312
      %p3314 = scmp.lt.s32.totalorder %s19, 1
      %s3315 = scalar_select %p3314, %s19, 1
      %s3316 = smul.addr %s3315, 32
      %s3317 = smul.addr %s3316, 8
      %s3318 = scalar_lea.vmem %s4, %s3317
      %p3319 = scmp.lt.s32.totalorder %s19, 1
      %s3320 = scalar_select %p3319, %s19, 1
      %s3321 = smul.addr %s3320, 32
      %s3322 = smul.addr %s3321, 8
      %s3323 = scalar_lea.vmem %s5, %s3322
      %p3324 = scmp.lt.s32.totalorder %s19, 1
      %s3325 = scalar_select %p3324, %s19, 1
      %s3326 = scalar_lea.vmem %s6, %s3325
      %p3327 = scmp.lt.s32.totalorder %s19, 1
      %s3328 = scalar_select %p3327, %s19, 1
      %s3329 = scalar_lea.vmem %s7, %s3328
      // Predicated region
      $region37: #{conv_module_forward.2} parent=35 // pred_check
        %p3330 = pneg %p131
      $region38: #{conv_module_forward.2} parent=35 // pred_check_branch
        %3332 = sbr.rel (%p3330) target = $region40
      $region39: #{conv_module_forward.2} parent=35 // pred_region
        _
      $region40: #{conv_module_forward.2} parent=35 // pred_fallthru
        _
      // Predicated region
      $region41: #{conv_module_forward.2} parent=35 // pred_check
        %p3333 = pneg %p157
      $region42: #{conv_module_forward.2} parent=35 // pred_check_branch
        %3335 = sbr.rel (%p3333) target = $region44
      $region43: #{conv_module_forward.2} parent=35 // pred_region
        _
      $region44: #{conv_module_forward.2} parent=35 // pred_fallthru
        _
      // Predicated region
      $region45: #{conv_module_forward.2} parent=35 // pred_check
        %p3336 = pneg %p183
      $region46: #{conv_module_forward.2} parent=35 // pred_check_branch
        %3338 = sbr.rel (%p3336) target = $region48
      $region47: #{conv_module_forward.2} parent=35 // pred_region
        _
      $region48: #{conv_module_forward.2} parent=35 // pred_fallthru
        _
      // Predicated region
      $region49: #{conv_module_forward.2} parent=35 // pred_check
        %p3339 = pneg %p209
      $region50: #{conv_module_forward.2} parent=35 // pred_check_branch
        %3341 = sbr.rel (%p3339) target = $region52
      $region51: #{conv_module_forward.2} parent=35 // pred_region
        _
      $region52: #{conv_module_forward.2} parent=35 // pred_fallthru
        _
    $region36: #{conv_module_forward.2} parent=5 // pred_fallthru
      _
    %p3342 = scmp.le.s32.totalorder 2, %s14
    // Predicated region
    $region53: #{conv_module_forward.2} parent=5 // pred_check
      %p3343 = pneg %p3342
    $region54: #{conv_module_forward.2} parent=5 // pred_check_branch
      %3345 = sbr.rel (%p3343) target = $region56
    $region55: #{conv_module_forward.2} parent=5 // pred_region
      %s3346 = ssub.s32 %s14, 2
      // Predicated region
      $region57: #{conv_module_forward.2} parent=55 // pred_check
        %p3347 = pneg %p137
      $region58: #{conv_module_forward.2} parent=55 // pred_check_branch
        %3349 = sbr.rel (%p3347) target = $region60
      $region59: #{conv_module_forward.2} parent=55 // pred_region
        %p3350 = scmp.lt.s32.totalorder %s20, 1
        %s3351 = scalar_select %p3350, %s20, 1
        %s3352 = smul.addr %s3351, 32
        %s3353 = smul.addr %s3352, 8
        %s3354 = scalar_lea.vmem %s4, %s3353
      $region60: #{conv_module_forward.2} parent=55 // pred_fallthru
        _
      // Predicated region
      $region61: #{conv_module_forward.2} parent=55 // pred_check
        %p3355 = pneg %p163
      $region62: #{conv_module_forward.2} parent=55 // pred_check_branch
        %3357 = sbr.rel (%p3355) target = $region64
      $region63: #{conv_module_forward.2} parent=55 // pred_region
        %p3358 = scmp.lt.s32.totalorder %s20, 1
        %s3359 = scalar_select %p3358, %s20, 1
        %s3360 = smul.addr %s3359, 32
        %s3361 = smul.addr %s3360, 8
        %s3362 = scalar_lea.vmem %s5, %s3361
      $region64: #{conv_module_forward.2} parent=55 // pred_fallthru
        _
      // Predicated region
      $region65: #{conv_module_forward.2} parent=55 // pred_check
        %p3363 = pneg %p189
      $region66: #{conv_module_forward.2} parent=55 // pred_check_branch
        %3365 = sbr.rel (%p3363) target = $region68
      $region67: #{conv_module_forward.2} parent=55 // pred_region
        %p3366 = scmp.lt.s32.totalorder %s20, 1
        %s3367 = scalar_select %p3366, %s20, 1
        %s3368 = scalar_lea.vmem %s6, %s3367
      $region68: #{conv_module_forward.2} parent=55 // pred_fallthru
        _
      // Predicated region
      $region69: #{conv_module_forward.2} parent=55 // pred_check
        %p3369 = pneg %p215
      $region70: #{conv_module_forward.2} parent=55 // pred_check_branch
        %3371 = sbr.rel (%p3369) target = $region72
      $region71: #{conv_module_forward.2} parent=55 // pred_region
        %p3372 = scmp.lt.s32.totalorder %s20, 1
        %s3373 = scalar_select %p3372, %s20, 1
        %s3374 = scalar_lea.vmem %s7, %s3373
      $region72: #{conv_module_forward.2} parent=55 // pred_fallthru
        _
    $region56: #{conv_module_forward.2} parent=5 // pred_fallthru
      _
  $region6: #{conv_module_forward.2} parent=0 // loop_footer
    %s18 = sadd.s32 1, %s14
  $region7: #{conv_module_forward.2} parent=0 // loop_footer_branch
    %13 = sbr.rel target = $region3
  $region8: #{conv_module_forward.2} parent=0 // loop_exit
    _

</llo_original>
